<compile_context>
chip_gen: v6e
topology: v6e:2x2x1
jax: 0.10.0
libtpu: 0.0.40
codegen_flags: <defaults>
</compile_context>

<pallas_src>
import functools
import math

import jax
import jax.numpy as jnp
from jax.experimental import pallas as pl
from jax.experimental.pallas import tpu as pltpu

# Above the 32 MiB scoped default, below v7x's 64 MiB physical VMEM per TensorCore.
_VMEM_LIMIT_BYTES = 48 * 1024 * 1024


# ---------------------------------------------------------------------------
# Tiling helpers
# ---------------------------------------------------------------------------
def _sublane_align(dtype):
    """Sublane alignment: 8 rows per sublane-tile for 32-bit, 16 for bf16, 32 for 8-bit."""
    itemsize = jnp.dtype(dtype).itemsize
    if itemsize >= 4:
        return 8
    if itemsize == 2:
        return 16
    return 32


def _pick_tile(dim, target, align):
    """Largest tile <= target that is a multiple of `align` and divides `dim`
    (falls back to the full dim, which is always a legal block size)."""
    if dim <= target:
        return dim
    t = (target // align) * align
    while t >= align:
        if dim % t == 0:
            return t
        t -= align
    return dim


def _attention_tile_targets():
    """v6e/v7x MXUs are 256-deep -> 256 tiles; v5e (128x128 MXU) keeps 128."""
    try:
        kind = jax.devices()[0].device_kind.lower()
    except Exception:  # pragma: no cover - defensive
        kind = ""
    if "v5" in kind:
        return 128, 128
    return 256, 256


# ---------------------------------------------------------------------------
# Linear kernel:  out = x @ W + b   (W stored input-major; no in-kernel transpose)
# ---------------------------------------------------------------------------
def _linear_kernel(x_ref, w_ref, b_ref, o_ref):
    o_ref[...] = (jnp.dot(x_ref[...], w_ref[...],
                          preferred_element_type=jnp.float32)
                  + b_ref[...]).astype(o_ref.dtype)


def _linear(x2d, w_t, b, *, tm_target=512, tn_target=512):
    # TODO(synk): for very large C (>~4K) add a K grid axis ("arbitrary" + f32
    # accumulator scratch) so blocks shrink on v7x's 64 MiB VMEM.
    M, K = x2d.shape
    K2, N = w_t.shape
    assert K == K2
    tm = _pick_tile(M, tm_target, _sublane_align(x2d.dtype))
    tn = _pick_tile(N, tn_target, 128)
    grid = (M // tm, N // tn)

    itemsize = jnp.dtype(x2d.dtype).itemsize
    cost = pl.CostEstimate(
        flops=2 * M * K * N,
        transcendentals=0,
        bytes_accessed=(M * K + (M // tm) * K * N + M * N + N) * itemsize)

    return pl.pallas_call(
        _linear_kernel,
        out_shape=jax.ShapeDtypeStruct((M, N), x2d.dtype),
        grid_spec=pltpu.PrefetchScalarGridSpec(
            num_scalar_prefetch=0,
            grid=grid,
            in_specs=[
                pl.BlockSpec((tm, K), lambda i, j: (i, 0)),   # activations
                pl.BlockSpec((K, tn), lambda i, j: (0, j)),   # weight tile (N-tiled)
                pl.BlockSpec((1, tn), lambda i, j: (0, j)),   # bias tile
            ],
            out_specs=pl.BlockSpec((tm, tn), lambda i, j: (i, j)),
        ),
        compiler_params=pltpu.CompilerParams(
            dimension_semantics=("parallel", "parallel"),
            vmem_limit_bytes=_VMEM_LIMIT_BYTES),
        cost_estimate=cost,
    )(x2d, w_t, b.reshape(1, N))


# ---------------------------------------------------------------------------
# Flash attention kernel: triangle-only grid (no dead KV tiles), online softmax,
# heads batched, mask only on diagonal-crossing tiles, lane-dense output.
# ---------------------------------------------------------------------------
def _flash_attn_kernel(qi_map_ref, ki_map_ref, q_ref, k_ref, v_ref, o_ref,
                       m_sc, l_sc, acc_sc, qt_sc, *, approx_recip):
    s_idx = pl.program_id(1)
    qi = qi_map_ref[s_idx]          # dynamic q-tile index for this flat step
    ki = ki_map_ref[s_idx]          # dynamic kv-tile index for this flat step
    tq, H, hd = q_ref.shape
    tk = k_ref.shape[0]

    @pl.when(ki == 0)
    def _init():
        m_sc[...] = jnp.full_like(m_sc, -1e30)
        l_sc[...] = jnp.zeros_like(l_sc)
        acc_sc[...] = jnp.zeros_like(acc_sc)
        # Cache Q in head-major layout once per q tile (XLU work amortized over
        # every kv step of this q tile).
        qt_sc[...] = pltpu.einshape("qhd->hqd", q_ref[...])

    def online_softmax_step(apply_mask):
        q = qt_sc[...]                                    # (H, tq, hd)
        k = pltpu.einshape("khd->hkd", k_ref[...])        # (H, tk, hd)
        v = pltpu.einshape("khd->hkd", v_ref[...])        # (H, tk, hd)

        # 1/sqrt(hd) is folded into the Q projection weights -> no scale here.
        s = jnp.einsum('hqd,hkd->hqk', q, k,
                       preferred_element_type=jnp.float32)   # (H, tq, tk)
        if apply_mask:
            rows = jax.lax.broadcasted_iota(jnp.int32, (tq, tk), 0) + qi * tq
            cols = jax.lax.broadcasted_iota(jnp.int32, (tq, tk), 1) + ki * tk
            s = jnp.where((rows >= cols)[None, :, :], s, -1e30)

        m_prev = m_sc[...]                                # (H, tq, 1)
        m_new = jnp.maximum(m_prev, s.max(axis=-1, keepdims=True))
        alpha = jnp.exp(m_prev - m_new)
        p = jnp.exp(s - m_new)
        l_sc[...] = alpha * l_sc[...] + p.sum(axis=-1, keepdims=True)
        # Probabilities cast to the value dtype (bf16 operands when model is bf16),
        # accumulate in f32.
        acc_sc[...] = alpha * acc_sc[...] + jnp.einsum(
            'hqk,hkd->hqd', p.astype(v.dtype), v,
            preferred_element_type=jnp.float32)
        m_sc[...] = m_new

    # Only diagonal-crossing tiles need the causal mask; fully-visible tiles take
    # the fast path (no iota / compare / select VALU work).
    crosses_diag = (ki + 1) * tk > qi * tq + 1

    @pl.when(crosses_diag)
    def _masked():
        online_softmax_step(apply_mask=True)

    @pl.when(jnp.logical_not(crosses_diag))
    def _unmasked():
        online_softmax_step(apply_mask=False)

    # Finalize on the last visible kv tile for this q tile (triangle grid: this is
    # NOT the last grid step along the flat axis in general).
    is_last = (ki + 1) * tk >= (qi + 1) * tq

    @pl.when(is_last)
    def _finalize():
        inv_l = pl.reciprocal(l_sc[...], approx=approx_recip)   # EUP slot, ~free
        y = acc_sc[...] * inv_l                                 # (H, tq, hd) f32
        # Emit in (tq, H, hd) order so the HBM layout is the lane-dense (B, T, C) slab.
        o_ref[...] = pltpu.einshape("hqd->qhd", y).astype(o_ref.dtype)


def _flash_attention(qkv5, out_dtype, *, tq_target=None, tk_target=None,
                     approx_recip=True):
    """qkv5: (B, T, 3, H, hd) fused projection output. Returns (B, T, H, hd)."""
    B, T, three, H, hd = qkv5.shape
    assert three == 3
    if tq_target is None or tk_target is None:
        tq_target, tk_target = _attention_tile_targets()
    align = _sublane_align(qkv5.dtype)
    tq = _pick_tile(T, tq_target, align)
    tk = _pick_tile(T, tk_target, align)
    nq = T // tq

    # Triangle-only enumeration of (q-tile, kv-tile) pairs: kv tiles strictly above
    # the causal diagonal are never visited (no DMA, no grid-step overhead).
    def n_visible(qi):
        return -(-((qi + 1) * tq) // tk)          # ceil((qi+1)*tq / tk)

    pairs = [(qi, ki) for qi in range(nq) for ki in range(n_visible(qi))]
    qi_map = jnp.asarray([p[0] for p in pairs], dtype=jnp.int32)
    ki_map = jnp.asarray([p[1] for p in pairs], dtype=jnp.int32)
    n_steps = len(pairs)

    kernel = functools.partial(_flash_attn_kernel, approx_recip=approx_recip)
    return pl.pallas_call(
        kernel,
        out_shape=jax.ShapeDtypeStruct((B, T, H, hd), out_dtype),
        grid_spec=pltpu.PrefetchScalarGridSpec(
            num_scalar_prefetch=2,
            grid=(B, n_steps),
            in_specs=[
                # Q / K / V read straight from the (B, T, 3, H, hd) qkv tensor.
                pl.BlockSpec((pl.Squeezed(), tq, pl.Squeezed(), H, hd),
                             lambda b, s, qi_m, ki_m: (b, qi_m[s], 0, 0, 0)),
                pl.BlockSpec((pl.Squeezed(), tk, pl.Squeezed(), H, hd),
                             lambda b, s, qi_m, ki_m: (b, ki_m[s], 1, 0, 0)),
                pl.BlockSpec((pl.Squeezed(), tk, pl.Squeezed(), H, hd),
                             lambda b, s, qi_m, ki_m: (b, ki_m[s], 2, 0, 0)),
            ],
            out_specs=pl.BlockSpec((pl.Squeezed(), tq, H, hd),
                                   lambda b, s, qi_m, ki_m: (b, qi_m[s], 0, 0)),
            scratch_shapes=[
                pltpu.VMEM((H, tq, 1), jnp.float32),    # running max
                pltpu.VMEM((H, tq, 1), jnp.float32),    # running sum
                pltpu.VMEM((H, tq, hd), jnp.float32),   # output accumulator
                pltpu.VMEM((H, tq, hd), qkv5.dtype),    # cached head-major Q
            ],
        ),
        compiler_params=pltpu.CompilerParams(
            dimension_semantics=("parallel", "arbitrary"),
            vmem_limit_bytes=_VMEM_LIMIT_BYTES),
    )(qi_map, ki_map, qkv5, qkv5, qkv5)


# ---------------------------------------------------------------------------
# Parameter prep (one-time, hoisted out of the per-call path) + forward pass
# ---------------------------------------------------------------------------
def prepare_params(w_attn, b_attn, w_proj, b_proj, nhead):
    """Pre-transpose PyTorch [out, in] weights to input-major and fold the
    1/sqrt(hd) attention scale into the Q columns of c_attn."""
    three_c, C = w_attn.shape
    assert three_c == 3 * C and C % nhead == 0
    hd = C // nhead
    scale = 1.0 / math.sqrt(hd)
    col_scale = jnp.concatenate([
        jnp.full((C,), scale, dtype=w_attn.dtype),     # Q columns get the scale
        jnp.ones((2 * C,), dtype=w_attn.dtype),        # K / V columns unchanged
    ])
    return {
        "w_attn_t": w_attn.T * col_scale[None, :],     # (C, 3C), input-major
        "b_attn": b_attn * col_scale,                  # (3C,)
        "w_proj_t": w_proj.T,                          # (C, C), input-major
        "b_proj": b_proj,                              # (C,)
    }


def causal_self_attention(x, params, nhead):
    B, T, C = x.shape
    assert C % nhead == 0
    hd = C // nhead

    # Fused QKV projection (lane-dense 3C-wide output); scale already folded in.
    qkv = _linear(x.reshape(B * T, C), params["w_attn_t"], params["b_attn"])

    # Free reshape (row-major split of the last dim) -- no HBM transpose passes.
    qkv5 = qkv.reshape(B, T, 3, nhead, hd)

    # Flash attention over the triangle-only grid; output is already (B, T, H, hd),
    # byte-identical to the lane-dense (B, T, C) slab.
    y = _flash_attention(qkv5, x.dtype)
    y2 = y.reshape(B * T, C)                            # free reshape

    out = _linear(y2, params["w_proj_t"], params["b_proj"])
    return out.reshape(B, T, C)


# ---------------------------------------------------------------------------
# Pure-JAX reference (eval-mode PyTorch forward)
# ---------------------------------------------------------------------------
def _reference(x, w_attn, b_attn, w_proj, b_proj, nhead):
    B, T, C = x.shape
    hd = C // nhead
    qkv = jnp.einsum('btc,oc->bto', x, w_attn) + b_attn
    q, k, v = jnp.split(qkv, 3, axis=2)
    q = q.reshape(B, T, nhead, hd).transpose(0, 2, 1, 3)
    k = k.reshape(B, T, nhead, hd).transpose(0, 2, 1, 3)
    v = v.reshape(B, T, nhead, hd).transpose(0, 2, 1, 3)
    att = jnp.einsum('bhtd,bhsd->bhts', q, k) / math.sqrt(hd)
    causal = jnp.tril(jnp.ones((T, T), dtype=bool))
    att = jnp.where(causal[None, None], att, -1e30)
    att = jax.nn.softmax(att, axis=-1)
    y = jnp.einsum('bhts,bhsd->bhtd', att, v)
    y = y.transpose(0, 2, 1, 3).reshape(B, T, C)
    return jnp.einsum('btc,oc->bto', y, w_proj) + b_proj


if __name__ == "__main__":
    # config: n_embd=32, nhead=4, bias=True, dropout=0.0 (eval)
    # NOTE: small shapes by requirement; validate at GPT scale (T=1024, C=768, H=12)
    # before trusting performance / masking edge cases.
    B, T, C, NHEAD = 2, 8, 32, 4

    key = jax.random.PRNGKey(0)
    kx, kw1, kb1, kw2, kb2 = jax.random.split(key, 5)

    x = jax.random.normal(kx, (B, T, C), dtype=jnp.float32)

    # PyTorch-Linear-style init: U(-1/sqrt(fan_in), 1/sqrt(fan_in))
    bound = 1.0 / math.sqrt(C)
    w_attn = jax.random.uniform(kw1, (3 * C, C), jnp.float32, -bound, bound)
    b_attn = jax.random.uniform(kb1, (3 * C,), jnp.float32, -bound, bound)
    w_proj = jax.random.uniform(kw2, (C, C), jnp.float32, -bound, bound)
    b_proj = jax.random.uniform(kb2, (C,), jnp.float32, -bound, bound)

    params = prepare_params(w_attn, b_attn, w_proj, b_proj, NHEAD)
    fwd = jax.jit(functools.partial(causal_self_attention, nhead=NHEAD))

    out = jax.block_until_ready(fwd(x, params))

    ref = _reference(x, w_attn, b_attn, w_proj, b_proj, NHEAD)
    assert out.shape == (B, T, C)
    # Tolerance accounts for the approximate (EUP) reciprocal in the softmax rescale.
    assert jnp.allclose(out, ref, atol=5e-3, rtol=5e-3), (
        f"max abs err {jnp.max(jnp.abs(out - ref))}")

    print("KERNEL_OK")
</pallas_src>

<mosaic_0001>
module attributes {stable_mosaic.version = 11 : i64} {
  func.func @_linear_kernel(%arg0: i32, %arg1: i32, %arg2: memref<16x32xf32, #tpu.memory_space<vmem>>, %arg3: memref<32x96xf32, #tpu.memory_space<vmem>>, %arg4: memref<1x96xf32, #tpu.memory_space<vmem>>, %arg5: memref<16x96xf32, #tpu.memory_space<vmem>>) attributes {dimension_semantics = [#tpu.dimension_semantics<parallel>, #tpu.dimension_semantics<parallel>], iteration_bounds = array<i64: 1, 1>, scalar_prefetch = 0 : i64, scratch_operands = 0 : i64, tpu.core_type = #tpu.core_type<tc>, window_params = [{transform_indices = @transform_0, window_bounds = array<i64: 16, 32>}, {transform_indices = @transform_1, window_bounds = array<i64: 32, 96>}, {transform_indices = @transform_2, window_bounds = array<i64: 1, 96>}, {transform_indices = @transform_3, window_bounds = array<i64: 16, 96>}]} {
    %c0 = arith.constant 0 : index
    %c0_0 = arith.constant 0 : index
    %0 = vector.load %arg2[%c0, %c0_0] : memref<16x32xf32, #tpu.memory_space<vmem>>, vector<16x32xf32>
    %c0_1 = arith.constant 0 : index
    %c0_2 = arith.constant 0 : index
    %1 = vector.load %arg3[%c0_1, %c0_2] : memref<32x96xf32, #tpu.memory_space<vmem>>, vector<32x96xf32>
    %cst = arith.constant dense<0.000000e+00> : vector<16x96xf32>
    %2 = tpu.matmul %0, %1, %cst {dimension_numbers = #tpu.dot_dimension_numbers<[1], [0], [0], [1], [0, 0, 1, 1], [], []>} : vector<16x32xf32>, vector<32x96xf32>, vector<16x96xf32> -> vector<16x96xf32>
    %c0_3 = arith.constant 0 : index
    %c0_4 = arith.constant 0 : index
    %3 = vector.load %arg4[%c0_3, %c0_4] : memref<1x96xf32, #tpu.memory_space<vmem>>, vector<1x96xf32>
    %4 = vector.broadcast %3 : vector<1x96xf32> to vector<16x96xf32>
    %5 = arith.addf %2, %4 : vector<16x96xf32>
    %c0_5 = arith.constant 0 : index
    %c0_6 = arith.constant 0 : index
    %6 = vector.load %arg5[%c0_5, %c0_6] : memref<16x96xf32, #tpu.memory_space<vmem>>, vector<16x96xf32>
    tpu.vector_store %arg5[%c0_5, %c0_6], %5 {strides = array<i32>} : memref<16x96xf32, #tpu.memory_space<vmem>>, vector<16x96xf32>,
    return
  }
  func.func @transform_0(%arg0: i32, %arg1: i32) -> (i32, i32) {
    %c0_i32 = arith.constant 0 : i32
    %c0_i32_0 = arith.constant 0 : i32
    return %arg0, %c0_i32 : i32, i32
  }
  func.func @transform_1(%arg0: i32, %arg1: i32) -> (i32, i32) {
    %c0_i32 = arith.constant 0 : i32
    %c0_i32_0 = arith.constant 0 : i32
    return %c0_i32, %arg1 : i32, i32
  }
  func.func @transform_2(%arg0: i32, %arg1: i32) -> (i32, i32) {
    %c0_i32 = arith.constant 0 : i32
    %c0_i32_0 = arith.constant 0 : i32
    return %c0_i32, %arg1 : i32, i32
  }
  func.func @transform_3(%arg0: i32, %arg1: i32) -> (i32, i32) {
    %c0_i32 = arith.constant 0 : i32
    return %arg0, %arg1 : i32, i32
  }
}

module attributes {stable_mosaic.version = 11 : i64} {
  func.func @_flash_attn_kernel(%arg0: i32, %arg1: i32, %arg2: memref<1xi32, #tpu.memory_space<smem>>, %arg3: memref<1xi32, #tpu.memory_space<smem>>, %arg4: memref<1x8x1x4x8xf32, #tpu.memory_space<vmem>>, %arg5: memref<1x8x1x4x8xf32, #tpu.memory_space<vmem>>, %arg6: memref<1x8x1x4x8xf32, #tpu.memory_space<vmem>>, %arg7: memref<1x8x4x8xf32, #tpu.memory_space<vmem>>, %arg8: memref<4x8x1xf32, #tpu.memory_space<vmem>>, %arg9: memref<4x8x1xf32, #tpu.memory_space<vmem>>, %arg10: memref<4x8x8xf32, #tpu.memory_space<vmem>>, %arg11: memref<4x8x8xf32, #tpu.memory_space<vmem>>) attributes {dimension_semantics = [#tpu.dimension_semantics<parallel>, #tpu.dimension_semantics<arbitrary>], iteration_bounds = array<i64: 2, 1>, scalar_prefetch = 2 : i64, scratch_operands = 4 : i64, tpu.core_type = #tpu.core_type<tc>, window_params = [{transform_indices = @transform_0, window_bounds = array<i64: 1, 8, 1, 4, 8>}, {transform_indices = @transform_1, window_bounds = array<i64: 1, 8, 1, 4, 8>}, {transform_indices = @transform_2, window_bounds = array<i64: 1, 8, 1, 4, 8>}, {transform_indices = @transform_3, window_bounds = array<i64: 1, 8, 4, 8>}]} {
    %0 = arith.index_cast %arg1 : i32 to index
    %1 = memref.load %arg2[%0] : memref<1xi32, #tpu.memory_space<smem>>
    %2 = arith.index_cast %arg1 : i32 to index
    %3 = memref.load %arg3[%2] : memref<1xi32, #tpu.memory_space<smem>>
    %c0_i32 = arith.constant 0 : i32
    %4 = arith.cmpi eq, %3, %c0_i32 : i32
    %5 = arith.extui %4 : i1 to i32
    %c0_i32_0 = arith.constant 0 : i32
    %6 = arith.cmpi ne, %5, %c0_i32_0 : i32
    scf.if %6 {
      %cst = arith.constant -1.000000e+30 : f32
      %24 = vector.broadcast %cst : f32 to vector<4x8x1xf32>
      %c0 = arith.constant 0 : index
      %c0_10 = arith.constant 0 : index
      %c0_11 = arith.constant 0 : index
      %25 = vector.load %arg8[%c0, %c0_10, %c0_11] : memref<4x8x1xf32, #tpu.memory_space<vmem>>, vector<4x8x1xf32>
      tpu.vector_store %arg8[%c0, %c0_10, %c0_11], %24 {strides = array<i32>} : memref<4x8x1xf32, #tpu.memory_space<vmem>>, vector<4x8x1xf32>,
      %cst_12 = arith.constant 0.000000e+00 : f32
      %26 = vector.broadcast %cst_12 : f32 to vector<4x8x1xf32>
      %c0_13 = arith.constant 0 : index
      %c0_14 = arith.constant 0 : index
      %c0_15 = arith.constant 0 : index
      %27 = vector.load %arg9[%c0_13, %c0_14, %c0_15] : memref<4x8x1xf32, #tpu.memory_space<vmem>>, vector<4x8x1xf32>
      tpu.vector_store %arg9[%c0_13, %c0_14, %c0_15], %26 {strides = array<i32>} : memref<4x8x1xf32, #tpu.memory_space<vmem>>, vector<4x8x1xf32>,
      %cst_16 = arith.constant 0.000000e+00 : f32
      %28 = vector.broadcast %cst_16 : f32 to vector<4x8x8xf32>
      %c0_17 = arith.constant 0 : index
      %c0_18 = arith.constant 0 : index
      %c0_19 = arith.constant 0 : index
      %29 = vector.load %arg10[%c0_17, %c0_18, %c0_19] : memref<4x8x8xf32, #tpu.memory_space<vmem>>, vector<4x8x8xf32>
      tpu.vector_store %arg10[%c0_17, %c0_18, %c0_19], %28 {strides = array<i32>} : memref<4x8x8xf32, #tpu.memory_space<vmem>>, vector<4x8x8xf32>,
      %c0_20 = arith.constant 0 : index
      %c0_21 = arith.constant 0 : index
      %c0_22 = arith.constant 0 : index
      %c0_23 = arith.constant 0 : index
      %c0_24 = arith.constant 0 : index
      %30 = vector.load %arg4[%c0_20, %c0_21, %c0_22, %c0_23, %c0_24] : memref<1x8x1x4x8xf32, #tpu.memory_space<vmem>>, vector<1x8x1x4x8xf32>
      %31 = vector.shape_cast %30 : vector<1x8x1x4x8xf32> to vector<8x4x8xf32>
      %32 = tpu.transpose %31, [1, 0, 2] : vector<8x4x8xf32> -> vector<4x8x8xf32>
      %c0_25 = arith.constant 0 : index
      %c0_26 = arith.constant 0 : index
      %c0_27 = arith.constant 0 : index
      %33 = vector.load %arg11[%c0_25, %c0_26, %c0_27] : memref<4x8x8xf32, #tpu.memory_space<vmem>>, vector<4x8x8xf32>
      tpu.vector_store %arg11[%c0_25, %c0_26, %c0_27], %32 {strides = array<i32>} : memref<4x8x8xf32, #tpu.memory_space<vmem>>, vector<4x8x8xf32>,
    } else {
    }
    %c1_i32 = arith.constant 1 : i32
    %7 = arith.addi %3, %c1_i32 : i32
    %c8_i32 = arith.constant 8 : i32
    %8 = arith.muli %7, %c8_i32 : i32
    %c8_i32_1 = arith.constant 8 : i32
    %9 = arith.muli %1, %c8_i32_1 : i32
    %c1_i32_2 = arith.constant 1 : i32
    %10 = arith.addi %9, %c1_i32_2 : i32
    %11 = arith.cmpi sgt, %8, %10 : i32
    %12 = arith.extui %11 : i1 to i32
    %c0_i32_3 = arith.constant 0 : i32
    %13 = arith.cmpi ne, %12, %c0_i32_3 : i32
    scf.if %13 {
      %c0 = arith.constant 0 : index
      %c0_10 = arith.constant 0 : index
      %c0_11 = arith.constant 0 : index
      %24 = vector.load %arg11[%c0, %c0_10, %c0_11] : memref<4x8x8xf32, #tpu.memory_space<vmem>>, vector<4x8x8xf32>
      %c0_12 = arith.constant 0 : index
      %c0_13 = arith.constant 0 : index
      %c0_14 = arith.constant 0 : index
      %c0_15 = arith.constant 0 : index
      %c0_16 = arith.constant 0 : index
      %25 = vector.load %arg5[%c0_12, %c0_13, %c0_14, %c0_15, %c0_16] : memref<1x8x1x4x8xf32, #tpu.memory_space<vmem>>, vector<1x8x1x4x8xf32>
      %26 = vector.shape_cast %25 : vector<1x8x1x4x8xf32> to vector<8x4x8xf32>
      %27 = tpu.transpose %26, [1, 0, 2] : vector<8x4x8xf32> -> vector<4x8x8xf32>
      %c0_17 = arith.constant 0 : index
      %c0_18 = arith.constant 0 : index
      %c0_19 = arith.constant 0 : index
      %c0_20 = arith.constant 0 : index
      %c0_21 = arith.constant 0 : index
      %28 = vector.load %arg6[%c0_17, %c0_18, %c0_19, %c0_20, %c0_21] : memref<1x8x1x4x8xf32, #tpu.memory_space<vmem>>, vector<1x8x1x4x8xf32>
      %29 = vector.shape_cast %28 : vector<1x8x1x4x8xf32> to vector<8x4x8xf32>
      %30 = tpu.transpose %29, [1, 0, 2] : vector<8x4x8xf32> -> vector<4x8x8xf32>
      "tpu.trace_start"() <{level = 10 : i32, message = "hqd,hkd->hqk"}> : () -> ()
      %cst = arith.constant dense<0.000000e+00> : vector<4x8x8xf32>
      %31 = tpu.matmul %24, %27, %cst {dimension_numbers = #tpu.dot_dimension_numbers<[2], [2], [1], [1], [0, 0, 0, 1, 1, 1], [0], [0]>} : vector<4x8x8xf32>, vector<4x8x8xf32>, vector<4x8x8xf32> -> vector<4x8x8xf32>
      "tpu.trace_stop"() : () -> ()
      %32 = tpu.iota {dimensions = array<i32: 0>} : vector<8x8xi32>
      %c8_i32_22 = arith.constant 8 : i32
      %33 = arith.muli %1, %c8_i32_22 : i32
      %34 = vector.broadcast %33 : i32 to vector<8x8xi32>
      %35 = arith.addi %32, %34 : vector<8x8xi32>
      %36 = tpu.iota {dimensions = array<i32: 1>} : vector<8x8xi32>
      %c8_i32_23 = arith.constant 8 : i32
      %37 = arith.muli %3, %c8_i32_23 : i32
      %38 = vector.broadcast %37 : i32 to vector<8x8xi32>
      %39 = arith.addi %36, %38 : vector<8x8xi32>
      %40 = arith.cmpi sge, %35, %39 : vector<8x8xi32>
      %41 = vector.shape_cast %40 : vector<8x8xi1> to vector<1x8x8xi1>
      %cst_24 = arith.constant -1.000000e+30 : f32
      %42 = vector.shape_cast %41 : vector<1x8x8xi1> to vector<1x8x8xi1>
      %43 = vector.broadcast %42 : vector<1x8x8xi1> to vector<4x8x8xi1>
      %44 = vector.broadcast %cst_24 : f32 to vector<4x8x8xf32>
      %45 = arith.select %43, %31, %44 : vector<4x8x8xi1>, vector<4x8x8xf32>
      %c0_25 = arith.constant 0 : index
      %c0_26 = arith.constant 0 : index
      %c0_27 = arith.constant 0 : index
      %46 = vector.load %arg8[%c0_25, %c0_26, %c0_27] : memref<4x8x1xf32, #tpu.memory_space<vmem>>, vector<4x8x1xf32>
      %cst_28 = arith.constant dense<0xFF800000> : vector<4x8xf32>
      %47 = vector.multi_reduction <maximumf>, %45, %cst_28 [2] : vector<4x8x8xf32> to vector<4x8xf32>
      %48 = vector.shape_cast %47 : vector<4x8xf32> to vector<4x8x1xf32>
      %49 = arith.maximumf %46, %48 : vector<4x8x1xf32>
      %50 = arith.subf %46, %49 : vector<4x8x1xf32>
      %51 = math.exp %50 : vector<4x8x1xf32>
      %52 = vector.broadcast %49 : vector<4x8x1xf32> to vector<4x8x8xf32>
      %53 = arith.subf %45, %52 : vector<4x8x8xf32>
      %54 = math.exp %53 : vector<4x8x8xf32>
      %c0_29 = arith.constant 0 : index
      %c0_30 = arith.constant 0 : index
      %c0_31 = arith.constant 0 : index
      %55 = vector.load %arg9[%c0_29, %c0_30, %c0_31] : memref<4x8x1xf32, #tpu.memory_space<vmem>>, vector<4x8x1xf32>
      %56 = arith.mulf %51, %55 : vector<4x8x1xf32>
      %cst_32 = arith.constant dense<0.000000e+00> : vector<4x8xf32>
      %57 = vector.multi_reduction <add>, %54, %cst_32 [2] : vector<4x8x8xf32> to vector<4x8xf32>
      %58 = vector.shape_cast %57 : vector<4x8xf32> to vector<4x8x1xf32>
      %59 = arith.addf %56, %58 : vector<4x8x1xf32>
      %c0_33 = arith.constant 0 : index
      %c0_34 = arith.constant 0 : index
      %c0_35 = arith.constant 0 : index
      %60 = vector.load %arg9[%c0_33, %c0_34, %c0_35] : memref<4x8x1xf32, #tpu.memory_space<vmem>>, vector<4x8x1xf32>
      tpu.vector_store %arg9[%c0_33, %c0_34, %c0_35], %59 {strides = array<i32>} : memref<4x8x1xf32, #tpu.memory_space<vmem>>, vector<4x8x1xf32>,
      %c0_36 = arith.constant 0 : index
      %c0_37 = arith.constant 0 : index
      %c0_38 = arith.constant 0 : index
      %61 = vector.load %arg10[%c0_36, %c0_37, %c0_38] : memref<4x8x8xf32, #tpu.memory_space<vmem>>, vector<4x8x8xf32>
      %62 = vector.broadcast %51 : vector<4x8x1xf32> to vector<4x8x8xf32>
      %63 = arith.mulf %62, %61 : vector<4x8x8xf32>
      "tpu.trace_start"() <{level = 10 : i32, message = "hqk,hkd->hqd"}> : () -> ()
      %cst_39 = arith.constant dense<0.000000e+00> : vector<4x8x8xf32>
      %64 = tpu.matmul %54, %30, %cst_39 {dimension_numbers = #tpu.dot_dimension_numbers<[2], [1], [1], [2], [0, 0, 0, 1, 1, 2], [0], [0]>} : vector<4x8x8xf32>, vector<4x8x8xf32>, vector<4x8x8xf32> -> vector<4x8x8xf32>
      "tpu.trace_stop"() : () -> ()
      %65 = arith.addf %63, %64 : vector<4x8x8xf32>
      %c0_40 = arith.constant 0 : index
      %c0_41 = arith.constant 0 : index
      %c0_42 = arith.constant 0 : index
      %66 = vector.load %arg10[%c0_40, %c0_41, %c0_42] : memref<4x8x8xf32, #tpu.memory_space<vmem>>, vector<4x8x8xf32>
      tpu.vector_store %arg10[%c0_40, %c0_41, %c0_42], %65 {strides = array<i32>} : memref<4x8x8xf32, #tpu.memory_space<vmem>>, vector<4x8x8xf32>,
      %c0_43 = arith.constant 0 : index
      %c0_44 = arith.constant 0 : index
      %c0_45 = arith.constant 0 : index
      %67 = vector.load %arg8[%c0_43, %c0_44, %c0_45] : memref<4x8x1xf32, #tpu.memory_space<vmem>>, vector<4x8x1xf32>
      tpu.vector_store %arg8[%c0_43, %c0_44, %c0_45], %49 {strides = array<i32>} : memref<4x8x1xf32, #tpu.memory_space<vmem>>, vector<4x8x1xf32>,
    } else {
    }
    %true = arith.constant true
    %14 = arith.xori %11, %true : i1
    %15 = arith.extui %14 : i1 to i32
    %c0_i32_4 = arith.constant 0 : i32
    %16 = arith.cmpi ne, %15, %c0_i32_4 : i32
    scf.if %16 {
      %c0 = arith.constant 0 : index
      %c0_10 = arith.constant 0 : index
      %c0_11 = arith.constant 0 : index
      %24 = vector.load %arg11[%c0, %c0_10, %c0_11] : memref<4x8x8xf32, #tpu.memory_space<vmem>>, vector<4x8x8xf32>
      %c0_12 = arith.constant 0 : index
      %c0_13 = arith.constant 0 : index
      %c0_14 = arith.constant 0 : index
      %c0_15 = arith.constant 0 : index
      %c0_16 = arith.constant 0 : index
      %25 = vector.load %arg5[%c0_12, %c0_13, %c0_14, %c0_15, %c0_16] : memref<1x8x1x4x8xf32, #tpu.memory_space<vmem>>, vector<1x8x1x4x8xf32>
      %26 = vector.shape_cast %25 : vector<1x8x1x4x8xf32> to vector<8x4x8xf32>
      %27 = tpu.transpose %26, [1, 0, 2] : vector<8x4x8xf32> -> vector<4x8x8xf32>
      %c0_17 = arith.constant 0 : index
      %c0_18 = arith.constant 0 : index
      %c0_19 = arith.constant 0 : index
      %c0_20 = arith.constant 0 : index
      %c0_21 = arith.constant 0 : index
      %28 = vector.load %arg6[%c0_17, %c0_18, %c0_19, %c0_20, %c0_21] : memref<1x8x1x4x8xf32, #tpu.memory_space<vmem>>, vector<1x8x1x4x8xf32>
      %29 = vector.shape_cast %28 : vector<1x8x1x4x8xf32> to vector<8x4x8xf32>
      %30 = tpu.transpose %29, [1, 0, 2] : vector<8x4x8xf32> -> vector<4x8x8xf32>
      "tpu.trace_start"() <{level = 10 : i32, message = "hqd,hkd->hqk"}> : () -> ()
      %cst = arith.constant dense<0.000000e+00> : vector<4x8x8xf32>
      %31 = tpu.matmul %24, %27, %cst {dimension_numbers = #tpu.dot_dimension_numbers<[2], [2], [1], [1], [0, 0, 0, 1, 1, 1], [0], [0]>} : vector<4x8x8xf32>, vector<4x8x8xf32>, vector<4x8x8xf32> -> vector<4x8x8xf32>
      "tpu.trace_stop"() : () -> ()
      %c0_22 = arith.constant 0 : index
      %c0_23 = arith.constant 0 : index
      %c0_24 = arith.constant 0 : index
      %32 = vector.load %arg8[%c0_22, %c0_23, %c0_24] : memref<4x8x1xf32, #tpu.memory_space<vmem>>, vector<4x8x1xf32>
      %cst_25 = arith.constant dense<0xFF800000> : vector<4x8xf32>
      %33 = vector.multi_reduction <maximumf>, %31, %cst_25 [2] : vector<4x8x8xf32> to vector<4x8xf32>
      %34 = vector.shape_cast %33 : vector<4x8xf32> to vector<4x8x1xf32>
      %35 = arith.maximumf %32, %34 : vector<4x8x1xf32>
      %36 = arith.subf %32, %35 : vector<4x8x1xf32>
      %37 = math.exp %36 : vector<4x8x1xf32>
      %38 = vector.broadcast %35 : vector<4x8x1xf32> to vector<4x8x8xf32>
      %39 = arith.subf %31, %38 : vector<4x8x8xf32>
      %40 = math.exp %39 : vector<4x8x8xf32>
      %c0_26 = arith.constant 0 : index
      %c0_27 = arith.constant 0 : index
      %c0_28 = arith.constant 0 : index
      %41 = vector.load %arg9[%c0_26, %c0_27, %c0_28] : memref<4x8x1xf32, #tpu.memory_space<vmem>>, vector<4x8x1xf32>
      %42 = arith.mulf %37, %41 : vector<4x8x1xf32>
      %cst_29 = arith.constant dense<0.000000e+00> : vector<4x8xf32>
      %43 = vector.multi_reduction <add>, %40, %cst_29 [2] : vector<4x8x8xf32> to vector<4x8xf32>
      %44 = vector.shape_cast %43 : vector<4x8xf32> to vector<4x8x1xf32>
      %45 = arith.addf %42, %44 : vector<4x8x1xf32>
      %c0_30 = arith.constant 0 : index
      %c0_31 = arith.constant 0 : index
      %c0_32 = arith.constant 0 : index
      %46 = vector.load %arg9[%c0_30, %c0_31, %c0_32] : memref<4x8x1xf32, #tpu.memory_space<vmem>>, vector<4x8x1xf32>
      tpu.vector_store %arg9[%c0_30, %c0_31, %c0_32], %45 {strides = array<i32>} : memref<4x8x1xf32, #tpu.memory_space<vmem>>, vector<4x8x1xf32>,
      %c0_33 = arith.constant 0 : index
      %c0_34 = arith.constant 0 : index
      %c0_35 = arith.constant 0 : index
      %47 = vector.load %arg10[%c0_33, %c0_34, %c0_35] : memref<4x8x8xf32, #tpu.memory_space<vmem>>, vector<4x8x8xf32>
      %48 = vector.broadcast %37 : vector<4x8x1xf32> to vector<4x8x8xf32>
      %49 = arith.mulf %48, %47 : vector<4x8x8xf32>
      "tpu.trace_start"() <{level = 10 : i32, message = "hqk,hkd->hqd"}> : () -> ()
      %cst_36 = arith.constant dense<0.000000e+00> : vector<4x8x8xf32>
      %50 = tpu.matmul %40, %30, %cst_36 {dimension_numbers = #tpu.dot_dimension_numbers<[2], [1], [1], [2], [0, 0, 0, 1, 1, 2], [0], [0]>} : vector<4x8x8xf32>, vector<4x8x8xf32>, vector<4x8x8xf32> -> vector<4x8x8xf32>
      "tpu.trace_stop"() : () -> ()
      %51 = arith.addf %49, %50 : vector<4x8x8xf32>
      %c0_37 = arith.constant 0 : index
      %c0_38 = arith.constant 0 : index
      %c0_39 = arith.constant 0 : index
      %52 = vector.load %arg10[%c0_37, %c0_38, %c0_39] : memref<4x8x8xf32, #tpu.memory_space<vmem>>, vector<4x8x8xf32>
      tpu.vector_store %arg10[%c0_37, %c0_38, %c0_39], %51 {strides = array<i32>} : memref<4x8x8xf32, #tpu.memory_space<vmem>>, vector<4x8x8xf32>,
      %c0_40 = arith.constant 0 : index
      %c0_41 = arith.constant 0 : index
      %c0_42 = arith.constant 0 : index
      %53 = vector.load %arg8[%c0_40, %c0_41, %c0_42] : memref<4x8x1xf32, #tpu.memory_space<vmem>>, vector<4x8x1xf32>
      tpu.vector_store %arg8[%c0_40, %c0_41, %c0_42], %35 {strides = array<i32>} : memref<4x8x1xf32, #tpu.memory_space<vmem>>, vector<4x8x1xf32>,
    } else {
    }
    %c1_i32_5 = arith.constant 1 : i32
    %17 = arith.addi %3, %c1_i32_5 : i32
    %c8_i32_6 = arith.constant 8 : i32
    %18 = arith.muli %17, %c8_i32_6 : i32
    %c1_i32_7 = arith.constant 1 : i32
    %19 = arith.addi %1, %c1_i32_7 : i32
    %c8_i32_8 = arith.constant 8 : i32
    %20 = arith.muli %19, %c8_i32_8 : i32
    %21 = arith.cmpi sge, %18, %20 : i32
    %22 = arith.extui %21 : i1 to i32
    %c0_i32_9 = arith.constant 0 : i32
    %23 = arith.cmpi ne, %22, %c0_i32_9 : i32
    scf.if %23 {
      %c0 = arith.constant 0 : index
      %c0_10 = arith.constant 0 : index
      %c0_11 = arith.constant 0 : index
      %24 = vector.load %arg9[%c0, %c0_10, %c0_11] : memref<4x8x1xf32, #tpu.memory_space<vmem>>, vector<4x8x1xf32>
      %25 = tpu.reciprocal %24 {approx = true} : vector<4x8x1xf32> -> vector<4x8x1xf32>
      %c0_12 = arith.constant 0 : index
      %c0_13 = arith.constant 0 : index
      %c0_14 = arith.constant 0 : index
      %26 = vector.load %arg10[%c0_12, %c0_13, %c0_14] : memref<4x8x8xf32, #tpu.memory_space<vmem>>, vector<4x8x8xf32>
      %27 = vector.broadcast %25 : vector<4x8x1xf32> to vector<4x8x8xf32>
      %28 = arith.mulf %26, %27 : vector<4x8x8xf32>
      %29 = tpu.transpose %28, [1, 0, 2] : vector<4x8x8xf32> -> vector<8x4x8xf32>
      %c0_15 = arith.constant 0 : index
      %c0_16 = arith.constant 0 : index
      %c0_17 = arith.constant 0 : index
      %c0_18 = arith.constant 0 : index
      %30 = vector.load %arg7[%c0_15, %c0_16, %c0_17, %c0_18] : memref<1x8x4x8xf32, #tpu.memory_space<vmem>>, vector<1x8x4x8xf32>
      %31 = vector.shape_cast %30 : vector<1x8x4x8xf32> to vector<8x4x8xf32>
      %32 = vector.shape_cast %29 : vector<8x4x8xf32> to vector<1x8x4x8xf32>
      tpu.vector_store %arg7[%c0_15, %c0_16, %c0_17, %c0_18], %32 {strides = array<i32>} : memref<1x8x4x8xf32, #tpu.memory_space<vmem>>, vector<1x8x4x8xf32>,
    } else {
    }
    return
  }
  func.func @transform_0(%arg0: i32, %arg1: i32, %arg2: memref<1xi32, #tpu.memory_space<smem>>, %arg3: memref<1xi32, #tpu.memory_space<smem>>) -> (i32, i32, i32, i32, i32) {
    %0 = arith.index_cast %arg1 : i32 to index
    %1 = memref.load %arg2[%0] : memref<1xi32, #tpu.memory_space<smem>>
    %c0_i32 = arith.constant 0 : i32
    %c0_i32_0 = arith.constant 0 : i32
    %c0_i32_1 = arith.constant 0 : i32
    %c0_i32_2 = arith.constant 0 : i32
    return %arg0, %1, %c0_i32, %c0_i32_0, %c0_i32_1 : i32, i32, i32, i32, i32
  }
  func.func @transform_1(%arg0: i32, %arg1: i32, %arg2: memref<1xi32, #tpu.memory_space<smem>>, %arg3: memref<1xi32, #tpu.memory_space<smem>>) -> (i32, i32, i32, i32, i32) {
    %0 = arith.index_cast %arg1 : i32 to index
    %1 = memref.load %arg3[%0] : memref<1xi32, #tpu.memory_space<smem>>
    %c1_i32 = arith.constant 1 : i32
    %c0_i32 = arith.constant 0 : i32
    %c0_i32_0 = arith.constant 0 : i32
    %c0_i32_1 = arith.constant 0 : i32
    return %arg0, %1, %c1_i32, %c0_i32, %c0_i32_0 : i32, i32, i32, i32, i32
  }
  func.func @transform_2(%arg0: i32, %arg1: i32, %arg2: memref<1xi32, #tpu.memory_space<smem>>, %arg3: memref<1xi32, #tpu.memory_space<smem>>) -> (i32, i32, i32, i32, i32) {
    %0 = arith.index_cast %arg1 : i32 to index
    %1 = memref.load %arg3[%0] : memref<1xi32, #tpu.memory_space<smem>>
    %c2_i32 = arith.constant 2 : i32
    %c0_i32 = arith.constant 0 : i32
    %c0_i32_0 = arith.constant 0 : i32
    %c0_i32_1 = arith.constant 0 : i32
    return %arg0, %1, %c2_i32, %c0_i32, %c0_i32_0 : i32, i32, i32, i32, i32
  }
  func.func @transform_3(%arg0: i32, %arg1: i32, %arg2: memref<1xi32, #tpu.memory_space<smem>>, %arg3: memref<1xi32, #tpu.memory_space<smem>>) -> (i32, i32, i32, i32) {
    %0 = arith.index_cast %arg1 : i32 to index
    %1 = memref.load %arg2[%0] : memref<1xi32, #tpu.memory_space<smem>>
    %c0_i32 = arith.constant 0 : i32
    %c0_i32_0 = arith.constant 0 : i32
    %c0_i32_1 = arith.constant 0 : i32
    return %arg0, %1, %c0_i32, %c0_i32_0 : i32, i32, i32, i32
  }
}

module attributes {stable_mosaic.version = 11 : i64} {
  func.func @_linear_kernel(%arg0: i32, %arg1: i32, %arg2: memref<16x32xf32, #tpu.memory_space<vmem>>, %arg3: memref<32x32xf32, #tpu.memory_space<vmem>>, %arg4: memref<1x32xf32, #tpu.memory_space<vmem>>, %arg5: memref<16x32xf32, #tpu.memory_space<vmem>>) attributes {dimension_semantics = [#tpu.dimension_semantics<parallel>, #tpu.dimension_semantics<parallel>], iteration_bounds = array<i64: 1, 1>, scalar_prefetch = 0 : i64, scratch_operands = 0 : i64, tpu.core_type = #tpu.core_type<tc>, window_params = [{transform_indices = @transform_0, window_bounds = array<i64: 16, 32>}, {transform_indices = @transform_1, window_bounds = array<i64: 32, 32>}, {transform_indices = @transform_2, window_bounds = array<i64: 1, 32>}, {transform_indices = @transform_3, window_bounds = array<i64: 16, 32>}]} {
    %c0 = arith.constant 0 : index
    %c0_0 = arith.constant 0 : index
    %0 = vector.load %arg2[%c0, %c0_0] : memref<16x32xf32, #tpu.memory_space<vmem>>, vector<16x32xf32>
    %c0_1 = arith.constant 0 : index
    %c0_2 = arith.constant 0 : index
    %1 = vector.load %arg3[%c0_1, %c0_2] : memref<32x32xf32, #tpu.memory_space<vmem>>, vector<32x32xf32>
    %cst = arith.constant dense<0.000000e+00> : vector<16x32xf32>
    %2 = tpu.matmul %0, %1, %cst {dimension_numbers = #tpu.dot_dimension_numbers<[1], [0], [0], [1], [0, 0, 1, 1], [], []>} : vector<16x32xf32>, vector<32x32xf32>, vector<16x32xf32> -> vector<16x32xf32>
    %c0_3 = arith.constant 0 : index
    %c0_4 = arith.constant 0 : index
    %3 = vector.load %arg4[%c0_3, %c0_4] : memref<1x32xf32, #tpu.memory_space<vmem>>, vector<1x32xf32>
    %4 = vector.broadcast %3 : vector<1x32xf32> to vector<16x32xf32>
    %5 = arith.addf %2, %4 : vector<16x32xf32>
    %c0_5 = arith.constant 0 : index
    %c0_6 = arith.constant 0 : index
    %6 = vector.load %arg5[%c0_5, %c0_6] : memref<16x32xf32, #tpu.memory_space<vmem>>, vector<16x32xf32>
    tpu.vector_store %arg5[%c0_5, %c0_6], %5 {strides = array<i32>} : memref<16x32xf32, #tpu.memory_space<vmem>>, vector<16x32xf32>,
    return
  }
  func.func @transform_0(%arg0: i32, %arg1: i32) -> (i32, i32) {
    %c0_i32 = arith.constant 0 : i32
    %c0_i32_0 = arith.constant 0 : i32
    return %arg0, %c0_i32 : i32, i32
  }
  func.func @transform_1(%arg0: i32, %arg1: i32) -> (i32, i32) {
    %c0_i32 = arith.constant 0 : i32
    %c0_i32_0 = arith.constant 0 : i32
    return %c0_i32, %arg1 : i32, i32
  }
  func.func @transform_2(%arg0: i32, %arg1: i32) -> (i32, i32) {
    %c0_i32 = arith.constant 0 : i32
    %c0_i32_0 = arith.constant 0 : i32
    return %c0_i32, %arg1 : i32, i32
  }
  func.func @transform_3(%arg0: i32, %arg1: i32) -> (i32, i32) {
    %c0_i32 = arith.constant 0 : i32
    return %arg0, %arg1 : i32, i32
  }
}

</mosaic_0001>

<llo_original>
// kernel: causal_self_attention.3
$region0: #{causal_self_attention.3}
  #allocation0 [shape = 'u32[]', space=smem, size = 0x4, offset = 0x4, fixed_abs, tag = 'smem constant byte address 0x4 - core index']
  #allocation1 [shape = 'u32[144,128]{1,0:T(1,128)}', space=vmem, size = 0x12000, scoped, tag = 'internal scratch']
  %s0 = inlined_call_operand.hbm [shape: f32[16,32], index: 0, kind: input, shape index: {}]
  %s1 = inlined_call_operand.hbm [shape: f32[32,96], index: 1, kind: input, shape index: {}]
  %s2 = inlined_call_operand.vmem [shape: f32[1,96], index: 2, kind: input, shape index: {}]
  %s3 = inlined_call_operand.vmem [shape: f32[16,96], index: 3, kind: output, shape index: {}]
  %s4 = sld [smem:[#allocation0]]
  $region30: #{causal_self_attention.3} parent=0
    _
  %s6 = ssub.s32 1, %s4
  %s7 = scalar_select 0, %s6, %s4
  $region1: #{causal_self_attention.3} parent=0
    #allocation2 [shape = 'u8[8192]{0}', space=vmem, size = 0x2000, scoped, tag = 'input window, operand 0, single buffered']
    #allocation3 [shape = 's32[1]{0}', space=sflag, size = 0x4, scoped, tag = 'scoped memory for causal_self_attention.3']
    #allocation4 [shape = 'u8[16384]{0}', space=vmem, size = 0x4000, scoped, tag = 'input window, operand 1, single buffered']
    #allocation5 [shape = 's32[1]{0}', space=sflag, size = 0x4, scoped, tag = 'scoped memory for causal_self_attention.3']
    %8 = vsyncpa [#allocation3], 0
    %9 = vsyncpa [#allocation5], 0
    // Predicated region
    $region2: #{causal_self_attention.3} parent=1 // pred_check
      _
    $region3: #{causal_self_attention.3} parent=1 // pred_check_branch
      %11 = sbr.rel (0) target = $region5
    $region4: #{causal_self_attention.3} parent=1 // pred_region
      %s13 = ssub.s32 256, 256
      %14 = vsyncadd [#allocation3], %s13
      %s15 = sshll.u32 [#allocation2], 4
      %s16 = int_to_ptr.vmem [resolvable:$true] %s15
      %21 = dma.hbm_to_vmem [thread:$0]  %s0, 256, %s16, [#allocation3], 128, 128, 8
    $region5: #{causal_self_attention.3} parent=1 // pred_fallthru
      _
    // Predicated region
    $region6: #{causal_self_attention.3} parent=1 // pred_check
      _
    $region7: #{causal_self_attention.3} parent=1 // pred_check_branch
      %23 = sbr.rel (0) target = $region9
    $region8: #{causal_self_attention.3} parent=1 // pred_region
      %s25 = ssub.s32 512, 512
      %26 = vsyncadd [#allocation5], %s25
      %s27 = sshll.u32 [#allocation4], 4
      %s28 = int_to_ptr.vmem [resolvable:$true] %s27
      %33 = dma.hbm_to_vmem [thread:$0]  %s1, 512, %s28, [#allocation5], 128, 128, 8
    $region9: #{causal_self_attention.3} parent=1 // pred_fallthru
      _
    // Predicated region
    $region10: #{causal_self_attention.3} parent=1 // pred_check
      _
    $region11: #{causal_self_attention.3} parent=1 // pred_check_branch
      %35 = sbr.rel (0) target = $region13
    $region12: #{causal_self_attention.3} parent=1 // pred_region
      _
    $region13: #{causal_self_attention.3} parent=1 // pred_fallthru
      _
    // Predicated region
    $region14: #{causal_self_attention.3} parent=1 // pred_check
      _
    $region15: #{causal_self_attention.3} parent=1 // pred_check_branch
      %37 = sbr.rel (0) target = $region17
    $region16: #{causal_self_attention.3} parent=1 // pred_region
      %38 = dma.done [#allocation3], 256
    $region17: #{causal_self_attention.3} parent=1 // pred_fallthru
      _
    // Predicated region
    $region18: #{causal_self_attention.3} parent=1 // pred_check
      _
    $region19: #{causal_self_attention.3} parent=1 // pred_check_branch
      %40 = sbr.rel (0) target = $region21
    $region20: #{causal_self_attention.3} parent=1 // pred_region
      %41 = dma.done [#allocation5], 512
    $region21: #{causal_self_attention.3} parent=1 // pred_fallthru
      _
    %v42 = vld [vmem:[#allocation2] sm:$0xff]
    %v43 = vld [vmem:[#allocation2 + $0x8] sm:$0xff]
    %v44 = vld [vmem:[#allocation4] sm:$0xff]
    %v45 = vld [vmem:[#allocation4 + $0x8] sm:$0xff]
    %v46 = vld [vmem:[#allocation4 + $0x10] sm:$0xff]
    %v47 = vld [vmem:[#allocation4 + $0x18] sm:$0xff]
    %v48 = vld [vmem:[%s2] sm:$0x1]
    %v50 = vlaneseq
    %v51 = vshrl.u32 %v50, 7
    %v52 = vsub.s32 0, %v51
    %v53 = vrot.slane %v48, %v52
    %vm55 = vcmask 261120
    %v57 = vsel %vm55, %v42, 0
    %v60 = vsel %vm55, %v43, 0
    %62 = vmatprep.subr.mxu0 0.0
    %63 = vmatpush1.msra.mxu0 0.0
    %64 = vmatprep.subr.mxu0 0.0
    %65 = vmatpush1.msra.mxu0 0.0
    %66 = vmatprep.subr.mxu0 0.0
    %67 = vmatpush1.msra.mxu0 0.0
    %68 = vmatprep.subr.mxu0 0.0
    %69 = vmatpush1.msra.mxu0 0.0
    %70 = vmatprep.subr.mxu0 0.0
    %71 = vmatpush1.msra.mxu0 0.0
    %72 = vmatprep.subr.mxu0 0.0
    %73 = vmatpush1.msra.mxu0 0.0
    %74 = vmatprep.subr.mxu0 0.0
    %75 = vmatpush1.msra.mxu0 0.0
    %76 = vmatprep.subr.mxu0 0.0
    %77 = vmatpush1.msra.mxu0 0.0
    %78 = vmatprep.subr.mxu0 0.0
    %79 = vmatpush1.msra.mxu0 0.0
    %80 = vmatprep.subr.mxu0 0.0
    %81 = vmatpush1.msra.mxu0 0.0
    %82 = vmatprep.subr.mxu0 0.0
    %83 = vmatpush1.msra.mxu0 0.0
    %84 = vmatprep.subr.mxu0 0.0
    %85 = vmatpush1.msra.mxu0 0.0
    %86 = vmatprep.subr.mxu0 0.0
    %87 = vmatpush1.msra.mxu0 %v47
    %88 = vmatprep.subr.mxu0 0.0
    %89 = vmatpush1.msra.mxu0 %v46
    %90 = vmatprep.subr.mxu0 0.0
    %91 = vmatpush1.msra.mxu0 %v45
    %92 = vmatprep.subr.mxu0 0.0
    %93 = vmatpush1.msra.mxu0 %v44
    %94 = vmatprep.subr.mxu0 0.0
    %95 = vmatpush2.msra.mxu0 0.0
    %96 = vmatprep.subr.mxu0 0.0
    %97 = vmatpush2.msra.mxu0 0.0
    %98 = vmatprep.subr.mxu0 0.0
    %99 = vmatpush2.msra.mxu0 0.0
    %100 = vmatprep.subr.mxu0 0.0
    %101 = vmatpush2.msra.mxu0 0.0
    %102 = vmatprep.subr.mxu0 0.0
    %103 = vmatpush2.msra.mxu0 0.0
    %104 = vmatprep.subr.mxu0 0.0
    %105 = vmatpush2.msra.mxu0 0.0
    %106 = vmatprep.subr.mxu0 0.0
    %107 = vmatpush2.msra.mxu0 0.0
    %108 = vmatprep.subr.mxu0 0.0
    %109 = vmatpush2.msra.mxu0 0.0
    %110 = vmatprep.subr.mxu0 0.0
    %111 = vmatpush2.msra.mxu0 0.0
    %112 = vmatprep.subr.mxu0 0.0
    %113 = vmatpush2.msra.mxu0 0.0
    %114 = vmatprep.subr.mxu0 0.0
    %115 = vmatpush2.msra.mxu0 0.0
    %116 = vmatprep.subr.mxu0 0.0
    %117 = vmatpush2.msra.mxu0 0.0
    %118 = vmatprep.subr.mxu0 0.0
    %119 = vmatpush2.msra.mxu0 0.0
    %120 = vmatprep.subr.mxu0 0.0
    %121 = vmatpush2.msra.mxu0 0.0
    %122 = vmatprep.subr.mxu0 0.0
    %123 = vmatpush2.msra.mxu0 0.0
    %124 = vmatprep.subr.mxu0 0.0
    %125 = vmatpush2.msra.mxu0 0.0
    %126 = vmatprep.mubr.f32.mxu0 0.0
    %127 = vmatmul.mubr.f32.gmra.mxu0 %v57
    %v128 = vpop.f32.mrf.mxu0
    %v129 = vadd.f32 %v53, %v128
    %v130 = vpop.f32.mrf.mxu0
    %131 = vmatprep.mubr.f32.mxu0 0.0
    %132 = vmatmul.mubr.f32.gmra.mxu0 %v60
    %v133 = vpop.f32.mrf.mxu0
    %v134 = vadd.f32 %v53, %v133
    %v135 = vpop.f32.mrf.mxu0
    %136 = vdwg.mxu0
    %vm137 = vcmask 785408
    %138 = vst.msk [vmem:[%s3] sm:$0xff] %vm137, %v129
    %139 = vst.msk [vmem:[%s3 + $0x8] sm:$0xff] %vm137, %v134
    // Predicated region
    $region22: #{causal_self_attention.3} parent=1 // pred_check
      _
    $region23: #{causal_self_attention.3} parent=1 // pred_check_branch
      %141 = sbr.rel (0) target = $region25
    $region24: #{causal_self_attention.3} parent=1 // pred_region
      _
    $region25: #{causal_self_attention.3} parent=1 // pred_fallthru
      _
    // Predicated region
    $region26: #{causal_self_attention.3} parent=1 // pred_check
      _
    $region27: #{causal_self_attention.3} parent=1 // pred_check_branch
      %143 = sbr.rel (0) target = $region29
    $region28: #{causal_self_attention.3} parent=1 // pred_region
      _
    $region29: #{causal_self_attention.3} parent=1 // pred_fallthru
      _
    %144 = vsyncpa [#allocation3], 1
    %145 = vsyncpa [#allocation5], 1

// kernel: causal_self_attention.5
$region0: #{causal_self_attention.5}
  #allocation0 [shape = 'u32[]', space=smem, size = 0x4, offset = 0x4, fixed_abs, tag = 'smem constant byte address 0x4 - core index']
  #allocation1 [shape = 'u32[144,128]{1,0:T(1,128)}', space=vmem, size = 0x12000, scoped, tag = 'internal scratch']
  %s0 = inlined_call_operand.vmem [shape: f32[16,32], index: 0, kind: input, shape index: {}]
  %s1 = inlined_call_operand.vmem [shape: f32[32,32], index: 1, kind: input, shape index: {}]
  %s2 = inlined_call_operand.vmem [shape: f32[1,32], index: 2, kind: input, shape index: {}]
  %s3 = inlined_call_operand.hbm [shape: f32[16,32], index: 3, kind: output, shape index: {}]
  %s4 = sld [smem:[#allocation0]]
  $region22: #{causal_self_attention.5} parent=0
    _
  %s6 = ssub.s32 1, %s4
  %s7 = scalar_select 0, %s6, %s4
  $region1: #{causal_self_attention.5} parent=0
    #allocation2 [shape = 'u8[8192]{0}', space=vmem, size = 0x2000, scoped, tag = 'output window, operand 0, single buffered']
    #allocation3 [shape = 's32[1]{0}', space=sflag, size = 0x4, scoped, tag = 'scoped memory for causal_self_attention.5']
    %8 = vsyncpa [#allocation3], 0
    // Predicated region
    $region2: #{causal_self_attention.5} parent=1 // pred_check
      _
    $region3: #{causal_self_attention.5} parent=1 // pred_check_branch
      %10 = sbr.rel (0) target = $region5
    $region4: #{causal_self_attention.5} parent=1 // pred_region
      _
    $region5: #{causal_self_attention.5} parent=1 // pred_fallthru
      _
    // Predicated region
    $region6: #{causal_self_attention.5} parent=1 // pred_check
      _
    $region7: #{causal_self_attention.5} parent=1 // pred_check_branch
      %12 = sbr.rel (0) target = $region9
    $region8: #{causal_self_attention.5} parent=1 // pred_region
      _
    $region9: #{causal_self_attention.5} parent=1 // pred_fallthru
      _
    // Predicated region
    $region10: #{causal_self_attention.5} parent=1 // pred_check
      _
    $region11: #{causal_self_attention.5} parent=1 // pred_check_branch
      %14 = sbr.rel (0) target = $region13
    $region12: #{causal_self_attention.5} parent=1 // pred_region
      _
    $region13: #{causal_self_attention.5} parent=1 // pred_fallthru
      _
    %v15 = vld [vmem:[%s0] sm:$0xff]
    %v16 = vld [vmem:[%s0 + $0x8] sm:$0xff]
    %v17 = vld [vmem:[%s1] sm:$0xff]
    %v18 = vld [vmem:[%s1 + $0x8] sm:$0xff]
    %v19 = vld [vmem:[%s1 + $0x10] sm:$0xff]
    %v20 = vld [vmem:[%s1 + $0x18] sm:$0xff]
    %v21 = vld [vmem:[%s2] sm:$0x1]
    %v23 = vlaneseq
    %v24 = vshrl.u32 %v23, 7
    %v25 = vsub.s32 0, %v24
    %v26 = vrot.slane %v21, %v25
    %vm28 = vcmask 261120
    %v30 = vsel %vm28, %v15, 0
    %v33 = vsel %vm28, %v16, 0
    %35 = vmatprep.subr.mxu0 0.0
    %36 = vmatpush1.msra.mxu0 0.0
    %37 = vmatprep.subr.mxu0 0.0
    %38 = vmatpush1.msra.mxu0 0.0
    %39 = vmatprep.subr.mxu0 0.0
    %40 = vmatpush1.msra.mxu0 0.0
    %41 = vmatprep.subr.mxu0 0.0
    %42 = vmatpush1.msra.mxu0 0.0
    %43 = vmatprep.subr.mxu0 0.0
    %44 = vmatpush1.msra.mxu0 0.0
    %45 = vmatprep.subr.mxu0 0.0
    %46 = vmatpush1.msra.mxu0 0.0
    %47 = vmatprep.subr.mxu0 0.0
    %48 = vmatpush1.msra.mxu0 0.0
    %49 = vmatprep.subr.mxu0 0.0
    %50 = vmatpush1.msra.mxu0 0.0
    %51 = vmatprep.subr.mxu0 0.0
    %52 = vmatpush1.msra.mxu0 0.0
    %53 = vmatprep.subr.mxu0 0.0
    %54 = vmatpush1.msra.mxu0 0.0
    %55 = vmatprep.subr.mxu0 0.0
    %56 = vmatpush1.msra.mxu0 0.0
    %57 = vmatprep.subr.mxu0 0.0
    %58 = vmatpush1.msra.mxu0 0.0
    %59 = vmatprep.subr.mxu0 0.0
    %60 = vmatpush1.msra.mxu0 %v20
    %61 = vmatprep.subr.mxu0 0.0
    %62 = vmatpush1.msra.mxu0 %v19
    %63 = vmatprep.subr.mxu0 0.0
    %64 = vmatpush1.msra.mxu0 %v18
    %65 = vmatprep.subr.mxu0 0.0
    %66 = vmatpush1.msra.mxu0 %v17
    %67 = vmatprep.subr.mxu0 0.0
    %68 = vmatpush2.msra.mxu0 0.0
    %69 = vmatprep.subr.mxu0 0.0
    %70 = vmatpush2.msra.mxu0 0.0
    %71 = vmatprep.subr.mxu0 0.0
    %72 = vmatpush2.msra.mxu0 0.0
    %73 = vmatprep.subr.mxu0 0.0
    %74 = vmatpush2.msra.mxu0 0.0
    %75 = vmatprep.subr.mxu0 0.0
    %76 = vmatpush2.msra.mxu0 0.0
    %77 = vmatprep.subr.mxu0 0.0
    %78 = vmatpush2.msra.mxu0 0.0
    %79 = vmatprep.subr.mxu0 0.0
    %80 = vmatpush2.msra.mxu0 0.0
    %81 = vmatprep.subr.mxu0 0.0
    %82 = vmatpush2.msra.mxu0 0.0
    %83 = vmatprep.subr.mxu0 0.0
    %84 = vmatpush2.msra.mxu0 0.0
    %85 = vmatprep.subr.mxu0 0.0
    %86 = vmatpush2.msra.mxu0 0.0
    %87 = vmatprep.subr.mxu0 0.0
    %88 = vmatpush2.msra.mxu0 0.0
    %89 = vmatprep.subr.mxu0 0.0
    %90 = vmatpush2.msra.mxu0 0.0
    %91 = vmatprep.subr.mxu0 0.0
    %92 = vmatpush2.msra.mxu0 0.0
    %93 = vmatprep.subr.mxu0 0.0
    %94 = vmatpush2.msra.mxu0 0.0
    %95 = vmatprep.subr.mxu0 0.0
    %96 = vmatpush2.msra.mxu0 0.0
    %97 = vmatprep.subr.mxu0 0.0
    %98 = vmatpush2.msra.mxu0 0.0
    %99 = vmatprep.mubr.f32.mxu0 0.0
    %100 = vmatmul.mubr.f32.gmra.mxu0 %v30
    %v101 = vpop.f32.mrf.mxu0
    %v102 = vadd.f32 %v26, %v101
    %v103 = vpop.f32.mrf.mxu0
    %104 = vmatprep.mubr.f32.mxu0 0.0
    %105 = vmatmul.mubr.f32.gmra.mxu0 %v33
    %v106 = vpop.f32.mrf.mxu0
    %v107 = vadd.f32 %v26, %v106
    %v108 = vpop.f32.mrf.mxu0
    %109 = vdwg.mxu0
    %110 = vst.msk [vmem:[#allocation2] sm:$0xff] %vm28, %v102
    %111 = vst.msk [vmem:[#allocation2 + $0x8] sm:$0xff] %vm28, %v107
    // Predicated region
    $region14: #{causal_self_attention.5} parent=1 // pred_check
      _
    $region15: #{causal_self_attention.5} parent=1 // pred_check_branch
      %113 = sbr.rel (0) target = $region17
    $region16: #{causal_self_attention.5} parent=1 // pred_region
      %s115 = ssub.s32 256, 256
      %116 = vsyncadd [#allocation3], %s115
      %s117 = sshll.u32 [#allocation2], 4
      %s118 = int_to_ptr.vmem [resolvable:$true] %s117
      %123 = dma.vmem_to_hbm [thread:$0]  %s118, 256, %s3, [#allocation3], 128, 128, 8
    $region17: #{causal_self_attention.5} parent=1 // pred_fallthru
      _
    // Predicated region
    $region18: #{causal_self_attention.5} parent=1 // pred_check
      _
    $region19: #{causal_self_attention.5} parent=1 // pred_check_branch
      %125 = sbr.rel (0) target = $region21
    $region20: #{causal_self_attention.5} parent=1 // pred_region
      %126 = dma.done [#allocation3], 256
    $region21: #{causal_self_attention.5} parent=1 // pred_fallthru
      _
    %127 = vsyncpa [#allocation3], 1

// kernel: causal_self_attention.4
$region0: #{causal_self_attention.4}
  #allocation0 [shape = 'u32[]', space=smem, size = 0x4, offset = 0x4, fixed_abs, tag = 'smem constant byte address 0x4 - core index']
  #allocation1 [shape = 'u32[144,128]{1,0:T(1,128)}', space=vmem, size = 0x12000, scoped, tag = 'internal scratch']
  #allocation2 [shape = 'f32[4,8,1]{2,1,0:T(8,128)}', space=vmem, size = 0x4000, scoped, tag = 'scratch operand']
  #allocation3 [shape = 'f32[4,8,1]{2,1,0:T(8,128)}', space=vmem, size = 0x4000, scoped, tag = 'scratch operand']
  #allocation4 [shape = 'f32[4,8,8]{2,1,0:T(8,128)}', space=vmem, size = 0x4000, scoped, tag = 'scratch operand']
  #allocation5 [shape = 'f32[4,8,8]{2,1,0:T(8,128)}', space=vmem, size = 0x4000, scoped, tag = 'scratch operand']
  #allocation6 [shape = 's32[1]{0}', space=sflag, size = 0x4, scoped, tag = 'scoped memory for causal_self_attention.4']
  #allocation7 [shape = 's32[1]{0:T(128)S(6)}', space=smem, size = 0x200, scoped, tag = 'prefetched SMEM operand 0']
  #allocation8 [shape = 's32[1]{0:T(128)S(6)}', space=smem, size = 0x200, scoped, tag = 'prefetched SMEM operand 1']
  %s0 = inlined_call_operand.<no memory space> [shape: s32[1], index: 0, kind: input, shape index: {}, may-alias: {0,1}]
  %s1 = inlined_call_operand.<no memory space> [shape: s32[1], index: 1, kind: input, shape index: {}, may-alias: {0,1}]
  %s2 = inlined_call_operand.vmem [shape: f32[2,8,3,4,8], index: 2, kind: input, shape index: {}, may-alias: {2,3,4}]
  %s3 = inlined_call_operand.vmem [shape: f32[2,8,3,4,8], index: 3, kind: input, shape index: {}, may-alias: {2,3,4}]
  %s4 = inlined_call_operand.vmem [shape: f32[2,8,3,4,8], index: 4, kind: input, shape index: {}, may-alias: {2,3,4}]
  %s5 = inlined_call_operand.vmem [shape: f32[2,8,4,8], index: 5, kind: output, shape index: {}]
  %s6 = sld [smem:[#allocation0]]
  $region184: #{causal_self_attention.4} parent=0
    _
  %s8 = ssub.s32 1, %s6
  %s9 = scalar_select 0, %s8, %s6
  %10 = sst [smem:[#allocation7]] %s0
  %11 = sst [smem:[#allocation8]] %s1
  $region1: #{causal_self_attention.4} parent=0
    #allocation9 [shape = 'u8[32768]{0}', space=vmem, size = 0x8000, scoped, tag = 'input window, operand 2']
    #allocation10 [shape = 'u8[32768]{0}', space=vmem, size = 0x8000, scoped, tag = 'input window, operand 3']
    #allocation11 [shape = 'u8[32768]{0}', space=vmem, size = 0x8000, scoped, tag = 'input window, operand 4']
    loop: start=0, step=1, limit=4
    $region2: #{causal_self_attention.4} parent=1 // loop_pre_header
      _
    $region3: #{causal_self_attention.4} parent=1 // loop_header
      %s13 = sphi 0, %s17
      %p14 = scmp.ge.s32.totalorder %s13, 4
      %s20 = sphi 0, %s32
      %s21 = sphi 0, %s28
      %s22 = sphi 0, %s20
      %s23 = sphi 0, %s21
      %s24 = sphi 0, %s22
      %s25 = sphi 0, %s23
      %s39 = sphi 0, %s41
      %s42 = sphi 0, %s39
      %s43 = sphi 0, %s42
      %s59 = sphi 0, %s43
      %s69 = sphi 0, %s71
      %s72 = sphi 0, %s69
      %s73 = sphi 0, %s72
      %s89 = sphi 0, %s73
      %s99 = sphi 0, %s101
      %s102 = sphi 0, %s99
      %s103 = sphi 0, %s102
      %s119 = sphi 0, %s103
      %s129 = sphi 0, %s131
      %s132 = sphi 0, %s129
      %s133 = sphi 0, %s132
      %s149 = sphi 0, %s133
    $region4: #{causal_self_attention.4} parent=1 // loop_header_branch
      %16 = sbr.rel (%p14) target = $region8
    $region5: #{causal_self_attention.4} parent=1 // loop_body
      %s18 = ssub.s32 %s13, 1
      %s19 = ssub.s32 %s13, 2
      %s26 = sadd.s32 1, %s21
      %p27 = scmp.ge.s32.totalorder %s26, 1
      %s28 = scalar_select %p27, 0, %s26
      %s29 = sadd.s32 1, %s20
      %s30 = scalar_select %p27, %s29, %s20
      %p31 = scmp.ge.s32.totalorder %s30, 2
      %s32 = scalar_select %p31, 0, %s30
      %s33 = sld [smem:[#allocation7 + %s21]]
      %s34 = sld [smem:[#allocation7 + %s28]]
      %s35 = ssub.s32 %s20, %s32
      %s36 = ssub.s32 %s33, %s34
      %s37 = sor.u32 %s35, %s36
      %p38 = scmp.eq.s32.totalorder %s37, 0
      %s40 = sadd.s32 %s39, 1
      %s41 = scalar_select %p38, %s39, %s40
      %p44 = pneg %p38
      %p45 = scmp.eq.s32.totalorder %s13, 1
      %p46 = por %p44, %p45
      %p47 = scmp.ne.s32.totalorder %s39, %s42
      %p48 = scmp.eq.s32.totalorder %s13, 0
      %p49 = por %p47, %p48
      %p50 = scmp.ne.s32.totalorder %s39, %s42
      %p51 = scmp.eq.s32.totalorder %s18, 1
      %p52 = por %p50, %p51
      %p53 = scmp.ne.s32.totalorder %s42, %s43
      %p54 = scmp.eq.s32.totalorder %s18, 0
      %p55 = por %p53, %p54
      %p56 = scmp.ne.s32.totalorder %s42, %s43
      %p57 = scmp.eq.s32.totalorder %s19, 1
      %p58 = por %p56, %p57
      %p60 = scmp.ne.s32.totalorder %s43, %s59
      %p61 = scmp.eq.s32.totalorder %s19, 0
      %p62 = por %p60, %p61
      %s63 = sld [smem:[#allocation8 + %s21]]
      %s64 = sld [smem:[#allocation8 + %s28]]
      %s65 = ssub.s32 %s20, %s32
      %s66 = ssub.s32 %s63, %s64
      %s67 = sor.u32 %s65, %s66
      %p68 = scmp.eq.s32.totalorder %s67, 0
      %s70 = sadd.s32 %s69, 1
      %s71 = scalar_select %p68, %s69, %s70
      %p74 = pneg %p68
      %p75 = scmp.eq.s32.totalorder %s13, 1
      %p76 = por %p74, %p75
      %p77 = scmp.ne.s32.totalorder %s69, %s72
      %p78 = scmp.eq.s32.totalorder %s13, 0
      %p79 = por %p77, %p78
      %p80 = scmp.ne.s32.totalorder %s69, %s72
      %p81 = scmp.eq.s32.totalorder %s18, 1
      %p82 = por %p80, %p81
      %p83 = scmp.ne.s32.totalorder %s72, %s73
      %p84 = scmp.eq.s32.totalorder %s18, 0
      %p85 = por %p83, %p84
      %p86 = scmp.ne.s32.totalorder %s72, %s73
      %p87 = scmp.eq.s32.totalorder %s19, 1
      %p88 = por %p86, %p87
      %p90 = scmp.ne.s32.totalorder %s73, %s89
      %p91 = scmp.eq.s32.totalorder %s19, 0
      %p92 = por %p90, %p91
      %s93 = sld [smem:[#allocation8 + %s21]]
      %s94 = sld [smem:[#allocation8 + %s28]]
      %s95 = ssub.s32 %s20, %s32
      %s96 = ssub.s32 %s93, %s94
      %s97 = sor.u32 %s95, %s96
      %p98 = scmp.eq.s32.totalorder %s97, 0
      %s100 = sadd.s32 %s99, 1
      %s101 = scalar_select %p98, %s99, %s100
      %p104 = pneg %p98
      %p105 = scmp.eq.s32.totalorder %s13, 1
      %p106 = por %p104, %p105
      %p107 = scmp.ne.s32.totalorder %s99, %s102
      %p108 = scmp.eq.s32.totalorder %s13, 0
      %p109 = por %p107, %p108
      %p110 = scmp.ne.s32.totalorder %s99, %s102
      %p111 = scmp.eq.s32.totalorder %s18, 1
      %p112 = por %p110, %p111
      %p113 = scmp.ne.s32.totalorder %s102, %s103
      %p114 = scmp.eq.s32.totalorder %s18, 0
      %p115 = por %p113, %p114
      %p116 = scmp.ne.s32.totalorder %s102, %s103
      %p117 = scmp.eq.s32.totalorder %s19, 1
      %p118 = por %p116, %p117
      %p120 = scmp.ne.s32.totalorder %s103, %s119
      %p121 = scmp.eq.s32.totalorder %s19, 0
      %p122 = por %p120, %p121
      %s123 = sld [smem:[#allocation7 + %s21]]
      %s124 = sld [smem:[#allocation7 + %s28]]
      %s125 = ssub.s32 %s20, %s32
      %s126 = ssub.s32 %s123, %s124
      %s127 = sor.u32 %s125, %s126
      %p128 = scmp.eq.s32.totalorder %s127, 0
      %s130 = sadd.s32 %s129, 1
      %s131 = scalar_select %p128, %s129, %s130
      %p134 = pneg %p128
      %p135 = scmp.eq.s32.totalorder %s13, 1
      %p136 = por %p134, %p135
      %p137 = scmp.ne.s32.totalorder %s129, %s132
      %p138 = scmp.eq.s32.totalorder %s13, 0
      %p139 = por %p137, %p138
      %p140 = scmp.ne.s32.totalorder %s129, %s132
      %p141 = scmp.eq.s32.totalorder %s18, 1
      %p142 = por %p140, %p141
      %p143 = scmp.ne.s32.totalorder %s132, %s133
      %p144 = scmp.eq.s32.totalorder %s18, 0
      %p145 = por %p143, %p144
      %p146 = scmp.ne.s32.totalorder %s132, %s133
      %p147 = scmp.eq.s32.totalorder %s19, 1
      %p148 = por %p146, %p147
      %p150 = scmp.ne.s32.totalorder %s133, %s149
      %p151 = scmp.eq.s32.totalorder %s19, 0
      %p152 = por %p150, %p151
      %p153 = scmp.le.s32.totalorder 1, %s13
      %p154 = scmp.lt.s32.totalorder %s13, 3
      %p155 = pnand %p153, %p154
      %p156 = pneg %p155
      // Predicated region
      $region9: #{causal_self_attention.4} parent=5 // pred_check
        _
      $region10: #{causal_self_attention.4} parent=5 // pred_check_branch
        %158 = sbr.rel (%p155) target = $region12
      $region11: #{causal_self_attention.4} parent=5 // pred_region
        %s159 = ssub.s32 %s13, 1
      $region12: #{causal_self_attention.4} parent=5 // pred_fallthru
        _
      %p160 = scmp.lt.s32.totalorder %s13, 2
      // Predicated region
      $region13: #{causal_self_attention.4} parent=5 // pred_check
        %p161 = pneg %p160
      $region14: #{causal_self_attention.4} parent=5 // pred_check_branch
        %163 = sbr.rel (%p161) target = $region16
      $region15: #{causal_self_attention.4} parent=5 // pred_region
        // Predicated region
        $region17: #{causal_self_attention.4} parent=15 // pred_check
          %p164 = pneg %p49
        $region18: #{causal_self_attention.4} parent=15 // pred_check_branch
          %166 = sbr.rel (%p164) target = $region20
        $region19: #{causal_self_attention.4} parent=15 // pred_region
          %s167 = sand.u32 %s39, 1
          %s168 = sand.u32 %s39, 1
          %s169 = smul.addr %s168, 32
          %s170 = scalar_lea.vmem [#allocation9], %s169
          %s171 = sld [smem:[#allocation7 + %s21]]
          %s172 = smul.u32 8, %s171
          %s173 = smul.addr %s172, 3
          %s174 = smul.addr %s20, 24
          %s175 = sadd.s32 %s173, %s174
          %s176 = smul.addr %s175, 4
          %s177 = scalar_lea.vmem %s2, %s176
          // Predicated region
          $region21: #{causal_self_attention.4} parent=19 // pred_check
            _
          $region22: #{causal_self_attention.4} parent=19 // pred_check_branch
            %179 = sbr.rel (0) target = $region24
          $region23: #{causal_self_attention.4} parent=19 // pred_region
            // Predicated region
            $region25: #{causal_self_attention.4} parent=23 // pred_check
              _
            $region26: #{causal_self_attention.4} parent=23 // pred_check_branch
              %181 = sbr.rel target = $region28
            $region27: #{causal_self_attention.4} parent=23 // pred_region
              // Predicated region
              $region40: #{causal_self_attention.4} parent=27 // pred_check
                _
              $region41: #{causal_self_attention.4} parent=27 // pred_check_branch
                %211 = sbr.rel (0) target = $region43
              $region42: #{causal_self_attention.4} parent=27 // pred_region
                loop: start=0, step=1, limit=1
                $region44: #{causal_self_attention.4} parent=42 // loop_pre_header
                  _
                $region45: #{causal_self_attention.4} parent=42 // loop_header
                  %s213 = sphi 0, %s217
                  %p214 = scmp.ge.s32.totalorder %s213, 1
                  %s218 = sphi %s177, %s177
                  %s219 = sphi %s170, %s170
                $region46: #{causal_self_attention.4} parent=42 // loop_header_branch
                  %216 = sbr.rel (%p214) target = $region50
                $region47: #{causal_self_attention.4} parent=42 // loop_body
                  _
                $region48: #{causal_self_attention.4} parent=42 // loop_footer
                  %s217 = sadd.s32 1, %s213
                $region49: #{causal_self_attention.4} parent=42 // loop_footer_branch
                  %212 = sbr.rel target = $region45
                $region50: #{causal_self_attention.4} parent=42 // loop_exit
                  _
                %s221 = ssub.s32 16, 1
                loop: start=0, step=1, limit=1
                $region51: #{causal_self_attention.4} parent=42 // loop_pre_header
                  _
                $region52: #{causal_self_attention.4} parent=42 // loop_header
                  %s223 = sphi 0, %s227
                  %p224 = scmp.ge.s32.totalorder %s223, 1
                  %s228 = sphi %s177, %s177
                  %s229 = sphi %s170, %s170
                $region53: #{causal_self_attention.4} parent=42 // loop_header_branch
                  %226 = sbr.rel (%p224) target = $region57
                $region54: #{causal_self_attention.4} parent=42 // loop_body
                  %v230 = vld [vmem:[%s228] sm:%s221]
                  %231 = vst [vmem:[%s229] sm:%s221] %v230
                  %v232 = vld [vmem:[%s228 + $0xc] sm:%s221]
                  %233 = vst [vmem:[%s229 + $0x4] sm:%s221] %v232
                  %v234 = vld [vmem:[%s228 + $0x18] sm:%s221]
                  %235 = vst [vmem:[%s229 + $0x8] sm:%s221] %v234
                  %v236 = vld [vmem:[%s228 + $0x24] sm:%s221]
                  %237 = vst [vmem:[%s229 + $0xc] sm:%s221] %v236
                  %v238 = vld [vmem:[%s228 + $0x30] sm:%s221]
                  %239 = vst [vmem:[%s229 + $0x10] sm:%s221] %v238
                  %v240 = vld [vmem:[%s228 + $0x3c] sm:%s221]
                  %241 = vst [vmem:[%s229 + $0x14] sm:%s221] %v240
                  %v242 = vld [vmem:[%s228 + $0x48] sm:%s221]
                  %243 = vst [vmem:[%s229 + $0x18] sm:%s221] %v242
                  %v244 = vld [vmem:[%s228 + $0x54] sm:%s221]
                  %245 = vst [vmem:[%s229 + $0x1c] sm:%s221] %v244
                $region55: #{causal_self_attention.4} parent=42 // loop_footer
                  %s227 = sadd.s32 1, %s223
                $region56: #{causal_self_attention.4} parent=42 // loop_footer_branch
                  %222 = sbr.rel target = $region52
                $region57: #{causal_self_attention.4} parent=42 // loop_exit
                  _
              $region43: #{causal_self_attention.4} parent=27 // pred_fallthru
                _
            $region28: #{causal_self_attention.4} parent=23 // pred_fallthru
              _
            // Predicated region
            $region29: #{causal_self_attention.4} parent=23 // pred_check
              _
            $region30: #{causal_self_attention.4} parent=23 // pred_check_branch
              %183 = sbr.rel (0) target = $region32
            $region31: #{causal_self_attention.4} parent=23 // pred_region
              %s185 = ssub.s32 16, 1
              loop: start=0, step=1, limit=1
              $region33: #{causal_self_attention.4} parent=31 // loop_pre_header
                _
              $region34: #{causal_self_attention.4} parent=31 // loop_header
                %s187 = sphi 0, %s191
                %p188 = scmp.ge.s32.totalorder %s187, 1
                %s192 = sphi %s177, %s177
                %s193 = sphi %s170, %s170
              $region35: #{causal_self_attention.4} parent=31 // loop_header_branch
                %190 = sbr.rel (%p188) target = $region39
              $region36: #{causal_self_attention.4} parent=31 // loop_body
                %v194 = vld [vmem:[%s192] sm:%s185]
                %195 = vst [vmem:[%s193] sm:%s185] %v194
                %v196 = vld [vmem:[%s192 + $0xc] sm:%s185]
                %197 = vst [vmem:[%s193 + $0x4] sm:%s185] %v196
                %v198 = vld [vmem:[%s192 + $0x18] sm:%s185]
                %199 = vst [vmem:[%s193 + $0x8] sm:%s185] %v198
                %v200 = vld [vmem:[%s192 + $0x24] sm:%s185]
                %201 = vst [vmem:[%s193 + $0xc] sm:%s185] %v200
                %v202 = vld [vmem:[%s192 + $0x30] sm:%s185]
                %203 = vst [vmem:[%s193 + $0x10] sm:%s185] %v202
                %v204 = vld [vmem:[%s192 + $0x3c] sm:%s185]
                %205 = vst [vmem:[%s193 + $0x14] sm:%s185] %v204
                %v206 = vld [vmem:[%s192 + $0x48] sm:%s185]
                %207 = vst [vmem:[%s193 + $0x18] sm:%s185] %v206
                %v208 = vld [vmem:[%s192 + $0x54] sm:%s185]
                %209 = vst [vmem:[%s193 + $0x1c] sm:%s185] %v208
              $region37: #{causal_self_attention.4} parent=31 // loop_footer
                %s191 = sadd.s32 1, %s187
              $region38: #{causal_self_attention.4} parent=31 // loop_footer_branch
                %186 = sbr.rel target = $region34
              $region39: #{causal_self_attention.4} parent=31 // loop_exit
                _
            $region32: #{causal_self_attention.4} parent=23 // pred_fallthru
              _
          $region24: #{causal_self_attention.4} parent=19 // pred_fallthru
            _
          %246 = vnop
        $region20: #{causal_self_attention.4} parent=15 // pred_fallthru
          _
        // Predicated region
        $region58: #{causal_self_attention.4} parent=15 // pred_check
          %p247 = pneg %p79
        $region59: #{causal_self_attention.4} parent=15 // pred_check_branch
          %249 = sbr.rel (%p247) target = $region61
        $region60: #{causal_self_attention.4} parent=15 // pred_region
          %s250 = sand.u32 %s69, 1
          %s251 = sand.u32 %s69, 1
          %s252 = smul.addr %s251, 32
          %s253 = scalar_lea.vmem [#allocation10], %s252
          %s254 = sld [smem:[#allocation8 + %s21]]
          %s255 = smul.u32 8, %s254
          %s256 = smul.addr %s255, 3
          %s257 = sadd.s32 1, %s256
          %s258 = smul.addr %s20, 24
          %s259 = sadd.s32 %s257, %s258
          %s260 = smul.addr %s259, 4
          %s261 = scalar_lea.vmem %s3, %s260
          // Predicated region
          $region62: #{causal_self_attention.4} parent=60 // pred_check
            _
          $region63: #{causal_self_attention.4} parent=60 // pred_check_branch
            %263 = sbr.rel (0) target = $region65
          $region64: #{causal_self_attention.4} parent=60 // pred_region
            // Predicated region
            $region66: #{causal_self_attention.4} parent=64 // pred_check
              _
            $region67: #{causal_self_attention.4} parent=64 // pred_check_branch
              %265 = sbr.rel target = $region69
            $region68: #{causal_self_attention.4} parent=64 // pred_region
              // Predicated region
              $region81: #{causal_self_attention.4} parent=68 // pred_check
                _
              $region82: #{causal_self_attention.4} parent=68 // pred_check_branch
                %295 = sbr.rel (0) target = $region84
              $region83: #{causal_self_attention.4} parent=68 // pred_region
                loop: start=0, step=1, limit=1
                $region85: #{causal_self_attention.4} parent=83 // loop_pre_header
                  _
                $region86: #{causal_self_attention.4} parent=83 // loop_header
                  %s297 = sphi 0, %s301
                  %p298 = scmp.ge.s32.totalorder %s297, 1
                  %s302 = sphi %s261, %s261
                  %s303 = sphi %s253, %s253
                $region87: #{causal_self_attention.4} parent=83 // loop_header_branch
                  %300 = sbr.rel (%p298) target = $region91
                $region88: #{causal_self_attention.4} parent=83 // loop_body
                  _
                $region89: #{causal_self_attention.4} parent=83 // loop_footer
                  %s301 = sadd.s32 1, %s297
                $region90: #{causal_self_attention.4} parent=83 // loop_footer_branch
                  %296 = sbr.rel target = $region86
                $region91: #{causal_self_attention.4} parent=83 // loop_exit
                  _
                %s305 = ssub.s32 16, 1
                loop: start=0, step=1, limit=1
                $region92: #{causal_self_attention.4} parent=83 // loop_pre_header
                  _
                $region93: #{causal_self_attention.4} parent=83 // loop_header
                  %s307 = sphi 0, %s311
                  %p308 = scmp.ge.s32.totalorder %s307, 1
                  %s312 = sphi %s261, %s261
                  %s313 = sphi %s253, %s253
                $region94: #{causal_self_attention.4} parent=83 // loop_header_branch
                  %310 = sbr.rel (%p308) target = $region98
                $region95: #{causal_self_attention.4} parent=83 // loop_body
                  %v314 = vld [vmem:[%s312] sm:%s305]
                  %315 = vst [vmem:[%s313] sm:%s305] %v314
                  %v316 = vld [vmem:[%s312 + $0xc] sm:%s305]
                  %317 = vst [vmem:[%s313 + $0x4] sm:%s305] %v316
                  %v318 = vld [vmem:[%s312 + $0x18] sm:%s305]
                  %319 = vst [vmem:[%s313 + $0x8] sm:%s305] %v318
                  %v320 = vld [vmem:[%s312 + $0x24] sm:%s305]
                  %321 = vst [vmem:[%s313 + $0xc] sm:%s305] %v320
                  %v322 = vld [vmem:[%s312 + $0x30] sm:%s305]
                  %323 = vst [vmem:[%s313 + $0x10] sm:%s305] %v322
                  %v324 = vld [vmem:[%s312 + $0x3c] sm:%s305]
                  %325 = vst [vmem:[%s313 + $0x14] sm:%s305] %v324
                  %v326 = vld [vmem:[%s312 + $0x48] sm:%s305]
                  %327 = vst [vmem:[%s313 + $0x18] sm:%s305] %v326
                  %v328 = vld [vmem:[%s312 + $0x54] sm:%s305]
                  %329 = vst [vmem:[%s313 + $0x1c] sm:%s305] %v328
                $region96: #{causal_self_attention.4} parent=83 // loop_footer
                  %s311 = sadd.s32 1, %s307
                $region97: #{causal_self_attention.4} parent=83 // loop_footer_branch
                  %306 = sbr.rel target = $region93
                $region98: #{causal_self_attention.4} parent=83 // loop_exit
                  _
              $region84: #{causal_self_attention.4} parent=68 // pred_fallthru
                _
            $region69: #{causal_self_attention.4} parent=64 // pred_fallthru
              _
            // Predicated region
            $region70: #{causal_self_attention.4} parent=64 // pred_check
              _
            $region71: #{causal_self_attention.4} parent=64 // pred_check_branch
              %267 = sbr.rel (0) target = $region73
            $region72: #{causal_self_attention.4} parent=64 // pred_region
              %s269 = ssub.s32 16, 1
              loop: start=0, step=1, limit=1
              $region74: #{causal_self_attention.4} parent=72 // loop_pre_header
                _
              $region75: #{causal_self_attention.4} parent=72 // loop_header
                %s271 = sphi 0, %s275
                %p272 = scmp.ge.s32.totalorder %s271, 1
                %s276 = sphi %s261, %s261
                %s277 = sphi %s253, %s253
              $region76: #{causal_self_attention.4} parent=72 // loop_header_branch
                %274 = sbr.rel (%p272) target = $region80
              $region77: #{causal_self_attention.4} parent=72 // loop_body
                %v278 = vld [vmem:[%s276] sm:%s269]
                %279 = vst [vmem:[%s277] sm:%s269] %v278
                %v280 = vld [vmem:[%s276 + $0xc] sm:%s269]
                %281 = vst [vmem:[%s277 + $0x4] sm:%s269] %v280
                %v282 = vld [vmem:[%s276 + $0x18] sm:%s269]
                %283 = vst [vmem:[%s277 + $0x8] sm:%s269] %v282
                %v284 = vld [vmem:[%s276 + $0x24] sm:%s269]
                %285 = vst [vmem:[%s277 + $0xc] sm:%s269] %v284
                %v286 = vld [vmem:[%s276 + $0x30] sm:%s269]
                %287 = vst [vmem:[%s277 + $0x10] sm:%s269] %v286
                %v288 = vld [vmem:[%s276 + $0x3c] sm:%s269]
                %289 = vst [vmem:[%s277 + $0x14] sm:%s269] %v288
                %v290 = vld [vmem:[%s276 + $0x48] sm:%s269]
                %291 = vst [vmem:[%s277 + $0x18] sm:%s269] %v290
                %v292 = vld [vmem:[%s276 + $0x54] sm:%s269]
                %293 = vst [vmem:[%s277 + $0x1c] sm:%s269] %v292
              $region78: #{causal_self_attention.4} parent=72 // loop_footer
                %s275 = sadd.s32 1, %s271
              $region79: #{causal_self_attention.4} parent=72 // loop_footer_branch
                %270 = sbr.rel target = $region75
              $region80: #{causal_self_attention.4} parent=72 // loop_exit
                _
            $region73: #{causal_self_attention.4} parent=64 // pred_fallthru
              _
          $region65: #{causal_self_attention.4} parent=60 // pred_fallthru
            _
          %330 = vnop
        $region61: #{causal_self_attention.4} parent=15 // pred_fallthru
          _
        // Predicated region
        $region99: #{causal_self_attention.4} parent=15 // pred_check
          %p331 = pneg %p109
        $region100: #{causal_self_attention.4} parent=15 // pred_check_branch
          %333 = sbr.rel (%p331) target = $region102
        $region101: #{causal_self_attention.4} parent=15 // pred_region
          %s334 = sand.u32 %s99, 1
          %s335 = sand.u32 %s99, 1
          %s336 = smul.addr %s335, 32
          %s337 = scalar_lea.vmem [#allocation11], %s336
          %s338 = sld [smem:[#allocation8 + %s21]]
          %s339 = smul.u32 8, %s338
          %s340 = smul.addr %s339, 3
          %s341 = sadd.s32 2, %s340
          %s342 = smul.addr %s20, 24
          %s343 = sadd.s32 %s341, %s342
          %s344 = smul.addr %s343, 4
          %s345 = scalar_lea.vmem %s4, %s344
          // Predicated region
          $region103: #{causal_self_attention.4} parent=101 // pred_check
            _
          $region104: #{causal_self_attention.4} parent=101 // pred_check_branch
            %347 = sbr.rel (0) target = $region106
          $region105: #{causal_self_attention.4} parent=101 // pred_region
            // Predicated region
            $region107: #{causal_self_attention.4} parent=105 // pred_check
              _
            $region108: #{causal_self_attention.4} parent=105 // pred_check_branch
              %349 = sbr.rel target = $region110
            $region109: #{causal_self_attention.4} parent=105 // pred_region
              // Predicated region
              $region122: #{causal_self_attention.4} parent=109 // pred_check
                _
              $region123: #{causal_self_attention.4} parent=109 // pred_check_branch
                %379 = sbr.rel (0) target = $region125
              $region124: #{causal_self_attention.4} parent=109 // pred_region
                loop: start=0, step=1, limit=1
                $region126: #{causal_self_attention.4} parent=124 // loop_pre_header
                  _
                $region127: #{causal_self_attention.4} parent=124 // loop_header
                  %s381 = sphi 0, %s385
                  %p382 = scmp.ge.s32.totalorder %s381, 1
                  %s386 = sphi %s345, %s345
                  %s387 = sphi %s337, %s337
                $region128: #{causal_self_attention.4} parent=124 // loop_header_branch
                  %384 = sbr.rel (%p382) target = $region132
                $region129: #{causal_self_attention.4} parent=124 // loop_body
                  _
                $region130: #{causal_self_attention.4} parent=124 // loop_footer
                  %s385 = sadd.s32 1, %s381
                $region131: #{causal_self_attention.4} parent=124 // loop_footer_branch
                  %380 = sbr.rel target = $region127
                $region132: #{causal_self_attention.4} parent=124 // loop_exit
                  _
                %s389 = ssub.s32 16, 1
                loop: start=0, step=1, limit=1
                $region133: #{causal_self_attention.4} parent=124 // loop_pre_header
                  _
                $region134: #{causal_self_attention.4} parent=124 // loop_header
                  %s391 = sphi 0, %s395
                  %p392 = scmp.ge.s32.totalorder %s391, 1
                  %s396 = sphi %s345, %s345
                  %s397 = sphi %s337, %s337
                $region135: #{causal_self_attention.4} parent=124 // loop_header_branch
                  %394 = sbr.rel (%p392) target = $region139
                $region136: #{causal_self_attention.4} parent=124 // loop_body
                  %v398 = vld [vmem:[%s396] sm:%s389]
                  %399 = vst [vmem:[%s397] sm:%s389] %v398
                  %v400 = vld [vmem:[%s396 + $0xc] sm:%s389]
                  %401 = vst [vmem:[%s397 + $0x4] sm:%s389] %v400
                  %v402 = vld [vmem:[%s396 + $0x18] sm:%s389]
                  %403 = vst [vmem:[%s397 + $0x8] sm:%s389] %v402
                  %v404 = vld [vmem:[%s396 + $0x24] sm:%s389]
                  %405 = vst [vmem:[%s397 + $0xc] sm:%s389] %v404
                  %v406 = vld [vmem:[%s396 + $0x30] sm:%s389]
                  %407 = vst [vmem:[%s397 + $0x10] sm:%s389] %v406
                  %v408 = vld [vmem:[%s396 + $0x3c] sm:%s389]
                  %409 = vst [vmem:[%s397 + $0x14] sm:%s389] %v408
                  %v410 = vld [vmem:[%s396 + $0x48] sm:%s389]
                  %411 = vst [vmem:[%s397 + $0x18] sm:%s389] %v410
                  %v412 = vld [vmem:[%s396 + $0x54] sm:%s389]
                  %413 = vst [vmem:[%s397 + $0x1c] sm:%s389] %v412
                $region137: #{causal_self_attention.4} parent=124 // loop_footer
                  %s395 = sadd.s32 1, %s391
                $region138: #{causal_self_attention.4} parent=124 // loop_footer_branch
                  %390 = sbr.rel target = $region134
                $region139: #{causal_self_attention.4} parent=124 // loop_exit
                  _
              $region125: #{causal_self_attention.4} parent=109 // pred_fallthru
                _
            $region110: #{causal_self_attention.4} parent=105 // pred_fallthru
              _
            // Predicated region
            $region111: #{causal_self_attention.4} parent=105 // pred_check
              _
            $region112: #{causal_self_attention.4} parent=105 // pred_check_branch
              %351 = sbr.rel (0) target = $region114
            $region113: #{causal_self_attention.4} parent=105 // pred_region
              %s353 = ssub.s32 16, 1
              loop: start=0, step=1, limit=1
              $region115: #{causal_self_attention.4} parent=113 // loop_pre_header
                _
              $region116: #{causal_self_attention.4} parent=113 // loop_header
                %s355 = sphi 0, %s359
                %p356 = scmp.ge.s32.totalorder %s355, 1
                %s360 = sphi %s345, %s345
                %s361 = sphi %s337, %s337
              $region117: #{causal_self_attention.4} parent=113 // loop_header_branch
                %358 = sbr.rel (%p356) target = $region121
              $region118: #{causal_self_attention.4} parent=113 // loop_body
                %v362 = vld [vmem:[%s360] sm:%s353]
                %363 = vst [vmem:[%s361] sm:%s353] %v362
                %v364 = vld [vmem:[%s360 + $0xc] sm:%s353]
                %365 = vst [vmem:[%s361 + $0x4] sm:%s353] %v364
                %v366 = vld [vmem:[%s360 + $0x18] sm:%s353]
                %367 = vst [vmem:[%s361 + $0x8] sm:%s353] %v366
                %v368 = vld [vmem:[%s360 + $0x24] sm:%s353]
                %369 = vst [vmem:[%s361 + $0xc] sm:%s353] %v368
                %v370 = vld [vmem:[%s360 + $0x30] sm:%s353]
                %371 = vst [vmem:[%s361 + $0x10] sm:%s353] %v370
                %v372 = vld [vmem:[%s360 + $0x3c] sm:%s353]
                %373 = vst [vmem:[%s361 + $0x14] sm:%s353] %v372
                %v374 = vld [vmem:[%s360 + $0x48] sm:%s353]
                %375 = vst [vmem:[%s361 + $0x18] sm:%s353] %v374
                %v376 = vld [vmem:[%s360 + $0x54] sm:%s353]
                %377 = vst [vmem:[%s361 + $0x1c] sm:%s353] %v376
              $region119: #{causal_self_attention.4} parent=113 // loop_footer
                %s359 = sadd.s32 1, %s355
              $region120: #{causal_self_attention.4} parent=113 // loop_footer_branch
                %354 = sbr.rel target = $region116
              $region121: #{causal_self_attention.4} parent=113 // loop_exit
                _
            $region114: #{causal_self_attention.4} parent=105 // pred_fallthru
              _
          $region106: #{causal_self_attention.4} parent=101 // pred_fallthru
            _
          %414 = vnop
        $region102: #{causal_self_attention.4} parent=15 // pred_fallthru
          _
      $region16: #{causal_self_attention.4} parent=5 // pred_fallthru
        _
      %p415 = scmp.le.s32.totalorder 1, %s13
      %p416 = scmp.lt.s32.totalorder %s13, 3
      %p417 = pnand %p415, %p416
      %p418 = pneg %p417
      // Predicated region
      $region140: #{causal_self_attention.4} parent=5 // pred_check
        _
      $region141: #{causal_self_attention.4} parent=5 // pred_check_branch
        %420 = sbr.rel (%p417) target = $region143
      $region142: #{causal_self_attention.4} parent=5 // pred_region
        %s421 = ssub.s32 %s13, 1
        %s422 = sand.u32 %s42, 1
        %s423 = sand.u32 %s42, 1
        %s424 = smul.addr %s423, 32
        %s425 = scalar_lea.vmem [#allocation9], %s424
        // Predicated region
        $region144: #{causal_self_attention.4} parent=142 // pred_check
          %p426 = pneg %p55
        $region145: #{causal_self_attention.4} parent=142 // pred_check_branch
          %428 = sbr.rel (%p426) target = $region147
        $region146: #{causal_self_attention.4} parent=142 // pred_region
          _
        $region147: #{causal_self_attention.4} parent=142 // pred_fallthru
          _
        %s429 = sand.u32 %s72, 1
        %s430 = sand.u32 %s72, 1
        %s431 = smul.addr %s430, 32
        %s432 = scalar_lea.vmem [#allocation10], %s431
        // Predicated region
        $region148: #{causal_self_attention.4} parent=142 // pred_check
          %p433 = pneg %p85
        $region149: #{causal_self_attention.4} parent=142 // pred_check_branch
          %435 = sbr.rel (%p433) target = $region151
        $region150: #{causal_self_attention.4} parent=142 // pred_region
          _
        $region151: #{causal_self_attention.4} parent=142 // pred_fallthru
          _
        %s436 = sand.u32 %s102, 1
        %s437 = sand.u32 %s102, 1
        %s438 = smul.addr %s437, 32
        %s439 = scalar_lea.vmem [#allocation11], %s438
        // Predicated region
        $region152: #{causal_self_attention.4} parent=142 // pred_check
          %p440 = pneg %p115
        $region153: #{causal_self_attention.4} parent=142 // pred_check_branch
          %442 = sbr.rel (%p440) target = $region155
        $region154: #{causal_self_attention.4} parent=142 // pred_region
          _
        $region155: #{causal_self_attention.4} parent=142 // pred_fallthru
          _
        %s443 = sand.u32 %s42, 1
        %s444 = sand.u32 %s42, 1
        %s445 = smul.addr %s444, 32
        %s446 = scalar_lea.vmem [#allocation9], %s445
        %p447 = pneg %p55
        %p448 = pneg %p52
        %s449 = sand.u32 %s72, 1
        %s450 = sand.u32 %s72, 1
        %s451 = smul.addr %s450, 32
        %s452 = scalar_lea.vmem [#allocation10], %s451
        %p453 = pneg %p85
        %p454 = pneg %p82
        %s455 = sand.u32 %s102, 1
        %s456 = sand.u32 %s102, 1
        %s457 = smul.addr %s456, 32
        %s458 = scalar_lea.vmem [#allocation11], %s457
        %p459 = pneg %p115
        %p460 = pneg %p112
        %p461 = pneg %p145
        %p462 = pneg %p142
        %s463 = sld [smem:[#allocation7 + %s23]]
        %s464 = smul.u32 8, %s463
        %p465 = scmp.lt.s32.totalorder %s22, 1
        %s466 = scalar_select %p465, %s22, 1
        %p467 = scmp.lt.s32.totalorder %s464, 7
        %s468 = scalar_select %p467, %s464, 7
        %s469 = smul.addr %s466, 8
        %s470 = sadd.s32 %s468, %s469
        %s471 = smul.addr %s470, 4
        %s472 = scalar_lea.vmem %s5, %s471
        %s473 = sld [smem:[#allocation7 + %s23]]
        %s474 = smul.u32 8, %s473
        %s475 = sld [smem:[#allocation8 + %s23]]
        %s476 = smul.u32 8, %s475
        %s477 = sld [smem:[#allocation8 + %s23]]
        %s478 = smul.u32 8, %s477
        %s479 = sld [smem:[#allocation7 + %s23]]
        %s480 = smul.u32 8, %s479
        %p481 = scmp.lt.s32.totalorder %s22, 1
        %s482 = scalar_select %p481, %s22, 1
        %p483 = scmp.lt.s32.totalorder %s480, 7
        %s484 = scalar_select %p483, %s480, 7
        %s485 = smul.addr %s482, 8
        %s486 = sadd.s32 %s484, %s485
        %s487 = smul.addr %s486, 4
        %s488 = scalar_lea.vmem %s5, %s487
        %s489 = sld [smem:[#allocation7 + %s23]]
        %s490 = smul.u32 8, %s489
        %s491 = sld [smem:[#allocation7 + %s23]]
        %s492 = sld [smem:[#allocation8 + %s23]]
        %p493 = scmp.eq.s32.totalorder %s492, 0
        // Predicated region
        $region156: #{causal_self_attention.4} parent=142 // pred_check
          %p494 = pneg %p493
        $region157: #{causal_self_attention.4} parent=142 // pred_check_branch
          %496 = sbr.rel (%p494) target = $region159
        $region158: #{causal_self_attention.4} parent=142 // pred_region
          %vm497 = vcmask 7168
          %498 = vst.msk [vmem:[#allocation2] sm:$0xff] %vm497, -1e+30
          %499 = vst.msk [vmem:[#allocation2 + $0x8] sm:$0xff] %vm497, -1e+30
          %500 = vst.msk [vmem:[#allocation2 + $0x10] sm:$0xff] %vm497, -1e+30
          %501 = vst.msk [vmem:[#allocation2 + $0x18] sm:$0xff] %vm497, -1e+30
          %502 = vst.msk [vmem:[#allocation3] sm:$0xff] %vm497, 0.0
          %503 = vst.msk [vmem:[#allocation3 + $0x8] sm:$0xff] %vm497, 0.0
          %504 = vst.msk [vmem:[#allocation3 + $0x10] sm:$0xff] %vm497, 0.0
          %505 = vst.msk [vmem:[#allocation3 + $0x18] sm:$0xff] %vm497, 0.0
          %vm506 = vcmask 64512
          %507 = vst.msk [vmem:[#allocation4] sm:$0xff] %vm506, 0.0
          %508 = vst.msk [vmem:[#allocation4 + $0x8] sm:$0xff] %vm506, 0.0
          %509 = vst.msk [vmem:[#allocation4 + $0x10] sm:$0xff] %vm506, 0.0
          %510 = vst.msk [vmem:[#allocation4 + $0x18] sm:$0xff] %vm506, 0.0
          %v511 = vld [vmem:[%s425] sm:$0xf]
          %v512 = vld [vmem:[%s425 + $0x4] sm:$0xf]
          %v513 = vld [vmem:[%s425 + $0x8] sm:$0xf]
          %v514 = vld [vmem:[%s425 + $0xc] sm:$0xf]
          %v515 = vld [vmem:[%s425 + $0x10] sm:$0xf]
          %v516 = vld [vmem:[%s425 + $0x14] sm:$0xf]
          %v517 = vld [vmem:[%s425 + $0x18] sm:$0xf]
          %v518 = vld [vmem:[%s425 + $0x1c] sm:$0xf]
          %v519 = vcombine.low %v511, %v513
          %v521 = vunpack.c.l.s4 1983009808
          %v522 = vunpack.c.0.s8 %v521
          %v523 = vlaneseq
          %v524 = vshrl.u32 %v523, 7
          %v525 = vsub.s32 %v522, %v524
          %v526 = vrot.slane %v519, %v525
          %v527 = vcombine.low %v512, %v514
          %v529 = vunpack.c.l.s4 1983009808
          %v530 = vunpack.c.0.s8 %v529
          %v531 = vlaneseq
          %v532 = vshrl.u32 %v531, 7
          %v533 = vsub.s32 %v530, %v532
          %v534 = vrot.slane %v527, %v533
          %v535 = vcombine.low %v515, %v517
          %v537 = vunpack.c.l.s4 1983009808
          %v538 = vunpack.c.0.s8 %v537
          %v539 = vlaneseq
          %v540 = vshrl.u32 %v539, 7
          %v541 = vsub.s32 %v538, %v540
          %v542 = vrot.slane %v535, %v541
          %v543 = vcombine.low %v516, %v518
          %v545 = vunpack.c.l.s4 1983009808
          %v546 = vunpack.c.0.s8 %v545
          %v547 = vlaneseq
          %v548 = vshrl.u32 %v547, 7
          %v549 = vsub.s32 %v546, %v548
          %v550 = vrot.slane %v543, %v549
          %v551 = vcombine.low %v526, %v534
          %v552 = vcombine.high %v526, %v534
          %v554 = vunpack.c.l.s4 1934713408
          %v555 = vunpack.c.0.s8 %v554
          %v556 = vlaneseq
          %v557 = vshrl.u32 %v556, 7
          %v558 = vsub.s32 %v555, %v557
          %v559 = vrot.slane %v551, %v558
          %v561 = vunpack.c.l.s4 1934713408
          %v562 = vunpack.c.0.s8 %v561
          %v563 = vlaneseq
          %v564 = vshrl.u32 %v563, 7
          %v565 = vsub.s32 %v562, %v564
          %v566 = vrot.slane %v552, %v565
          %v567 = vcombine.low %v542, %v550
          %v568 = vcombine.high %v542, %v550
          %v570 = vunpack.c.l.s4 1934713408
          %v571 = vunpack.c.0.s8 %v570
          %v572 = vlaneseq
          %v573 = vshrl.u32 %v572, 7
          %v574 = vsub.s32 %v571, %v573
          %v575 = vrot.slane %v567, %v574
          %v577 = vunpack.c.l.s4 1934713408
          %v578 = vunpack.c.0.s8 %v577
          %v579 = vlaneseq
          %v580 = vshrl.u32 %v579, 7
          %v581 = vsub.s32 %v578, %v580
          %v582 = vrot.slane %v568, %v581
          %v583 = vcombine.low %v559, %v575
          %v584 = vcombine.high %v559, %v575
          %v585 = vcombine.low %v566, %v582
          %v586 = vcombine.high %v566, %v582
          %587 = vst.msk [vmem:[#allocation5] sm:$0xff] %vm506, %v583
          %588 = vst.msk [vmem:[#allocation5 + $0x8] sm:$0xff] %vm506, %v584
          %589 = vst.msk [vmem:[#allocation5 + $0x10] sm:$0xff] %vm506, %v585
          %590 = vst.msk [vmem:[#allocation5 + $0x18] sm:$0xff] %vm506, %v586
        $region159: #{causal_self_attention.4} parent=142 // pred_fallthru
          _
        %s591 = sadd.s32 %s492, 1
        %s592 = smul.u32 %s591, 8
        %s593 = smul.u32 %s491, 8
        %s594 = sadd.s32 %s593, 1
        %p595 = scmp.gt.s32.totalorder %s592, %s594
        // Predicated region
        $region160: #{causal_self_attention.4} parent=142 // pred_check
          %p596 = pneg %p595
        $region161: #{causal_self_attention.4} parent=142 // pred_check_branch
          %598 = sbr.rel (%p596) target = $region163
        $region162: #{causal_self_attention.4} parent=142 // pred_region
          %v599 = vld [vmem:[#allocation5] sm:$0xff]
          %v600 = vld [vmem:[#allocation5 + $0x8] sm:$0xff]
          %v601 = vld [vmem:[#allocation5 + $0x10] sm:$0xff]
          %v602 = vld [vmem:[#allocation5 + $0x18] sm:$0xff]
          %v603 = vld [vmem:[%s432] sm:$0xf]
          %v604 = vld [vmem:[%s432 + $0x4] sm:$0xf]
          %v605 = vld [vmem:[%s432 + $0x8] sm:$0xf]
          %v606 = vld [vmem:[%s432 + $0xc] sm:$0xf]
          %v607 = vld [vmem:[%s432 + $0x10] sm:$0xf]
          %v608 = vld [vmem:[%s432 + $0x14] sm:$0xf]
          %v609 = vld [vmem:[%s432 + $0x18] sm:$0xf]
          %v610 = vld [vmem:[%s432 + $0x1c] sm:$0xf]
          %v611 = vcombine.low %v603, %v605
          %v613 = vunpack.c.l.s4 1983009808
          %v614 = vunpack.c.0.s8 %v613
          %v615 = vlaneseq
          %v616 = vshrl.u32 %v615, 7
          %v617 = vsub.s32 %v614, %v616
          %v618 = vrot.slane %v611, %v617
          %v619 = vcombine.low %v604, %v606
          %v621 = vunpack.c.l.s4 1983009808
          %v622 = vunpack.c.0.s8 %v621
          %v623 = vlaneseq
          %v624 = vshrl.u32 %v623, 7
          %v625 = vsub.s32 %v622, %v624
          %v626 = vrot.slane %v619, %v625
          %v627 = vcombine.low %v607, %v609
          %v629 = vunpack.c.l.s4 1983009808
          %v630 = vunpack.c.0.s8 %v629
          %v631 = vlaneseq
          %v632 = vshrl.u32 %v631, 7
          %v633 = vsub.s32 %v630, %v632
          %v634 = vrot.slane %v627, %v633
          %v635 = vcombine.low %v608, %v610
          %v637 = vunpack.c.l.s4 1983009808
          %v638 = vunpack.c.0.s8 %v637
          %v639 = vlaneseq
          %v640 = vshrl.u32 %v639, 7
          %v641 = vsub.s32 %v638, %v640
          %v642 = vrot.slane %v635, %v641
          %v643 = vcombine.low %v618, %v626
          %v644 = vcombine.high %v618, %v626
          %v646 = vunpack.c.l.s4 1934713408
          %v647 = vunpack.c.0.s8 %v646
          %v648 = vlaneseq
          %v649 = vshrl.u32 %v648, 7
          %v650 = vsub.s32 %v647, %v649
          %v651 = vrot.slane %v643, %v650
          %v653 = vunpack.c.l.s4 1934713408
          %v654 = vunpack.c.0.s8 %v653
          %v655 = vlaneseq
          %v656 = vshrl.u32 %v655, 7
          %v657 = vsub.s32 %v654, %v656
          %v658 = vrot.slane %v644, %v657
          %v659 = vcombine.low %v634, %v642
          %v660 = vcombine.high %v634, %v642
          %v662 = vunpack.c.l.s4 1934713408
          %v663 = vunpack.c.0.s8 %v662
          %v664 = vlaneseq
          %v665 = vshrl.u32 %v664, 7
          %v666 = vsub.s32 %v663, %v665
          %v667 = vrot.slane %v659, %v666
          %v669 = vunpack.c.l.s4 1934713408
          %v670 = vunpack.c.0.s8 %v669
          %v671 = vlaneseq
          %v672 = vshrl.u32 %v671, 7
          %v673 = vsub.s32 %v670, %v672
          %v674 = vrot.slane %v660, %v673
          %v675 = vcombine.low %v651, %v667
          %v676 = vcombine.high %v651, %v667
          %v677 = vcombine.low %v658, %v674
          %v678 = vcombine.high %v658, %v674
          %v679 = vld [vmem:[%s439] sm:$0xf]
          %v680 = vld [vmem:[%s439 + $0x4] sm:$0xf]
          %v681 = vld [vmem:[%s439 + $0x8] sm:$0xf]
          %v682 = vld [vmem:[%s439 + $0xc] sm:$0xf]
          %v683 = vld [vmem:[%s439 + $0x10] sm:$0xf]
          %v684 = vld [vmem:[%s439 + $0x14] sm:$0xf]
          %v685 = vld [vmem:[%s439 + $0x18] sm:$0xf]
          %v686 = vld [vmem:[%s439 + $0x1c] sm:$0xf]
          %v687 = vcombine.low %v679, %v681
          %v689 = vunpack.c.l.s4 1983009808
          %v690 = vunpack.c.0.s8 %v689
          %v691 = vlaneseq
          %v692 = vshrl.u32 %v691, 7
          %v693 = vsub.s32 %v690, %v692
          %v694 = vrot.slane %v687, %v693
          %v695 = vcombine.low %v680, %v682
          %v697 = vunpack.c.l.s4 1983009808
          %v698 = vunpack.c.0.s8 %v697
          %v699 = vlaneseq
          %v700 = vshrl.u32 %v699, 7
          %v701 = vsub.s32 %v698, %v700
          %v702 = vrot.slane %v695, %v701
          %v703 = vcombine.low %v683, %v685
          %v705 = vunpack.c.l.s4 1983009808
          %v706 = vunpack.c.0.s8 %v705
          %v707 = vlaneseq
          %v708 = vshrl.u32 %v707, 7
          %v709 = vsub.s32 %v706, %v708
          %v710 = vrot.slane %v703, %v709
          %v711 = vcombine.low %v684, %v686
          %v713 = vunpack.c.l.s4 1983009808
          %v714 = vunpack.c.0.s8 %v713
          %v715 = vlaneseq
          %v716 = vshrl.u32 %v715, 7
          %v717 = vsub.s32 %v714, %v716
          %v718 = vrot.slane %v711, %v717
          %v719 = vcombine.low %v694, %v702
          %v720 = vcombine.high %v694, %v702
          %v722 = vunpack.c.l.s4 1934713408
          %v723 = vunpack.c.0.s8 %v722
          %v724 = vlaneseq
          %v725 = vshrl.u32 %v724, 7
          %v726 = vsub.s32 %v723, %v725
          %v727 = vrot.slane %v719, %v726
          %v729 = vunpack.c.l.s4 1934713408
          %v730 = vunpack.c.0.s8 %v729
          %v731 = vlaneseq
          %v732 = vshrl.u32 %v731, 7
          %v733 = vsub.s32 %v730, %v732
          %v734 = vrot.slane %v720, %v733
          %v735 = vcombine.low %v710, %v718
          %v736 = vcombine.high %v710, %v718
          %v738 = vunpack.c.l.s4 1934713408
          %v739 = vunpack.c.0.s8 %v738
          %v740 = vlaneseq
          %v741 = vshrl.u32 %v740, 7
          %v742 = vsub.s32 %v739, %v741
          %v743 = vrot.slane %v735, %v742
          %v745 = vunpack.c.l.s4 1934713408
          %v746 = vunpack.c.0.s8 %v745
          %v747 = vlaneseq
          %v748 = vshrl.u32 %v747, 7
          %v749 = vsub.s32 %v746, %v748
          %v750 = vrot.slane %v736, %v749
          %v751 = vcombine.low %v727, %v743
          %v752 = vcombine.high %v727, %v743
          %v753 = vcombine.low %v734, %v750
          %v754 = vcombine.high %v734, %v750
          %vm755 = vcmask 64512
          %v757 = vsel %vm755, %v599, 0
          %v760 = vsel %vm755, %v675, 0
          %762 = vmatprep.subr.mxu0 0.0
          %763 = vmatpush1.xpose.msra.mxu0 0.0
          %764 = vmatprep.subr.mxu0 0.0
          %765 = vmatpush1.xpose.msra.mxu0 0.0
          %766 = vmatprep.subr.mxu0 0.0
          %767 = vmatpush1.xpose.msra.mxu0 0.0
          %768 = vmatprep.subr.mxu0 0.0
          %769 = vmatpush1.xpose.msra.mxu0 0.0
          %770 = vmatprep.subr.mxu0 0.0
          %771 = vmatpush1.xpose.msra.mxu0 0.0
          %772 = vmatprep.subr.mxu0 0.0
          %773 = vmatpush1.xpose.msra.mxu0 0.0
          %774 = vmatprep.subr.mxu0 0.0
          %775 = vmatpush1.xpose.msra.mxu0 0.0
          %776 = vmatprep.subr.mxu0 0.0
          %777 = vmatpush1.xpose.msra.mxu0 0.0
          %778 = vmatprep.subr.mxu0 0.0
          %779 = vmatpush1.xpose.msra.mxu0 0.0
          %780 = vmatprep.subr.mxu0 0.0
          %781 = vmatpush1.xpose.msra.mxu0 0.0
          %782 = vmatprep.subr.mxu0 0.0
          %783 = vmatpush1.xpose.msra.mxu0 0.0
          %784 = vmatprep.subr.mxu0 0.0
          %785 = vmatpush1.xpose.msra.mxu0 0.0
          %786 = vmatprep.subr.mxu0 0.0
          %787 = vmatpush1.xpose.msra.mxu0 0.0
          %788 = vmatprep.subr.mxu0 0.0
          %789 = vmatpush1.xpose.msra.mxu0 0.0
          %790 = vmatprep.subr.mxu0 0.0
          %791 = vmatpush1.xpose.msra.mxu0 0.0
          %792 = vmatprep.subr.mxu0 0.0
          %793 = vmatpush1.xpose.msra.mxu0 %v760
          %794 = vmatprep.subr.mxu0 0.0
          %795 = vmatpush2.xpose.msra.mxu0 0.0
          %796 = vmatprep.subr.mxu0 0.0
          %797 = vmatpush2.xpose.msra.mxu0 0.0
          %798 = vmatprep.subr.mxu0 0.0
          %799 = vmatpush2.xpose.msra.mxu0 0.0
          %800 = vmatprep.subr.mxu0 0.0
          %801 = vmatpush2.xpose.msra.mxu0 0.0
          %802 = vmatprep.subr.mxu0 0.0
          %803 = vmatpush2.xpose.msra.mxu0 0.0
          %804 = vmatprep.subr.mxu0 0.0
          %805 = vmatpush2.xpose.msra.mxu0 0.0
          %806 = vmatprep.subr.mxu0 0.0
          %807 = vmatpush2.xpose.msra.mxu0 0.0
          %808 = vmatprep.subr.mxu0 0.0
          %809 = vmatpush2.xpose.msra.mxu0 0.0
          %810 = vmatprep.subr.mxu0 0.0
          %811 = vmatpush2.xpose.msra.mxu0 0.0
          %812 = vmatprep.subr.mxu0 0.0
          %813 = vmatpush2.xpose.msra.mxu0 0.0
          %814 = vmatprep.subr.mxu0 0.0
          %815 = vmatpush2.xpose.msra.mxu0 0.0
          %816 = vmatprep.subr.mxu0 0.0
          %817 = vmatpush2.xpose.msra.mxu0 0.0
          %818 = vmatprep.subr.mxu0 0.0
          %819 = vmatpush2.xpose.msra.mxu0 0.0
          %820 = vmatprep.subr.mxu0 0.0
          %821 = vmatpush2.xpose.msra.mxu0 0.0
          %822 = vmatprep.subr.mxu0 0.0
          %823 = vmatpush2.xpose.msra.mxu0 0.0
          %824 = vmatprep.subr.mxu0 0.0
          %825 = vmatpush2.xpose.msra.mxu0 0.0
          %826 = vmatprep.mubr.f32.mxu0 0.0
          %827 = vmatmul.mubr.f32.gmra.mxu0 %v757
          %v828 = vpop.f32.mrf.mxu0
          %v829 = vadd.f32 0.0, %v828
          %v830 = vpop.f32.mrf.mxu0
          %831 = vdwg.mxu0
          %v833 = vsel %vm755, %v600, 0
          %v836 = vsel %vm755, %v676, 0
          %838 = vmatprep.subr.mxu0 0.0
          %839 = vmatpush1.xpose.msra.mxu0 0.0
          %840 = vmatprep.subr.mxu0 0.0
          %841 = vmatpush1.xpose.msra.mxu0 0.0
          %842 = vmatprep.subr.mxu0 0.0
          %843 = vmatpush1.xpose.msra.mxu0 0.0
          %844 = vmatprep.subr.mxu0 0.0
          %845 = vmatpush1.xpose.msra.mxu0 0.0
          %846 = vmatprep.subr.mxu0 0.0
          %847 = vmatpush1.xpose.msra.mxu0 0.0
          %848 = vmatprep.subr.mxu0 0.0
          %849 = vmatpush1.xpose.msra.mxu0 0.0
          %850 = vmatprep.subr.mxu0 0.0
          %851 = vmatpush1.xpose.msra.mxu0 0.0
          %852 = vmatprep.subr.mxu0 0.0
          %853 = vmatpush1.xpose.msra.mxu0 0.0
          %854 = vmatprep.subr.mxu0 0.0
          %855 = vmatpush1.xpose.msra.mxu0 0.0
          %856 = vmatprep.subr.mxu0 0.0
          %857 = vmatpush1.xpose.msra.mxu0 0.0
          %858 = vmatprep.subr.mxu0 0.0
          %859 = vmatpush1.xpose.msra.mxu0 0.0
          %860 = vmatprep.subr.mxu0 0.0
          %861 = vmatpush1.xpose.msra.mxu0 0.0
          %862 = vmatprep.subr.mxu0 0.0
          %863 = vmatpush1.xpose.msra.mxu0 0.0
          %864 = vmatprep.subr.mxu0 0.0
          %865 = vmatpush1.xpose.msra.mxu0 0.0
          %866 = vmatprep.subr.mxu0 0.0
          %867 = vmatpush1.xpose.msra.mxu0 0.0
          %868 = vmatprep.subr.mxu0 0.0
          %869 = vmatpush1.xpose.msra.mxu0 %v836
          %870 = vmatprep.subr.mxu0 0.0
          %871 = vmatpush2.xpose.msra.mxu0 0.0
          %872 = vmatprep.subr.mxu0 0.0
          %873 = vmatpush2.xpose.msra.mxu0 0.0
          %874 = vmatprep.subr.mxu0 0.0
          %875 = vmatpush2.xpose.msra.mxu0 0.0
          %876 = vmatprep.subr.mxu0 0.0
          %877 = vmatpush2.xpose.msra.mxu0 0.0
          %878 = vmatprep.subr.mxu0 0.0
          %879 = vmatpush2.xpose.msra.mxu0 0.0
          %880 = vmatprep.subr.mxu0 0.0
          %881 = vmatpush2.xpose.msra.mxu0 0.0
          %882 = vmatprep.subr.mxu0 0.0
          %883 = vmatpush2.xpose.msra.mxu0 0.0
          %884 = vmatprep.subr.mxu0 0.0
          %885 = vmatpush2.xpose.msra.mxu0 0.0
          %886 = vmatprep.subr.mxu0 0.0
          %887 = vmatpush2.xpose.msra.mxu0 0.0
          %888 = vmatprep.subr.mxu0 0.0
          %889 = vmatpush2.xpose.msra.mxu0 0.0
          %890 = vmatprep.subr.mxu0 0.0
          %891 = vmatpush2.xpose.msra.mxu0 0.0
          %892 = vmatprep.subr.mxu0 0.0
          %893 = vmatpush2.xpose.msra.mxu0 0.0
          %894 = vmatprep.subr.mxu0 0.0
          %895 = vmatpush2.xpose.msra.mxu0 0.0
          %896 = vmatprep.subr.mxu0 0.0
          %897 = vmatpush2.xpose.msra.mxu0 0.0
          %898 = vmatprep.subr.mxu0 0.0
          %899 = vmatpush2.xpose.msra.mxu0 0.0
          %900 = vmatprep.subr.mxu0 0.0
          %901 = vmatpush2.xpose.msra.mxu0 0.0
          %902 = vmatprep.mubr.f32.mxu0 0.0
          %903 = vmatmul.mubr.f32.gmra.mxu0 %v833
          %v904 = vpop.f32.mrf.mxu0
          %v905 = vadd.f32 0.0, %v904
          %v906 = vpop.f32.mrf.mxu0
          %907 = vdwg.mxu0
          %v909 = vsel %vm755, %v601, 0
          %v912 = vsel %vm755, %v677, 0
          %914 = vmatprep.subr.mxu0 0.0
          %915 = vmatpush1.xpose.msra.mxu0 0.0
          %916 = vmatprep.subr.mxu0 0.0
          %917 = vmatpush1.xpose.msra.mxu0 0.0
          %918 = vmatprep.subr.mxu0 0.0
          %919 = vmatpush1.xpose.msra.mxu0 0.0
          %920 = vmatprep.subr.mxu0 0.0
          %921 = vmatpush1.xpose.msra.mxu0 0.0
          %922 = vmatprep.subr.mxu0 0.0
          %923 = vmatpush1.xpose.msra.mxu0 0.0
          %924 = vmatprep.subr.mxu0 0.0
          %925 = vmatpush1.xpose.msra.mxu0 0.0
          %926 = vmatprep.subr.mxu0 0.0
          %927 = vmatpush1.xpose.msra.mxu0 0.0
          %928 = vmatprep.subr.mxu0 0.0
          %929 = vmatpush1.xpose.msra.mxu0 0.0
          %930 = vmatprep.subr.mxu0 0.0
          %931 = vmatpush1.xpose.msra.mxu0 0.0
          %932 = vmatprep.subr.mxu0 0.0
          %933 = vmatpush1.xpose.msra.mxu0 0.0
          %934 = vmatprep.subr.mxu0 0.0
          %935 = vmatpush1.xpose.msra.mxu0 0.0
          %936 = vmatprep.subr.mxu0 0.0
          %937 = vmatpush1.xpose.msra.mxu0 0.0
          %938 = vmatprep.subr.mxu0 0.0
          %939 = vmatpush1.xpose.msra.mxu0 0.0
          %940 = vmatprep.subr.mxu0 0.0
          %941 = vmatpush1.xpose.msra.mxu0 0.0
          %942 = vmatprep.subr.mxu0 0.0
          %943 = vmatpush1.xpose.msra.mxu0 0.0
          %944 = vmatprep.subr.mxu0 0.0
          %945 = vmatpush1.xpose.msra.mxu0 %v912
          %946 = vmatprep.subr.mxu0 0.0
          %947 = vmatpush2.xpose.msra.mxu0 0.0
          %948 = vmatprep.subr.mxu0 0.0
          %949 = vmatpush2.xpose.msra.mxu0 0.0
          %950 = vmatprep.subr.mxu0 0.0
          %951 = vmatpush2.xpose.msra.mxu0 0.0
          %952 = vmatprep.subr.mxu0 0.0
          %953 = vmatpush2.xpose.msra.mxu0 0.0
          %954 = vmatprep.subr.mxu0 0.0
          %955 = vmatpush2.xpose.msra.mxu0 0.0
          %956 = vmatprep.subr.mxu0 0.0
          %957 = vmatpush2.xpose.msra.mxu0 0.0
          %958 = vmatprep.subr.mxu0 0.0
          %959 = vmatpush2.xpose.msra.mxu0 0.0
          %960 = vmatprep.subr.mxu0 0.0
          %961 = vmatpush2.xpose.msra.mxu0 0.0
          %962 = vmatprep.subr.mxu0 0.0
          %963 = vmatpush2.xpose.msra.mxu0 0.0
          %964 = vmatprep.subr.mxu0 0.0
          %965 = vmatpush2.xpose.msra.mxu0 0.0
          %966 = vmatprep.subr.mxu0 0.0
          %967 = vmatpush2.xpose.msra.mxu0 0.0
          %968 = vmatprep.subr.mxu0 0.0
          %969 = vmatpush2.xpose.msra.mxu0 0.0
          %970 = vmatprep.subr.mxu0 0.0
          %971 = vmatpush2.xpose.msra.mxu0 0.0
          %972 = vmatprep.subr.mxu0 0.0
          %973 = vmatpush2.xpose.msra.mxu0 0.0
          %974 = vmatprep.subr.mxu0 0.0
          %975 = vmatpush2.xpose.msra.mxu0 0.0
          %976 = vmatprep.subr.mxu0 0.0
          %977 = vmatpush2.xpose.msra.mxu0 0.0
          %978 = vmatprep.mubr.f32.mxu0 0.0
          %979 = vmatmul.mubr.f32.gmra.mxu0 %v909
          %v980 = vpop.f32.mrf.mxu0
          %v981 = vadd.f32 0.0, %v980
          %v982 = vpop.f32.mrf.mxu0
          %983 = vdwg.mxu0
          %v985 = vsel %vm755, %v602, 0
          %v988 = vsel %vm755, %v678, 0
          %990 = vmatprep.subr.mxu0 0.0
          %991 = vmatpush1.xpose.msra.mxu0 0.0
          %992 = vmatprep.subr.mxu0 0.0
          %993 = vmatpush1.xpose.msra.mxu0 0.0
          %994 = vmatprep.subr.mxu0 0.0
          %995 = vmatpush1.xpose.msra.mxu0 0.0
          %996 = vmatprep.subr.mxu0 0.0
          %997 = vmatpush1.xpose.msra.mxu0 0.0
          %998 = vmatprep.subr.mxu0 0.0
          %999 = vmatpush1.xpose.msra.mxu0 0.0
          %1000 = vmatprep.subr.mxu0 0.0
          %1001 = vmatpush1.xpose.msra.mxu0 0.0
          %1002 = vmatprep.subr.mxu0 0.0
          %1003 = vmatpush1.xpose.msra.mxu0 0.0
          %1004 = vmatprep.subr.mxu0 0.0
          %1005 = vmatpush1.xpose.msra.mxu0 0.0
          %1006 = vmatprep.subr.mxu0 0.0
          %1007 = vmatpush1.xpose.msra.mxu0 0.0
          %1008 = vmatprep.subr.mxu0 0.0
          %1009 = vmatpush1.xpose.msra.mxu0 0.0
          %1010 = vmatprep.subr.mxu0 0.0
          %1011 = vmatpush1.xpose.msra.mxu0 0.0
          %1012 = vmatprep.subr.mxu0 0.0
          %1013 = vmatpush1.xpose.msra.mxu0 0.0
          %1014 = vmatprep.subr.mxu0 0.0
          %1015 = vmatpush1.xpose.msra.mxu0 0.0
          %1016 = vmatprep.subr.mxu0 0.0
          %1017 = vmatpush1.xpose.msra.mxu0 0.0
          %1018 = vmatprep.subr.mxu0 0.0
          %1019 = vmatpush1.xpose.msra.mxu0 0.0
          %1020 = vmatprep.subr.mxu0 0.0
          %1021 = vmatpush1.xpose.msra.mxu0 %v988
          %1022 = vmatprep.subr.mxu0 0.0
          %1023 = vmatpush2.xpose.msra.mxu0 0.0
          %1024 = vmatprep.subr.mxu0 0.0
          %1025 = vmatpush2.xpose.msra.mxu0 0.0
          %1026 = vmatprep.subr.mxu0 0.0
          %1027 = vmatpush2.xpose.msra.mxu0 0.0
          %1028 = vmatprep.subr.mxu0 0.0
          %1029 = vmatpush2.xpose.msra.mxu0 0.0
          %1030 = vmatprep.subr.mxu0 0.0
          %1031 = vmatpush2.xpose.msra.mxu0 0.0
          %1032 = vmatprep.subr.mxu0 0.0
          %1033 = vmatpush2.xpose.msra.mxu0 0.0
          %1034 = vmatprep.subr.mxu0 0.0
          %1035 = vmatpush2.xpose.msra.mxu0 0.0
          %1036 = vmatprep.subr.mxu0 0.0
          %1037 = vmatpush2.xpose.msra.mxu0 0.0
          %1038 = vmatprep.subr.mxu0 0.0
          %1039 = vmatpush2.xpose.msra.mxu0 0.0
          %1040 = vmatprep.subr.mxu0 0.0
          %1041 = vmatpush2.xpose.msra.mxu0 0.0
          %1042 = vmatprep.subr.mxu0 0.0
          %1043 = vmatpush2.xpose.msra.mxu0 0.0
          %1044 = vmatprep.subr.mxu0 0.0
          %1045 = vmatpush2.xpose.msra.mxu0 0.0
          %1046 = vmatprep.subr.mxu0 0.0
          %1047 = vmatpush2.xpose.msra.mxu0 0.0
          %1048 = vmatprep.subr.mxu0 0.0
          %1049 = vmatpush2.xpose.msra.mxu0 0.0
          %1050 = vmatprep.subr.mxu0 0.0
          %1051 = vmatpush2.xpose.msra.mxu0 0.0
          %1052 = vmatprep.subr.mxu0 0.0
          %1053 = vmatpush2.xpose.msra.mxu0 0.0
          %1054 = vmatprep.mubr.f32.mxu0 0.0
          %1055 = vmatmul.mubr.f32.gmra.mxu0 %v985
          %v1056 = vpop.f32.mrf.mxu0
          %v1057 = vadd.f32 0.0, %v1056
          %v1058 = vpop.f32.mrf.mxu0
          %1059 = vdwg.mxu0
          %v1060 = vlaneseq
          %v1061 = vshrl.u32 %v1060, 7
          %v1062 = vstv %s593
          %v1063 = vadd.s32 %v1061, %v1062
          %v1064 = vlaneseq
          %v1065 = vand.u32 %v1064, 127
          %s1066 = smul.u32 %s492, 8
          %v1067 = vstv %s1066
          %v1068 = vadd.s32 %v1065, %v1067
          %vm1069 = vcmp.ge.s32.totalorder %v1063, %v1068
          %v1070 = vsel %vm1069, 1, 0
          %vm1071 = vcmp.eq.s32.totalorder %v1070, 1
          %v1072 = vsel %vm1071, %v829, -1e+30
          %v1073 = vsel %vm1071, %v905, -1e+30
          %v1074 = vsel %vm1071, %v981, -1e+30
          %v1075 = vsel %vm1071, %v1057, -1e+30
          %v1076 = vld [vmem:[#allocation2] sm:$0xff]
          %v1077 = vld [vmem:[#allocation2 + $0x8] sm:$0xff]
          %v1078 = vld [vmem:[#allocation2 + $0x10] sm:$0xff]
          %v1079 = vld [vmem:[#allocation2 + $0x18] sm:$0xff]
          %v1080 = vsel %vm755, %v1072, -inf
          %1081 = vmax.xlane.f32.xlu0 %v1080
          %v1082 = vpop.xlane.xlu0 %1081
          %v1083 = vsel %vm755, %v1073, -inf
          %1084 = vmax.xlane.f32.xlu0 %v1083
          %v1085 = vpop.xlane.xlu0 %1084
          %v1086 = vsel %vm755, %v1074, -inf
          %1087 = vmax.xlane.f32.xlu0 %v1086
          %v1088 = vpop.xlane.xlu0 %1087
          %v1089 = vsel %vm755, %v1075, -inf
          %1090 = vmax.xlane.f32.xlu0 %v1089
          %v1091 = vpop.xlane.xlu0 %1090
          %v1092 = vmax.f32 %v1076, %v1082
          %v1093 = vmax.f32 %v1077, %v1085
          %v1094 = vmax.f32 %v1078, %v1088
          %v1095 = vmax.f32 %v1079, %v1091
          %v1096 = vsub.f32 %v1076, %v1092
          %v1097 = vsub.f32 %v1077, %v1093
          %v1098 = vsub.f32 %v1078, %v1094
          %v1099 = vsub.f32 %v1079, %v1095
          %v1100 = vmul.f32 %v1096, 1.442695
          %v1101 = vpow.pop %v1100
          %v1102 = vmul.f32 %v1097, 1.442695
          %v1103 = vpow.pop %v1102
          %v1104 = vmul.f32 %v1098, 1.442695
          %v1105 = vpow.pop %v1104
          %v1106 = vmul.f32 %v1099, 1.442695
          %v1107 = vpow.pop %v1106
          %1109 = vset.pattern.permute.xlu0 0
          %1110 = vperm.xlu0 %1109, %v1092
          %v1111 = vpop.permute.xlu0 %1110
          %1114 = vset.pattern.permute.xlu0 0
          %1115 = vperm.xlu0 %1114, %v1093
          %v1116 = vpop.permute.xlu0 %1115
          %1119 = vset.pattern.permute.xlu0 0
          %1120 = vperm.xlu0 %1119, %v1094
          %v1121 = vpop.permute.xlu0 %1120
          %1124 = vset.pattern.permute.xlu0 0
          %1125 = vperm.xlu0 %1124, %v1095
          %v1126 = vpop.permute.xlu0 %1125
          %v1128 = vsub.f32 %v1072, %v1111
          %v1129 = vsub.f32 %v1073, %v1116
          %v1130 = vsub.f32 %v1074, %v1121
          %v1131 = vsub.f32 %v1075, %v1126
          %v1132 = vmul.f32 %v1128, 1.442695
          %v1133 = vpow.pop %v1132
          %v1134 = vmul.f32 %v1129, 1.442695
          %v1135 = vpow.pop %v1134
          %v1136 = vmul.f32 %v1130, 1.442695
          %v1137 = vpow.pop %v1136
          %v1138 = vmul.f32 %v1131, 1.442695
          %v1139 = vpow.pop %v1138
          %v1140 = vld [vmem:[#allocation3] sm:$0xff]
          %v1141 = vld [vmem:[#allocation3 + $0x8] sm:$0xff]
          %v1142 = vld [vmem:[#allocation3 + $0x10] sm:$0xff]
          %v1143 = vld [vmem:[#allocation3 + $0x18] sm:$0xff]
          %v1144 = vmul.f32 %v1101, %v1140
          %v1145 = vmul.f32 %v1103, %v1141
          %v1146 = vmul.f32 %v1105, %v1142
          %v1147 = vmul.f32 %v1107, %v1143
          %v1148 = vsel %vm755, %v1133, 0.0
          %1149 = vadd.xlane.f32.xlu0 %v1148
          %v1150 = vpop.xlane.xlu0 %1149
          %v1151 = vsel %vm755, %v1135, 0.0
          %1152 = vadd.xlane.f32.xlu0 %v1151
          %v1153 = vpop.xlane.xlu0 %1152
          %v1154 = vsel %vm755, %v1137, 0.0
          %1155 = vadd.xlane.f32.xlu0 %v1154
          %v1156 = vpop.xlane.xlu0 %1155
          %v1157 = vsel %vm755, %v1139, 0.0
          %1158 = vadd.xlane.f32.xlu0 %v1157
          %v1159 = vpop.xlane.xlu0 %1158
          %v1160 = vadd.f32 %v1144, %v1150
          %v1161 = vadd.f32 %v1145, %v1153
          %v1162 = vadd.f32 %v1146, %v1156
          %v1163 = vadd.f32 %v1147, %v1159
          %vm1164 = vcmask 7168
          %1165 = vst.msk [vmem:[#allocation3] sm:$0xff] %vm1164, %v1160
          %1166 = vst.msk [vmem:[#allocation3 + $0x8] sm:$0xff] %vm1164, %v1161
          %1167 = vst.msk [vmem:[#allocation3 + $0x10] sm:$0xff] %vm1164, %v1162
          %1168 = vst.msk [vmem:[#allocation3 + $0x18] sm:$0xff] %vm1164, %v1163
          %v1169 = vld [vmem:[#allocation4] sm:$0xff]
          %v1170 = vld [vmem:[#allocation4 + $0x8] sm:$0xff]
          %v1171 = vld [vmem:[#allocation4 + $0x10] sm:$0xff]
          %v1172 = vld [vmem:[#allocation4 + $0x18] sm:$0xff]
          %1174 = vset.pattern.permute.xlu0 0
          %1175 = vperm.xlu0 %1174, %v1101
          %v1176 = vpop.permute.xlu0 %1175
          %1179 = vset.pattern.permute.xlu0 0
          %1180 = vperm.xlu0 %1179, %v1103
          %v1181 = vpop.permute.xlu0 %1180
          %1184 = vset.pattern.permute.xlu0 0
          %1185 = vperm.xlu0 %1184, %v1105
          %v1186 = vpop.permute.xlu0 %1185
          %1189 = vset.pattern.permute.xlu0 0
          %1190 = vperm.xlu0 %1189, %v1107
          %v1191 = vpop.permute.xlu0 %1190
          %v1193 = vmul.f32 %v1176, %v1169
          %v1194 = vmul.f32 %v1181, %v1170
          %v1195 = vmul.f32 %v1186, %v1171
          %v1196 = vmul.f32 %v1191, %v1172
          %v1198 = vsel %vm755, %v1133, 0
          %1200 = vmatprep.subr.mxu0 0.0
          %1201 = vmatpush1.msra.mxu0 0.0
          %1202 = vmatprep.subr.mxu0 0.0
          %1203 = vmatpush1.msra.mxu0 0.0
          %1204 = vmatprep.subr.mxu0 0.0
          %1205 = vmatpush1.msra.mxu0 0.0
          %1206 = vmatprep.subr.mxu0 0.0
          %1207 = vmatpush1.msra.mxu0 0.0
          %1208 = vmatprep.subr.mxu0 0.0
          %1209 = vmatpush1.msra.mxu0 0.0
          %1210 = vmatprep.subr.mxu0 0.0
          %1211 = vmatpush1.msra.mxu0 0.0
          %1212 = vmatprep.subr.mxu0 0.0
          %1213 = vmatpush1.msra.mxu0 0.0
          %1214 = vmatprep.subr.mxu0 0.0
          %1215 = vmatpush1.msra.mxu0 0.0
          %1216 = vmatprep.subr.mxu0 0.0
          %1217 = vmatpush1.msra.mxu0 0.0
          %1218 = vmatprep.subr.mxu0 0.0
          %1219 = vmatpush1.msra.mxu0 0.0
          %1220 = vmatprep.subr.mxu0 0.0
          %1221 = vmatpush1.msra.mxu0 0.0
          %1222 = vmatprep.subr.mxu0 0.0
          %1223 = vmatpush1.msra.mxu0 0.0
          %1224 = vmatprep.subr.mxu0 0.0
          %1225 = vmatpush1.msra.mxu0 0.0
          %1226 = vmatprep.subr.mxu0 0.0
          %1227 = vmatpush1.msra.mxu0 0.0
          %1228 = vmatprep.subr.mxu0 0.0
          %1229 = vmatpush1.msra.mxu0 0.0
          %1230 = vmatprep.subr.mxu0 0.0
          %1231 = vmatpush1.msra.mxu0 %v751
          %1232 = vmatprep.subr.mxu0 0.0
          %1233 = vmatpush2.msra.mxu0 0.0
          %1234 = vmatprep.subr.mxu0 0.0
          %1235 = vmatpush2.msra.mxu0 0.0
          %1236 = vmatprep.subr.mxu0 0.0
          %1237 = vmatpush2.msra.mxu0 0.0
          %1238 = vmatprep.subr.mxu0 0.0
          %1239 = vmatpush2.msra.mxu0 0.0
          %1240 = vmatprep.subr.mxu0 0.0
          %1241 = vmatpush2.msra.mxu0 0.0
          %1242 = vmatprep.subr.mxu0 0.0
          %1243 = vmatpush2.msra.mxu0 0.0
          %1244 = vmatprep.subr.mxu0 0.0
          %1245 = vmatpush2.msra.mxu0 0.0
          %1246 = vmatprep.subr.mxu0 0.0
          %1247 = vmatpush2.msra.mxu0 0.0
          %1248 = vmatprep.subr.mxu0 0.0
          %1249 = vmatpush2.msra.mxu0 0.0
          %1250 = vmatprep.subr.mxu0 0.0
          %1251 = vmatpush2.msra.mxu0 0.0
          %1252 = vmatprep.subr.mxu0 0.0
          %1253 = vmatpush2.msra.mxu0 0.0
          %1254 = vmatprep.subr.mxu0 0.0
          %1255 = vmatpush2.msra.mxu0 0.0
          %1256 = vmatprep.subr.mxu0 0.0
          %1257 = vmatpush2.msra.mxu0 0.0
          %1258 = vmatprep.subr.mxu0 0.0
          %1259 = vmatpush2.msra.mxu0 0.0
          %1260 = vmatprep.subr.mxu0 0.0
          %1261 = vmatpush2.msra.mxu0 0.0
          %1262 = vmatprep.subr.mxu0 0.0
          %1263 = vmatpush2.msra.mxu0 0.0
          %1264 = vmatprep.mubr.f32.mxu0 0.0
          %1265 = vmatmul.mubr.f32.gmra.mxu0 %v1198
          %v1266 = vpop.f32.mrf.mxu0
          %v1267 = vadd.f32 0.0, %v1266
          %v1268 = vpop.f32.mrf.mxu0
          %1269 = vdwg.mxu0
          %v1271 = vsel %vm755, %v1135, 0
          %1273 = vmatprep.subr.mxu0 0.0
          %1274 = vmatpush1.msra.mxu0 0.0
          %1275 = vmatprep.subr.mxu0 0.0
          %1276 = vmatpush1.msra.mxu0 0.0
          %1277 = vmatprep.subr.mxu0 0.0
          %1278 = vmatpush1.msra.mxu0 0.0
          %1279 = vmatprep.subr.mxu0 0.0
          %1280 = vmatpush1.msra.mxu0 0.0
          %1281 = vmatprep.subr.mxu0 0.0
          %1282 = vmatpush1.msra.mxu0 0.0
          %1283 = vmatprep.subr.mxu0 0.0
          %1284 = vmatpush1.msra.mxu0 0.0
          %1285 = vmatprep.subr.mxu0 0.0
          %1286 = vmatpush1.msra.mxu0 0.0
          %1287 = vmatprep.subr.mxu0 0.0
          %1288 = vmatpush1.msra.mxu0 0.0
          %1289 = vmatprep.subr.mxu0 0.0
          %1290 = vmatpush1.msra.mxu0 0.0
          %1291 = vmatprep.subr.mxu0 0.0
          %1292 = vmatpush1.msra.mxu0 0.0
          %1293 = vmatprep.subr.mxu0 0.0
          %1294 = vmatpush1.msra.mxu0 0.0
          %1295 = vmatprep.subr.mxu0 0.0
          %1296 = vmatpush1.msra.mxu0 0.0
          %1297 = vmatprep.subr.mxu0 0.0
          %1298 = vmatpush1.msra.mxu0 0.0
          %1299 = vmatprep.subr.mxu0 0.0
          %1300 = vmatpush1.msra.mxu0 0.0
          %1301 = vmatprep.subr.mxu0 0.0
          %1302 = vmatpush1.msra.mxu0 0.0
          %1303 = vmatprep.subr.mxu0 0.0
          %1304 = vmatpush1.msra.mxu0 %v752
          %1305 = vmatprep.subr.mxu0 0.0
          %1306 = vmatpush2.msra.mxu0 0.0
          %1307 = vmatprep.subr.mxu0 0.0
          %1308 = vmatpush2.msra.mxu0 0.0
          %1309 = vmatprep.subr.mxu0 0.0
          %1310 = vmatpush2.msra.mxu0 0.0
          %1311 = vmatprep.subr.mxu0 0.0
          %1312 = vmatpush2.msra.mxu0 0.0
          %1313 = vmatprep.subr.mxu0 0.0
          %1314 = vmatpush2.msra.mxu0 0.0
          %1315 = vmatprep.subr.mxu0 0.0
          %1316 = vmatpush2.msra.mxu0 0.0
          %1317 = vmatprep.subr.mxu0 0.0
          %1318 = vmatpush2.msra.mxu0 0.0
          %1319 = vmatprep.subr.mxu0 0.0
          %1320 = vmatpush2.msra.mxu0 0.0
          %1321 = vmatprep.subr.mxu0 0.0
          %1322 = vmatpush2.msra.mxu0 0.0
          %1323 = vmatprep.subr.mxu0 0.0
          %1324 = vmatpush2.msra.mxu0 0.0
          %1325 = vmatprep.subr.mxu0 0.0
          %1326 = vmatpush2.msra.mxu0 0.0
          %1327 = vmatprep.subr.mxu0 0.0
          %1328 = vmatpush2.msra.mxu0 0.0
          %1329 = vmatprep.subr.mxu0 0.0
          %1330 = vmatpush2.msra.mxu0 0.0
          %1331 = vmatprep.subr.mxu0 0.0
          %1332 = vmatpush2.msra.mxu0 0.0
          %1333 = vmatprep.subr.mxu0 0.0
          %1334 = vmatpush2.msra.mxu0 0.0
          %1335 = vmatprep.subr.mxu0 0.0
          %1336 = vmatpush2.msra.mxu0 0.0
          %1337 = vmatprep.mubr.f32.mxu0 0.0
          %1338 = vmatmul.mubr.f32.gmra.mxu0 %v1271
          %v1339 = vpop.f32.mrf.mxu0
          %v1340 = vadd.f32 0.0, %v1339
          %v1341 = vpop.f32.mrf.mxu0
          %1342 = vdwg.mxu0
          %v1344 = vsel %vm755, %v1137, 0
          %1346 = vmatprep.subr.mxu0 0.0
          %1347 = vmatpush1.msra.mxu0 0.0
          %1348 = vmatprep.subr.mxu0 0.0
          %1349 = vmatpush1.msra.mxu0 0.0
          %1350 = vmatprep.subr.mxu0 0.0
          %1351 = vmatpush1.msra.mxu0 0.0
          %1352 = vmatprep.subr.mxu0 0.0
          %1353 = vmatpush1.msra.mxu0 0.0
          %1354 = vmatprep.subr.mxu0 0.0
          %1355 = vmatpush1.msra.mxu0 0.0
          %1356 = vmatprep.subr.mxu0 0.0
          %1357 = vmatpush1.msra.mxu0 0.0
          %1358 = vmatprep.subr.mxu0 0.0
          %1359 = vmatpush1.msra.mxu0 0.0
          %1360 = vmatprep.subr.mxu0 0.0
          %1361 = vmatpush1.msra.mxu0 0.0
          %1362 = vmatprep.subr.mxu0 0.0
          %1363 = vmatpush1.msra.mxu0 0.0
          %1364 = vmatprep.subr.mxu0 0.0
          %1365 = vmatpush1.msra.mxu0 0.0
          %1366 = vmatprep.subr.mxu0 0.0
          %1367 = vmatpush1.msra.mxu0 0.0
          %1368 = vmatprep.subr.mxu0 0.0
          %1369 = vmatpush1.msra.mxu0 0.0
          %1370 = vmatprep.subr.mxu0 0.0
          %1371 = vmatpush1.msra.mxu0 0.0
          %1372 = vmatprep.subr.mxu0 0.0
          %1373 = vmatpush1.msra.mxu0 0.0
          %1374 = vmatprep.subr.mxu0 0.0
          %1375 = vmatpush1.msra.mxu0 0.0
          %1376 = vmatprep.subr.mxu0 0.0
          %1377 = vmatpush1.msra.mxu0 %v753
          %1378 = vmatprep.subr.mxu0 0.0
          %1379 = vmatpush2.msra.mxu0 0.0
          %1380 = vmatprep.subr.mxu0 0.0
          %1381 = vmatpush2.msra.mxu0 0.0
          %1382 = vmatprep.subr.mxu0 0.0
          %1383 = vmatpush2.msra.mxu0 0.0
          %1384 = vmatprep.subr.mxu0 0.0
          %1385 = vmatpush2.msra.mxu0 0.0
          %1386 = vmatprep.subr.mxu0 0.0
          %1387 = vmatpush2.msra.mxu0 0.0
          %1388 = vmatprep.subr.mxu0 0.0
          %1389 = vmatpush2.msra.mxu0 0.0
          %1390 = vmatprep.subr.mxu0 0.0
          %1391 = vmatpush2.msra.mxu0 0.0
          %1392 = vmatprep.subr.mxu0 0.0
          %1393 = vmatpush2.msra.mxu0 0.0
          %1394 = vmatprep.subr.mxu0 0.0
          %1395 = vmatpush2.msra.mxu0 0.0
          %1396 = vmatprep.subr.mxu0 0.0
          %1397 = vmatpush2.msra.mxu0 0.0
          %1398 = vmatprep.subr.mxu0 0.0
          %1399 = vmatpush2.msra.mxu0 0.0
          %1400 = vmatprep.subr.mxu0 0.0
          %1401 = vmatpush2.msra.mxu0 0.0
          %1402 = vmatprep.subr.mxu0 0.0
          %1403 = vmatpush2.msra.mxu0 0.0
          %1404 = vmatprep.subr.mxu0 0.0
          %1405 = vmatpush2.msra.mxu0 0.0
          %1406 = vmatprep.subr.mxu0 0.0
          %1407 = vmatpush2.msra.mxu0 0.0
          %1408 = vmatprep.subr.mxu0 0.0
          %1409 = vmatpush2.msra.mxu0 0.0
          %1410 = vmatprep.mubr.f32.mxu0 0.0
          %1411 = vmatmul.mubr.f32.gmra.mxu0 %v1344
          %v1412 = vpop.f32.mrf.mxu0
          %v1413 = vadd.f32 0.0, %v1412
          %v1414 = vpop.f32.mrf.mxu0
          %1415 = vdwg.mxu0
          %v1417 = vsel %vm755, %v1139, 0
          %1419 = vmatprep.subr.mxu0 0.0
          %1420 = vmatpush1.msra.mxu0 0.0
          %1421 = vmatprep.subr.mxu0 0.0
          %1422 = vmatpush1.msra.mxu0 0.0
          %1423 = vmatprep.subr.mxu0 0.0
          %1424 = vmatpush1.msra.mxu0 0.0
          %1425 = vmatprep.subr.mxu0 0.0
          %1426 = vmatpush1.msra.mxu0 0.0
          %1427 = vmatprep.subr.mxu0 0.0
          %1428 = vmatpush1.msra.mxu0 0.0
          %1429 = vmatprep.subr.mxu0 0.0
          %1430 = vmatpush1.msra.mxu0 0.0
          %1431 = vmatprep.subr.mxu0 0.0
          %1432 = vmatpush1.msra.mxu0 0.0
          %1433 = vmatprep.subr.mxu0 0.0
          %1434 = vmatpush1.msra.mxu0 0.0
          %1435 = vmatprep.subr.mxu0 0.0
          %1436 = vmatpush1.msra.mxu0 0.0
          %1437 = vmatprep.subr.mxu0 0.0
          %1438 = vmatpush1.msra.mxu0 0.0
          %1439 = vmatprep.subr.mxu0 0.0
          %1440 = vmatpush1.msra.mxu0 0.0
          %1441 = vmatprep.subr.mxu0 0.0
          %1442 = vmatpush1.msra.mxu0 0.0
          %1443 = vmatprep.subr.mxu0 0.0
          %1444 = vmatpush1.msra.mxu0 0.0
          %1445 = vmatprep.subr.mxu0 0.0
          %1446 = vmatpush1.msra.mxu0 0.0
          %1447 = vmatprep.subr.mxu0 0.0
          %1448 = vmatpush1.msra.mxu0 0.0
          %1449 = vmatprep.subr.mxu0 0.0
          %1450 = vmatpush1.msra.mxu0 %v754
          %1451 = vmatprep.subr.mxu0 0.0
          %1452 = vmatpush2.msra.mxu0 0.0
          %1453 = vmatprep.subr.mxu0 0.0
          %1454 = vmatpush2.msra.mxu0 0.0
          %1455 = vmatprep.subr.mxu0 0.0
          %1456 = vmatpush2.msra.mxu0 0.0
          %1457 = vmatprep.subr.mxu0 0.0
          %1458 = vmatpush2.msra.mxu0 0.0
          %1459 = vmatprep.subr.mxu0 0.0
          %1460 = vmatpush2.msra.mxu0 0.0
          %1461 = vmatprep.subr.mxu0 0.0
          %1462 = vmatpush2.msra.mxu0 0.0
          %1463 = vmatprep.subr.mxu0 0.0
          %1464 = vmatpush2.msra.mxu0 0.0
          %1465 = vmatprep.subr.mxu0 0.0
          %1466 = vmatpush2.msra.mxu0 0.0
          %1467 = vmatprep.subr.mxu0 0.0
          %1468 = vmatpush2.msra.mxu0 0.0
          %1469 = vmatprep.subr.mxu0 0.0
          %1470 = vmatpush2.msra.mxu0 0.0
          %1471 = vmatprep.subr.mxu0 0.0
          %1472 = vmatpush2.msra.mxu0 0.0
          %1473 = vmatprep.subr.mxu0 0.0
          %1474 = vmatpush2.msra.mxu0 0.0
          %1475 = vmatprep.subr.mxu0 0.0
          %1476 = vmatpush2.msra.mxu0 0.0
          %1477 = vmatprep.subr.mxu0 0.0
          %1478 = vmatpush2.msra.mxu0 0.0
          %1479 = vmatprep.subr.mxu0 0.0
          %1480 = vmatpush2.msra.mxu0 0.0
          %1481 = vmatprep.subr.mxu0 0.0
          %1482 = vmatpush2.msra.mxu0 0.0
          %1483 = vmatprep.mubr.f32.mxu0 0.0
          %1484 = vmatmul.mubr.f32.gmra.mxu0 %v1417
          %v1485 = vpop.f32.mrf.mxu0
          %v1486 = vadd.f32 0.0, %v1485
          %v1487 = vpop.f32.mrf.mxu0
          %1488 = vdwg.mxu0
          %v1489 = vadd.f32 %v1193, %v1267
          %v1490 = vadd.f32 %v1194, %v1340
          %v1491 = vadd.f32 %v1195, %v1413
          %v1492 = vadd.f32 %v1196, %v1486
          %1493 = vst.msk [vmem:[#allocation4] sm:$0xff] %vm755, %v1489
          %1494 = vst.msk [vmem:[#allocation4 + $0x8] sm:$0xff] %vm755, %v1490
          %1495 = vst.msk [vmem:[#allocation4 + $0x10] sm:$0xff] %vm755, %v1491
          %1496 = vst.msk [vmem:[#allocation4 + $0x18] sm:$0xff] %vm755, %v1492
          %1497 = vst.msk [vmem:[#allocation2] sm:$0xff] %vm1164, %v1092
          %1498 = vst.msk [vmem:[#allocation2 + $0x8] sm:$0xff] %vm1164, %v1093
          %1499 = vst.msk [vmem:[#allocation2 + $0x10] sm:$0xff] %vm1164, %v1094
          %1500 = vst.msk [vmem:[#allocation2 + $0x18] sm:$0xff] %vm1164, %v1095
        $region163: #{causal_self_attention.4} parent=142 // pred_fallthru
          _
        %p1501 = scmp.le.s32.totalorder %s592, %s594
        // Predicated region
        $region164: #{causal_self_attention.4} parent=142 // pred_check
          %p1502 = pneg %p1501
        $region165: #{causal_self_attention.4} parent=142 // pred_check_branch
          %1504 = sbr.rel (%p1502) target = $region167
        $region166: #{causal_self_attention.4} parent=142 // pred_region
          %v1505 = vld [vmem:[#allocation5] sm:$0xff]
          %v1506 = vld [vmem:[#allocation5 + $0x8] sm:$0xff]
          %v1507 = vld [vmem:[#allocation5 + $0x10] sm:$0xff]
          %v1508 = vld [vmem:[#allocation5 + $0x18] sm:$0xff]
          %v1509 = vld [vmem:[%s432] sm:$0xf]
          %v1510 = vld [vmem:[%s432 + $0x4] sm:$0xf]
          %v1511 = vld [vmem:[%s432 + $0x8] sm:$0xf]
          %v1512 = vld [vmem:[%s432 + $0xc] sm:$0xf]
          %v1513 = vld [vmem:[%s432 + $0x10] sm:$0xf]
          %v1514 = vld [vmem:[%s432 + $0x14] sm:$0xf]
          %v1515 = vld [vmem:[%s432 + $0x18] sm:$0xf]
          %v1516 = vld [vmem:[%s432 + $0x1c] sm:$0xf]
          %v1517 = vcombine.low %v1509, %v1511
          %v1519 = vunpack.c.l.s4 1983009808
          %v1520 = vunpack.c.0.s8 %v1519
          %v1521 = vlaneseq
          %v1522 = vshrl.u32 %v1521, 7
          %v1523 = vsub.s32 %v1520, %v1522
          %v1524 = vrot.slane %v1517, %v1523
          %v1525 = vcombine.low %v1510, %v1512
          %v1527 = vunpack.c.l.s4 1983009808
          %v1528 = vunpack.c.0.s8 %v1527
          %v1529 = vlaneseq
          %v1530 = vshrl.u32 %v1529, 7
          %v1531 = vsub.s32 %v1528, %v1530
          %v1532 = vrot.slane %v1525, %v1531
          %v1533 = vcombine.low %v1513, %v1515
          %v1535 = vunpack.c.l.s4 1983009808
          %v1536 = vunpack.c.0.s8 %v1535
          %v1537 = vlaneseq
          %v1538 = vshrl.u32 %v1537, 7
          %v1539 = vsub.s32 %v1536, %v1538
          %v1540 = vrot.slane %v1533, %v1539
          %v1541 = vcombine.low %v1514, %v1516
          %v1543 = vunpack.c.l.s4 1983009808
          %v1544 = vunpack.c.0.s8 %v1543
          %v1545 = vlaneseq
          %v1546 = vshrl.u32 %v1545, 7
          %v1547 = vsub.s32 %v1544, %v1546
          %v1548 = vrot.slane %v1541, %v1547
          %v1549 = vcombine.low %v1524, %v1532
          %v1550 = vcombine.high %v1524, %v1532
          %v1552 = vunpack.c.l.s4 1934713408
          %v1553 = vunpack.c.0.s8 %v1552
          %v1554 = vlaneseq
          %v1555 = vshrl.u32 %v1554, 7
          %v1556 = vsub.s32 %v1553, %v1555
          %v1557 = vrot.slane %v1549, %v1556
          %v1559 = vunpack.c.l.s4 1934713408
          %v1560 = vunpack.c.0.s8 %v1559
          %v1561 = vlaneseq
          %v1562 = vshrl.u32 %v1561, 7
          %v1563 = vsub.s32 %v1560, %v1562
          %v1564 = vrot.slane %v1550, %v1563
          %v1565 = vcombine.low %v1540, %v1548
          %v1566 = vcombine.high %v1540, %v1548
          %v1568 = vunpack.c.l.s4 1934713408
          %v1569 = vunpack.c.0.s8 %v1568
          %v1570 = vlaneseq
          %v1571 = vshrl.u32 %v1570, 7
          %v1572 = vsub.s32 %v1569, %v1571
          %v1573 = vrot.slane %v1565, %v1572
          %v1575 = vunpack.c.l.s4 1934713408
          %v1576 = vunpack.c.0.s8 %v1575
          %v1577 = vlaneseq
          %v1578 = vshrl.u32 %v1577, 7
          %v1579 = vsub.s32 %v1576, %v1578
          %v1580 = vrot.slane %v1566, %v1579
          %v1581 = vcombine.low %v1557, %v1573
          %v1582 = vcombine.high %v1557, %v1573
          %v1583 = vcombine.low %v1564, %v1580
          %v1584 = vcombine.high %v1564, %v1580
          %v1585 = vld [vmem:[%s439] sm:$0xf]
          %v1586 = vld [vmem:[%s439 + $0x4] sm:$0xf]
          %v1587 = vld [vmem:[%s439 + $0x8] sm:$0xf]
          %v1588 = vld [vmem:[%s439 + $0xc] sm:$0xf]
          %v1589 = vld [vmem:[%s439 + $0x10] sm:$0xf]
          %v1590 = vld [vmem:[%s439 + $0x14] sm:$0xf]
          %v1591 = vld [vmem:[%s439 + $0x18] sm:$0xf]
          %v1592 = vld [vmem:[%s439 + $0x1c] sm:$0xf]
          %v1593 = vcombine.low %v1585, %v1587
          %v1595 = vunpack.c.l.s4 1983009808
          %v1596 = vunpack.c.0.s8 %v1595
          %v1597 = vlaneseq
          %v1598 = vshrl.u32 %v1597, 7
          %v1599 = vsub.s32 %v1596, %v1598
          %v1600 = vrot.slane %v1593, %v1599
          %v1601 = vcombine.low %v1586, %v1588
          %v1603 = vunpack.c.l.s4 1983009808
          %v1604 = vunpack.c.0.s8 %v1603
          %v1605 = vlaneseq
          %v1606 = vshrl.u32 %v1605, 7
          %v1607 = vsub.s32 %v1604, %v1606
          %v1608 = vrot.slane %v1601, %v1607
          %v1609 = vcombine.low %v1589, %v1591
          %v1611 = vunpack.c.l.s4 1983009808
          %v1612 = vunpack.c.0.s8 %v1611
          %v1613 = vlaneseq
          %v1614 = vshrl.u32 %v1613, 7
          %v1615 = vsub.s32 %v1612, %v1614
          %v1616 = vrot.slane %v1609, %v1615
          %v1617 = vcombine.low %v1590, %v1592
          %v1619 = vunpack.c.l.s4 1983009808
          %v1620 = vunpack.c.0.s8 %v1619
          %v1621 = vlaneseq
          %v1622 = vshrl.u32 %v1621, 7
          %v1623 = vsub.s32 %v1620, %v1622
          %v1624 = vrot.slane %v1617, %v1623
          %v1625 = vcombine.low %v1600, %v1608
          %v1626 = vcombine.high %v1600, %v1608
          %v1628 = vunpack.c.l.s4 1934713408
          %v1629 = vunpack.c.0.s8 %v1628
          %v1630 = vlaneseq
          %v1631 = vshrl.u32 %v1630, 7
          %v1632 = vsub.s32 %v1629, %v1631
          %v1633 = vrot.slane %v1625, %v1632
          %v1635 = vunpack.c.l.s4 1934713408
          %v1636 = vunpack.c.0.s8 %v1635
          %v1637 = vlaneseq
          %v1638 = vshrl.u32 %v1637, 7
          %v1639 = vsub.s32 %v1636, %v1638
          %v1640 = vrot.slane %v1626, %v1639
          %v1641 = vcombine.low %v1616, %v1624
          %v1642 = vcombine.high %v1616, %v1624
          %v1644 = vunpack.c.l.s4 1934713408
          %v1645 = vunpack.c.0.s8 %v1644
          %v1646 = vlaneseq
          %v1647 = vshrl.u32 %v1646, 7
          %v1648 = vsub.s32 %v1645, %v1647
          %v1649 = vrot.slane %v1641, %v1648
          %v1651 = vunpack.c.l.s4 1934713408
          %v1652 = vunpack.c.0.s8 %v1651
          %v1653 = vlaneseq
          %v1654 = vshrl.u32 %v1653, 7
          %v1655 = vsub.s32 %v1652, %v1654
          %v1656 = vrot.slane %v1642, %v1655
          %v1657 = vcombine.low %v1633, %v1649
          %v1658 = vcombine.high %v1633, %v1649
          %v1659 = vcombine.low %v1640, %v1656
          %v1660 = vcombine.high %v1640, %v1656
          %vm1661 = vcmask 64512
          %v1663 = vsel %vm1661, %v1505, 0
          %v1666 = vsel %vm1661, %v1581, 0
          %1668 = vmatprep.subr.mxu0 0.0
          %1669 = vmatpush1.xpose.msra.mxu0 0.0
          %1670 = vmatprep.subr.mxu0 0.0
          %1671 = vmatpush1.xpose.msra.mxu0 0.0
          %1672 = vmatprep.subr.mxu0 0.0
          %1673 = vmatpush1.xpose.msra.mxu0 0.0
          %1674 = vmatprep.subr.mxu0 0.0
          %1675 = vmatpush1.xpose.msra.mxu0 0.0
          %1676 = vmatprep.subr.mxu0 0.0
          %1677 = vmatpush1.xpose.msra.mxu0 0.0
          %1678 = vmatprep.subr.mxu0 0.0
          %1679 = vmatpush1.xpose.msra.mxu0 0.0
          %1680 = vmatprep.subr.mxu0 0.0
          %1681 = vmatpush1.xpose.msra.mxu0 0.0
          %1682 = vmatprep.subr.mxu0 0.0
          %1683 = vmatpush1.xpose.msra.mxu0 0.0
          %1684 = vmatprep.subr.mxu0 0.0
          %1685 = vmatpush1.xpose.msra.mxu0 0.0
          %1686 = vmatprep.subr.mxu0 0.0
          %1687 = vmatpush1.xpose.msra.mxu0 0.0
          %1688 = vmatprep.subr.mxu0 0.0
          %1689 = vmatpush1.xpose.msra.mxu0 0.0
          %1690 = vmatprep.subr.mxu0 0.0
          %1691 = vmatpush1.xpose.msra.mxu0 0.0
          %1692 = vmatprep.subr.mxu0 0.0
          %1693 = vmatpush1.xpose.msra.mxu0 0.0
          %1694 = vmatprep.subr.mxu0 0.0
          %1695 = vmatpush1.xpose.msra.mxu0 0.0
          %1696 = vmatprep.subr.mxu0 0.0
          %1697 = vmatpush1.xpose.msra.mxu0 0.0
          %1698 = vmatprep.subr.mxu0 0.0
          %1699 = vmatpush1.xpose.msra.mxu0 %v1666
          %1700 = vmatprep.subr.mxu0 0.0
          %1701 = vmatpush2.xpose.msra.mxu0 0.0
          %1702 = vmatprep.subr.mxu0 0.0
          %1703 = vmatpush2.xpose.msra.mxu0 0.0
          %1704 = vmatprep.subr.mxu0 0.0
          %1705 = vmatpush2.xpose.msra.mxu0 0.0
          %1706 = vmatprep.subr.mxu0 0.0
          %1707 = vmatpush2.xpose.msra.mxu0 0.0
          %1708 = vmatprep.subr.mxu0 0.0
          %1709 = vmatpush2.xpose.msra.mxu0 0.0
          %1710 = vmatprep.subr.mxu0 0.0
          %1711 = vmatpush2.xpose.msra.mxu0 0.0
          %1712 = vmatprep.subr.mxu0 0.0
          %1713 = vmatpush2.xpose.msra.mxu0 0.0
          %1714 = vmatprep.subr.mxu0 0.0
          %1715 = vmatpush2.xpose.msra.mxu0 0.0
          %1716 = vmatprep.subr.mxu0 0.0
          %1717 = vmatpush2.xpose.msra.mxu0 0.0
          %1718 = vmatprep.subr.mxu0 0.0
          %1719 = vmatpush2.xpose.msra.mxu0 0.0
          %1720 = vmatprep.subr.mxu0 0.0
          %1721 = vmatpush2.xpose.msra.mxu0 0.0
          %1722 = vmatprep.subr.mxu0 0.0
          %1723 = vmatpush2.xpose.msra.mxu0 0.0
          %1724 = vmatprep.subr.mxu0 0.0
          %1725 = vmatpush2.xpose.msra.mxu0 0.0
          %1726 = vmatprep.subr.mxu0 0.0
          %1727 = vmatpush2.xpose.msra.mxu0 0.0
          %1728 = vmatprep.subr.mxu0 0.0
          %1729 = vmatpush2.xpose.msra.mxu0 0.0
          %1730 = vmatprep.subr.mxu0 0.0
          %1731 = vmatpush2.xpose.msra.mxu0 0.0
          %1732 = vmatprep.mubr.f32.mxu0 0.0
          %1733 = vmatmul.mubr.f32.gmra.mxu0 %v1663
          %v1734 = vpop.f32.mrf.mxu0
          %v1735 = vadd.f32 0.0, %v1734
          %v1736 = vpop.f32.mrf.mxu0
          %1737 = vdwg.mxu0
          %v1739 = vsel %vm1661, %v1506, 0
          %v1742 = vsel %vm1661, %v1582, 0
          %1744 = vmatprep.subr.mxu0 0.0
          %1745 = vmatpush1.xpose.msra.mxu0 0.0
          %1746 = vmatprep.subr.mxu0 0.0
          %1747 = vmatpush1.xpose.msra.mxu0 0.0
          %1748 = vmatprep.subr.mxu0 0.0
          %1749 = vmatpush1.xpose.msra.mxu0 0.0
          %1750 = vmatprep.subr.mxu0 0.0
          %1751 = vmatpush1.xpose.msra.mxu0 0.0
          %1752 = vmatprep.subr.mxu0 0.0
          %1753 = vmatpush1.xpose.msra.mxu0 0.0
          %1754 = vmatprep.subr.mxu0 0.0
          %1755 = vmatpush1.xpose.msra.mxu0 0.0
          %1756 = vmatprep.subr.mxu0 0.0
          %1757 = vmatpush1.xpose.msra.mxu0 0.0
          %1758 = vmatprep.subr.mxu0 0.0
          %1759 = vmatpush1.xpose.msra.mxu0 0.0
          %1760 = vmatprep.subr.mxu0 0.0
          %1761 = vmatpush1.xpose.msra.mxu0 0.0
          %1762 = vmatprep.subr.mxu0 0.0
          %1763 = vmatpush1.xpose.msra.mxu0 0.0
          %1764 = vmatprep.subr.mxu0 0.0
          %1765 = vmatpush1.xpose.msra.mxu0 0.0
          %1766 = vmatprep.subr.mxu0 0.0
          %1767 = vmatpush1.xpose.msra.mxu0 0.0
          %1768 = vmatprep.subr.mxu0 0.0
          %1769 = vmatpush1.xpose.msra.mxu0 0.0
          %1770 = vmatprep.subr.mxu0 0.0
          %1771 = vmatpush1.xpose.msra.mxu0 0.0
          %1772 = vmatprep.subr.mxu0 0.0
          %1773 = vmatpush1.xpose.msra.mxu0 0.0
          %1774 = vmatprep.subr.mxu0 0.0
          %1775 = vmatpush1.xpose.msra.mxu0 %v1742
          %1776 = vmatprep.subr.mxu0 0.0
          %1777 = vmatpush2.xpose.msra.mxu0 0.0
          %1778 = vmatprep.subr.mxu0 0.0
          %1779 = vmatpush2.xpose.msra.mxu0 0.0
          %1780 = vmatprep.subr.mxu0 0.0
          %1781 = vmatpush2.xpose.msra.mxu0 0.0
          %1782 = vmatprep.subr.mxu0 0.0
          %1783 = vmatpush2.xpose.msra.mxu0 0.0
          %1784 = vmatprep.subr.mxu0 0.0
          %1785 = vmatpush2.xpose.msra.mxu0 0.0
          %1786 = vmatprep.subr.mxu0 0.0
          %1787 = vmatpush2.xpose.msra.mxu0 0.0
          %1788 = vmatprep.subr.mxu0 0.0
          %1789 = vmatpush2.xpose.msra.mxu0 0.0
          %1790 = vmatprep.subr.mxu0 0.0
          %1791 = vmatpush2.xpose.msra.mxu0 0.0
          %1792 = vmatprep.subr.mxu0 0.0
          %1793 = vmatpush2.xpose.msra.mxu0 0.0
          %1794 = vmatprep.subr.mxu0 0.0
          %1795 = vmatpush2.xpose.msra.mxu0 0.0
          %1796 = vmatprep.subr.mxu0 0.0
          %1797 = vmatpush2.xpose.msra.mxu0 0.0
          %1798 = vmatprep.subr.mxu0 0.0
          %1799 = vmatpush2.xpose.msra.mxu0 0.0
          %1800 = vmatprep.subr.mxu0 0.0
          %1801 = vmatpush2.xpose.msra.mxu0 0.0
          %1802 = vmatprep.subr.mxu0 0.0
          %1803 = vmatpush2.xpose.msra.mxu0 0.0
          %1804 = vmatprep.subr.mxu0 0.0
          %1805 = vmatpush2.xpose.msra.mxu0 0.0
          %1806 = vmatprep.subr.mxu0 0.0
          %1807 = vmatpush2.xpose.msra.mxu0 0.0
          %1808 = vmatprep.mubr.f32.mxu0 0.0
          %1809 = vmatmul.mubr.f32.gmra.mxu0 %v1739
          %v1810 = vpop.f32.mrf.mxu0
          %v1811 = vadd.f32 0.0, %v1810
          %v1812 = vpop.f32.mrf.mxu0
          %1813 = vdwg.mxu0
          %v1815 = vsel %vm1661, %v1507, 0
          %v1818 = vsel %vm1661, %v1583, 0
          %1820 = vmatprep.subr.mxu0 0.0
          %1821 = vmatpush1.xpose.msra.mxu0 0.0
          %1822 = vmatprep.subr.mxu0 0.0
          %1823 = vmatpush1.xpose.msra.mxu0 0.0
          %1824 = vmatprep.subr.mxu0 0.0
          %1825 = vmatpush1.xpose.msra.mxu0 0.0
          %1826 = vmatprep.subr.mxu0 0.0
          %1827 = vmatpush1.xpose.msra.mxu0 0.0
          %1828 = vmatprep.subr.mxu0 0.0
          %1829 = vmatpush1.xpose.msra.mxu0 0.0
          %1830 = vmatprep.subr.mxu0 0.0
          %1831 = vmatpush1.xpose.msra.mxu0 0.0
          %1832 = vmatprep.subr.mxu0 0.0
          %1833 = vmatpush1.xpose.msra.mxu0 0.0
          %1834 = vmatprep.subr.mxu0 0.0
          %1835 = vmatpush1.xpose.msra.mxu0 0.0
          %1836 = vmatprep.subr.mxu0 0.0
          %1837 = vmatpush1.xpose.msra.mxu0 0.0
          %1838 = vmatprep.subr.mxu0 0.0
          %1839 = vmatpush1.xpose.msra.mxu0 0.0
          %1840 = vmatprep.subr.mxu0 0.0
          %1841 = vmatpush1.xpose.msra.mxu0 0.0
          %1842 = vmatprep.subr.mxu0 0.0
          %1843 = vmatpush1.xpose.msra.mxu0 0.0
          %1844 = vmatprep.subr.mxu0 0.0
          %1845 = vmatpush1.xpose.msra.mxu0 0.0
          %1846 = vmatprep.subr.mxu0 0.0
          %1847 = vmatpush1.xpose.msra.mxu0 0.0
          %1848 = vmatprep.subr.mxu0 0.0
          %1849 = vmatpush1.xpose.msra.mxu0 0.0
          %1850 = vmatprep.subr.mxu0 0.0
          %1851 = vmatpush1.xpose.msra.mxu0 %v1818
          %1852 = vmatprep.subr.mxu0 0.0
          %1853 = vmatpush2.xpose.msra.mxu0 0.0
          %1854 = vmatprep.subr.mxu0 0.0
          %1855 = vmatpush2.xpose.msra.mxu0 0.0
          %1856 = vmatprep.subr.mxu0 0.0
          %1857 = vmatpush2.xpose.msra.mxu0 0.0
          %1858 = vmatprep.subr.mxu0 0.0
          %1859 = vmatpush2.xpose.msra.mxu0 0.0
          %1860 = vmatprep.subr.mxu0 0.0
          %1861 = vmatpush2.xpose.msra.mxu0 0.0
          %1862 = vmatprep.subr.mxu0 0.0
          %1863 = vmatpush2.xpose.msra.mxu0 0.0
          %1864 = vmatprep.subr.mxu0 0.0
          %1865 = vmatpush2.xpose.msra.mxu0 0.0
          %1866 = vmatprep.subr.mxu0 0.0
          %1867 = vmatpush2.xpose.msra.mxu0 0.0
          %1868 = vmatprep.subr.mxu0 0.0
          %1869 = vmatpush2.xpose.msra.mxu0 0.0
          %1870 = vmatprep.subr.mxu0 0.0
          %1871 = vmatpush2.xpose.msra.mxu0 0.0
          %1872 = vmatprep.subr.mxu0 0.0
          %1873 = vmatpush2.xpose.msra.mxu0 0.0
          %1874 = vmatprep.subr.mxu0 0.0
          %1875 = vmatpush2.xpose.msra.mxu0 0.0
          %1876 = vmatprep.subr.mxu0 0.0
          %1877 = vmatpush2.xpose.msra.mxu0 0.0
          %1878 = vmatprep.subr.mxu0 0.0
          %1879 = vmatpush2.xpose.msra.mxu0 0.0
          %1880 = vmatprep.subr.mxu0 0.0
          %1881 = vmatpush2.xpose.msra.mxu0 0.0
          %1882 = vmatprep.subr.mxu0 0.0
          %1883 = vmatpush2.xpose.msra.mxu0 0.0
          %1884 = vmatprep.mubr.f32.mxu0 0.0
          %1885 = vmatmul.mubr.f32.gmra.mxu0 %v1815
          %v1886 = vpop.f32.mrf.mxu0
          %v1887 = vadd.f32 0.0, %v1886
          %v1888 = vpop.f32.mrf.mxu0
          %1889 = vdwg.mxu0
          %v1891 = vsel %vm1661, %v1508, 0
          %v1894 = vsel %vm1661, %v1584, 0
          %1896 = vmatprep.subr.mxu0 0.0
          %1897 = vmatpush1.xpose.msra.mxu0 0.0
          %1898 = vmatprep.subr.mxu0 0.0
          %1899 = vmatpush1.xpose.msra.mxu0 0.0
          %1900 = vmatprep.subr.mxu0 0.0
          %1901 = vmatpush1.xpose.msra.mxu0 0.0
          %1902 = vmatprep.subr.mxu0 0.0
          %1903 = vmatpush1.xpose.msra.mxu0 0.0
          %1904 = vmatprep.subr.mxu0 0.0
          %1905 = vmatpush1.xpose.msra.mxu0 0.0
          %1906 = vmatprep.subr.mxu0 0.0
          %1907 = vmatpush1.xpose.msra.mxu0 0.0
          %1908 = vmatprep.subr.mxu0 0.0
          %1909 = vmatpush1.xpose.msra.mxu0 0.0
          %1910 = vmatprep.subr.mxu0 0.0
          %1911 = vmatpush1.xpose.msra.mxu0 0.0
          %1912 = vmatprep.subr.mxu0 0.0
          %1913 = vmatpush1.xpose.msra.mxu0 0.0
          %1914 = vmatprep.subr.mxu0 0.0
          %1915 = vmatpush1.xpose.msra.mxu0 0.0
          %1916 = vmatprep.subr.mxu0 0.0
          %1917 = vmatpush1.xpose.msra.mxu0 0.0
          %1918 = vmatprep.subr.mxu0 0.0
          %1919 = vmatpush1.xpose.msra.mxu0 0.0
          %1920 = vmatprep.subr.mxu0 0.0
          %1921 = vmatpush1.xpose.msra.mxu0 0.0
          %1922 = vmatprep.subr.mxu0 0.0
          %1923 = vmatpush1.xpose.msra.mxu0 0.0
          %1924 = vmatprep.subr.mxu0 0.0
          %1925 = vmatpush1.xpose.msra.mxu0 0.0
          %1926 = vmatprep.subr.mxu0 0.0
          %1927 = vmatpush1.xpose.msra.mxu0 %v1894
          %1928 = vmatprep.subr.mxu0 0.0
          %1929 = vmatpush2.xpose.msra.mxu0 0.0
          %1930 = vmatprep.subr.mxu0 0.0
          %1931 = vmatpush2.xpose.msra.mxu0 0.0
          %1932 = vmatprep.subr.mxu0 0.0
          %1933 = vmatpush2.xpose.msra.mxu0 0.0
          %1934 = vmatprep.subr.mxu0 0.0
          %1935 = vmatpush2.xpose.msra.mxu0 0.0
          %1936 = vmatprep.subr.mxu0 0.0
          %1937 = vmatpush2.xpose.msra.mxu0 0.0
          %1938 = vmatprep.subr.mxu0 0.0
          %1939 = vmatpush2.xpose.msra.mxu0 0.0
          %1940 = vmatprep.subr.mxu0 0.0
          %1941 = vmatpush2.xpose.msra.mxu0 0.0
          %1942 = vmatprep.subr.mxu0 0.0
          %1943 = vmatpush2.xpose.msra.mxu0 0.0
          %1944 = vmatprep.subr.mxu0 0.0
          %1945 = vmatpush2.xpose.msra.mxu0 0.0
          %1946 = vmatprep.subr.mxu0 0.0
          %1947 = vmatpush2.xpose.msra.mxu0 0.0
          %1948 = vmatprep.subr.mxu0 0.0
          %1949 = vmatpush2.xpose.msra.mxu0 0.0
          %1950 = vmatprep.subr.mxu0 0.0
          %1951 = vmatpush2.xpose.msra.mxu0 0.0
          %1952 = vmatprep.subr.mxu0 0.0
          %1953 = vmatpush2.xpose.msra.mxu0 0.0
          %1954 = vmatprep.subr.mxu0 0.0
          %1955 = vmatpush2.xpose.msra.mxu0 0.0
          %1956 = vmatprep.subr.mxu0 0.0
          %1957 = vmatpush2.xpose.msra.mxu0 0.0
          %1958 = vmatprep.subr.mxu0 0.0
          %1959 = vmatpush2.xpose.msra.mxu0 0.0
          %1960 = vmatprep.mubr.f32.mxu0 0.0
          %1961 = vmatmul.mubr.f32.gmra.mxu0 %v1891
          %v1962 = vpop.f32.mrf.mxu0
          %v1963 = vadd.f32 0.0, %v1962
          %v1964 = vpop.f32.mrf.mxu0
          %1965 = vdwg.mxu0
          %v1966 = vld [vmem:[#allocation2] sm:$0xff]
          %v1967 = vld [vmem:[#allocation2 + $0x8] sm:$0xff]
          %v1968 = vld [vmem:[#allocation2 + $0x10] sm:$0xff]
          %v1969 = vld [vmem:[#allocation2 + $0x18] sm:$0xff]
          %v1970 = vsel %vm1661, %v1735, -inf
          %1971 = vmax.xlane.f32.xlu0 %v1970
          %v1972 = vpop.xlane.xlu0 %1971
          %v1973 = vsel %vm1661, %v1811, -inf
          %1974 = vmax.xlane.f32.xlu0 %v1973
          %v1975 = vpop.xlane.xlu0 %1974
          %v1976 = vsel %vm1661, %v1887, -inf
          %1977 = vmax.xlane.f32.xlu0 %v1976
          %v1978 = vpop.xlane.xlu0 %1977
          %v1979 = vsel %vm1661, %v1963, -inf
          %1980 = vmax.xlane.f32.xlu0 %v1979
          %v1981 = vpop.xlane.xlu0 %1980
          %v1982 = vmax.f32 %v1966, %v1972
          %v1983 = vmax.f32 %v1967, %v1975
          %v1984 = vmax.f32 %v1968, %v1978
          %v1985 = vmax.f32 %v1969, %v1981
          %v1986 = vsub.f32 %v1966, %v1982
          %v1987 = vsub.f32 %v1967, %v1983
          %v1988 = vsub.f32 %v1968, %v1984
          %v1989 = vsub.f32 %v1969, %v1985
          %v1990 = vmul.f32 %v1986, 1.442695
          %v1991 = vpow.pop %v1990
          %v1992 = vmul.f32 %v1987, 1.442695
          %v1993 = vpow.pop %v1992
          %v1994 = vmul.f32 %v1988, 1.442695
          %v1995 = vpow.pop %v1994
          %v1996 = vmul.f32 %v1989, 1.442695
          %v1997 = vpow.pop %v1996
          %1999 = vset.pattern.permute.xlu0 0
          %2000 = vperm.xlu0 %1999, %v1982
          %v2001 = vpop.permute.xlu0 %2000
          %2004 = vset.pattern.permute.xlu0 0
          %2005 = vperm.xlu0 %2004, %v1983
          %v2006 = vpop.permute.xlu0 %2005
          %2009 = vset.pattern.permute.xlu0 0
          %2010 = vperm.xlu0 %2009, %v1984
          %v2011 = vpop.permute.xlu0 %2010
          %2014 = vset.pattern.permute.xlu0 0
          %2015 = vperm.xlu0 %2014, %v1985
          %v2016 = vpop.permute.xlu0 %2015
          %v2018 = vsub.f32 %v1735, %v2001
          %v2019 = vsub.f32 %v1811, %v2006
          %v2020 = vsub.f32 %v1887, %v2011
          %v2021 = vsub.f32 %v1963, %v2016
          %v2022 = vmul.f32 %v2018, 1.442695
          %v2023 = vpow.pop %v2022
          %v2024 = vmul.f32 %v2019, 1.442695
          %v2025 = vpow.pop %v2024
          %v2026 = vmul.f32 %v2020, 1.442695
          %v2027 = vpow.pop %v2026
          %v2028 = vmul.f32 %v2021, 1.442695
          %v2029 = vpow.pop %v2028
          %v2030 = vld [vmem:[#allocation3] sm:$0xff]
          %v2031 = vld [vmem:[#allocation3 + $0x8] sm:$0xff]
          %v2032 = vld [vmem:[#allocation3 + $0x10] sm:$0xff]
          %v2033 = vld [vmem:[#allocation3 + $0x18] sm:$0xff]
          %v2034 = vmul.f32 %v1991, %v2030
          %v2035 = vmul.f32 %v1993, %v2031
          %v2036 = vmul.f32 %v1995, %v2032
          %v2037 = vmul.f32 %v1997, %v2033
          %v2038 = vsel %vm1661, %v2023, 0.0
          %2039 = vadd.xlane.f32.xlu0 %v2038
          %v2040 = vpop.xlane.xlu0 %2039
          %v2041 = vsel %vm1661, %v2025, 0.0
          %2042 = vadd.xlane.f32.xlu0 %v2041
          %v2043 = vpop.xlane.xlu0 %2042
          %v2044 = vsel %vm1661, %v2027, 0.0
          %2045 = vadd.xlane.f32.xlu0 %v2044
          %v2046 = vpop.xlane.xlu0 %2045
          %v2047 = vsel %vm1661, %v2029, 0.0
          %2048 = vadd.xlane.f32.xlu0 %v2047
          %v2049 = vpop.xlane.xlu0 %2048
          %v2050 = vadd.f32 %v2034, %v2040
          %v2051 = vadd.f32 %v2035, %v2043
          %v2052 = vadd.f32 %v2036, %v2046
          %v2053 = vadd.f32 %v2037, %v2049
          %vm2054 = vcmask 7168
          %2055 = vst.msk [vmem:[#allocation3] sm:$0xff] %vm2054, %v2050
          %2056 = vst.msk [vmem:[#allocation3 + $0x8] sm:$0xff] %vm2054, %v2051
          %2057 = vst.msk [vmem:[#allocation3 + $0x10] sm:$0xff] %vm2054, %v2052
          %2058 = vst.msk [vmem:[#allocation3 + $0x18] sm:$0xff] %vm2054, %v2053
          %v2059 = vld [vmem:[#allocation4] sm:$0xff]
          %v2060 = vld [vmem:[#allocation4 + $0x8] sm:$0xff]
          %v2061 = vld [vmem:[#allocation4 + $0x10] sm:$0xff]
          %v2062 = vld [vmem:[#allocation4 + $0x18] sm:$0xff]
          %2064 = vset.pattern.permute.xlu0 0
          %2065 = vperm.xlu0 %2064, %v1991
          %v2066 = vpop.permute.xlu0 %2065
          %2069 = vset.pattern.permute.xlu0 0
          %2070 = vperm.xlu0 %2069, %v1993
          %v2071 = vpop.permute.xlu0 %2070
          %2074 = vset.pattern.permute.xlu0 0
          %2075 = vperm.xlu0 %2074, %v1995
          %v2076 = vpop.permute.xlu0 %2075
          %2079 = vset.pattern.permute.xlu0 0
          %2080 = vperm.xlu0 %2079, %v1997
          %v2081 = vpop.permute.xlu0 %2080
          %v2083 = vmul.f32 %v2066, %v2059
          %v2084 = vmul.f32 %v2071, %v2060
          %v2085 = vmul.f32 %v2076, %v2061
          %v2086 = vmul.f32 %v2081, %v2062
          %v2088 = vsel %vm1661, %v2023, 0
          %2090 = vmatprep.subr.mxu0 0.0
          %2091 = vmatpush1.msra.mxu0 0.0
          %2092 = vmatprep.subr.mxu0 0.0
          %2093 = vmatpush1.msra.mxu0 0.0
          %2094 = vmatprep.subr.mxu0 0.0
          %2095 = vmatpush1.msra.mxu0 0.0
          %2096 = vmatprep.subr.mxu0 0.0
          %2097 = vmatpush1.msra.mxu0 0.0
          %2098 = vmatprep.subr.mxu0 0.0
          %2099 = vmatpush1.msra.mxu0 0.0
          %2100 = vmatprep.subr.mxu0 0.0
          %2101 = vmatpush1.msra.mxu0 0.0
          %2102 = vmatprep.subr.mxu0 0.0
          %2103 = vmatpush1.msra.mxu0 0.0
          %2104 = vmatprep.subr.mxu0 0.0
          %2105 = vmatpush1.msra.mxu0 0.0
          %2106 = vmatprep.subr.mxu0 0.0
          %2107 = vmatpush1.msra.mxu0 0.0
          %2108 = vmatprep.subr.mxu0 0.0
          %2109 = vmatpush1.msra.mxu0 0.0
          %2110 = vmatprep.subr.mxu0 0.0
          %2111 = vmatpush1.msra.mxu0 0.0
          %2112 = vmatprep.subr.mxu0 0.0
          %2113 = vmatpush1.msra.mxu0 0.0
          %2114 = vmatprep.subr.mxu0 0.0
          %2115 = vmatpush1.msra.mxu0 0.0
          %2116 = vmatprep.subr.mxu0 0.0
          %2117 = vmatpush1.msra.mxu0 0.0
          %2118 = vmatprep.subr.mxu0 0.0
          %2119 = vmatpush1.msra.mxu0 0.0
          %2120 = vmatprep.subr.mxu0 0.0
          %2121 = vmatpush1.msra.mxu0 %v1657
          %2122 = vmatprep.subr.mxu0 0.0
          %2123 = vmatpush2.msra.mxu0 0.0
          %2124 = vmatprep.subr.mxu0 0.0
          %2125 = vmatpush2.msra.mxu0 0.0
          %2126 = vmatprep.subr.mxu0 0.0
          %2127 = vmatpush2.msra.mxu0 0.0
          %2128 = vmatprep.subr.mxu0 0.0
          %2129 = vmatpush2.msra.mxu0 0.0
          %2130 = vmatprep.subr.mxu0 0.0
          %2131 = vmatpush2.msra.mxu0 0.0
          %2132 = vmatprep.subr.mxu0 0.0
          %2133 = vmatpush2.msra.mxu0 0.0
          %2134 = vmatprep.subr.mxu0 0.0
          %2135 = vmatpush2.msra.mxu0 0.0
          %2136 = vmatprep.subr.mxu0 0.0
          %2137 = vmatpush2.msra.mxu0 0.0
          %2138 = vmatprep.subr.mxu0 0.0
          %2139 = vmatpush2.msra.mxu0 0.0
          %2140 = vmatprep.subr.mxu0 0.0
          %2141 = vmatpush2.msra.mxu0 0.0
          %2142 = vmatprep.subr.mxu0 0.0
          %2143 = vmatpush2.msra.mxu0 0.0
          %2144 = vmatprep.subr.mxu0 0.0
          %2145 = vmatpush2.msra.mxu0 0.0
          %2146 = vmatprep.subr.mxu0 0.0
          %2147 = vmatpush2.msra.mxu0 0.0
          %2148 = vmatprep.subr.mxu0 0.0
          %2149 = vmatpush2.msra.mxu0 0.0
          %2150 = vmatprep.subr.mxu0 0.0
          %2151 = vmatpush2.msra.mxu0 0.0
          %2152 = vmatprep.subr.mxu0 0.0
          %2153 = vmatpush2.msra.mxu0 0.0
          %2154 = vmatprep.mubr.f32.mxu0 0.0
          %2155 = vmatmul.mubr.f32.gmra.mxu0 %v2088
          %v2156 = vpop.f32.mrf.mxu0
          %v2157 = vadd.f32 0.0, %v2156
          %v2158 = vpop.f32.mrf.mxu0
          %2159 = vdwg.mxu0
          %v2161 = vsel %vm1661, %v2025, 0
          %2163 = vmatprep.subr.mxu0 0.0
          %2164 = vmatpush1.msra.mxu0 0.0
          %2165 = vmatprep.subr.mxu0 0.0
          %2166 = vmatpush1.msra.mxu0 0.0
          %2167 = vmatprep.subr.mxu0 0.0
          %2168 = vmatpush1.msra.mxu0 0.0
          %2169 = vmatprep.subr.mxu0 0.0
          %2170 = vmatpush1.msra.mxu0 0.0
          %2171 = vmatprep.subr.mxu0 0.0
          %2172 = vmatpush1.msra.mxu0 0.0
          %2173 = vmatprep.subr.mxu0 0.0
          %2174 = vmatpush1.msra.mxu0 0.0
          %2175 = vmatprep.subr.mxu0 0.0
          %2176 = vmatpush1.msra.mxu0 0.0
          %2177 = vmatprep.subr.mxu0 0.0
          %2178 = vmatpush1.msra.mxu0 0.0
          %2179 = vmatprep.subr.mxu0 0.0
          %2180 = vmatpush1.msra.mxu0 0.0
          %2181 = vmatprep.subr.mxu0 0.0
          %2182 = vmatpush1.msra.mxu0 0.0
          %2183 = vmatprep.subr.mxu0 0.0
          %2184 = vmatpush1.msra.mxu0 0.0
          %2185 = vmatprep.subr.mxu0 0.0
          %2186 = vmatpush1.msra.mxu0 0.0
          %2187 = vmatprep.subr.mxu0 0.0
          %2188 = vmatpush1.msra.mxu0 0.0
          %2189 = vmatprep.subr.mxu0 0.0
          %2190 = vmatpush1.msra.mxu0 0.0
          %2191 = vmatprep.subr.mxu0 0.0
          %2192 = vmatpush1.msra.mxu0 0.0
          %2193 = vmatprep.subr.mxu0 0.0
          %2194 = vmatpush1.msra.mxu0 %v1658
          %2195 = vmatprep.subr.mxu0 0.0
          %2196 = vmatpush2.msra.mxu0 0.0
          %2197 = vmatprep.subr.mxu0 0.0
          %2198 = vmatpush2.msra.mxu0 0.0
          %2199 = vmatprep.subr.mxu0 0.0
          %2200 = vmatpush2.msra.mxu0 0.0
          %2201 = vmatprep.subr.mxu0 0.0
          %2202 = vmatpush2.msra.mxu0 0.0
          %2203 = vmatprep.subr.mxu0 0.0
          %2204 = vmatpush2.msra.mxu0 0.0
          %2205 = vmatprep.subr.mxu0 0.0
          %2206 = vmatpush2.msra.mxu0 0.0
          %2207 = vmatprep.subr.mxu0 0.0
          %2208 = vmatpush2.msra.mxu0 0.0
          %2209 = vmatprep.subr.mxu0 0.0
          %2210 = vmatpush2.msra.mxu0 0.0
          %2211 = vmatprep.subr.mxu0 0.0
          %2212 = vmatpush2.msra.mxu0 0.0
          %2213 = vmatprep.subr.mxu0 0.0
          %2214 = vmatpush2.msra.mxu0 0.0
          %2215 = vmatprep.subr.mxu0 0.0
          %2216 = vmatpush2.msra.mxu0 0.0
          %2217 = vmatprep.subr.mxu0 0.0
          %2218 = vmatpush2.msra.mxu0 0.0
          %2219 = vmatprep.subr.mxu0 0.0
          %2220 = vmatpush2.msra.mxu0 0.0
          %2221 = vmatprep.subr.mxu0 0.0
          %2222 = vmatpush2.msra.mxu0 0.0
          %2223 = vmatprep.subr.mxu0 0.0
          %2224 = vmatpush2.msra.mxu0 0.0
          %2225 = vmatprep.subr.mxu0 0.0
          %2226 = vmatpush2.msra.mxu0 0.0
          %2227 = vmatprep.mubr.f32.mxu0 0.0
          %2228 = vmatmul.mubr.f32.gmra.mxu0 %v2161
          %v2229 = vpop.f32.mrf.mxu0
          %v2230 = vadd.f32 0.0, %v2229
          %v2231 = vpop.f32.mrf.mxu0
          %2232 = vdwg.mxu0
          %v2234 = vsel %vm1661, %v2027, 0
          %2236 = vmatprep.subr.mxu0 0.0
          %2237 = vmatpush1.msra.mxu0 0.0
          %2238 = vmatprep.subr.mxu0 0.0
          %2239 = vmatpush1.msra.mxu0 0.0
          %2240 = vmatprep.subr.mxu0 0.0
          %2241 = vmatpush1.msra.mxu0 0.0
          %2242 = vmatprep.subr.mxu0 0.0
          %2243 = vmatpush1.msra.mxu0 0.0
          %2244 = vmatprep.subr.mxu0 0.0
          %2245 = vmatpush1.msra.mxu0 0.0
          %2246 = vmatprep.subr.mxu0 0.0
          %2247 = vmatpush1.msra.mxu0 0.0
          %2248 = vmatprep.subr.mxu0 0.0
          %2249 = vmatpush1.msra.mxu0 0.0
          %2250 = vmatprep.subr.mxu0 0.0
          %2251 = vmatpush1.msra.mxu0 0.0
          %2252 = vmatprep.subr.mxu0 0.0
          %2253 = vmatpush1.msra.mxu0 0.0
          %2254 = vmatprep.subr.mxu0 0.0
          %2255 = vmatpush1.msra.mxu0 0.0
          %2256 = vmatprep.subr.mxu0 0.0
          %2257 = vmatpush1.msra.mxu0 0.0
          %2258 = vmatprep.subr.mxu0 0.0
          %2259 = vmatpush1.msra.mxu0 0.0
          %2260 = vmatprep.subr.mxu0 0.0
          %2261 = vmatpush1.msra.mxu0 0.0
          %2262 = vmatprep.subr.mxu0 0.0
          %2263 = vmatpush1.msra.mxu0 0.0
          %2264 = vmatprep.subr.mxu0 0.0
          %2265 = vmatpush1.msra.mxu0 0.0
          %2266 = vmatprep.subr.mxu0 0.0
          %2267 = vmatpush1.msra.mxu0 %v1659
          %2268 = vmatprep.subr.mxu0 0.0
          %2269 = vmatpush2.msra.mxu0 0.0
          %2270 = vmatprep.subr.mxu0 0.0
          %2271 = vmatpush2.msra.mxu0 0.0
          %2272 = vmatprep.subr.mxu0 0.0
          %2273 = vmatpush2.msra.mxu0 0.0
          %2274 = vmatprep.subr.mxu0 0.0
          %2275 = vmatpush2.msra.mxu0 0.0
          %2276 = vmatprep.subr.mxu0 0.0
          %2277 = vmatpush2.msra.mxu0 0.0
          %2278 = vmatprep.subr.mxu0 0.0
          %2279 = vmatpush2.msra.mxu0 0.0
          %2280 = vmatprep.subr.mxu0 0.0
          %2281 = vmatpush2.msra.mxu0 0.0
          %2282 = vmatprep.subr.mxu0 0.0
          %2283 = vmatpush2.msra.mxu0 0.0
          %2284 = vmatprep.subr.mxu0 0.0
          %2285 = vmatpush2.msra.mxu0 0.0
          %2286 = vmatprep.subr.mxu0 0.0
          %2287 = vmatpush2.msra.mxu0 0.0
          %2288 = vmatprep.subr.mxu0 0.0
          %2289 = vmatpush2.msra.mxu0 0.0
          %2290 = vmatprep.subr.mxu0 0.0
          %2291 = vmatpush2.msra.mxu0 0.0
          %2292 = vmatprep.subr.mxu0 0.0
          %2293 = vmatpush2.msra.mxu0 0.0
          %2294 = vmatprep.subr.mxu0 0.0
          %2295 = vmatpush2.msra.mxu0 0.0
          %2296 = vmatprep.subr.mxu0 0.0
          %2297 = vmatpush2.msra.mxu0 0.0
          %2298 = vmatprep.subr.mxu0 0.0
          %2299 = vmatpush2.msra.mxu0 0.0
          %2300 = vmatprep.mubr.f32.mxu0 0.0
          %2301 = vmatmul.mubr.f32.gmra.mxu0 %v2234
          %v2302 = vpop.f32.mrf.mxu0
          %v2303 = vadd.f32 0.0, %v2302
          %v2304 = vpop.f32.mrf.mxu0
          %2305 = vdwg.mxu0
          %v2307 = vsel %vm1661, %v2029, 0
          %2309 = vmatprep.subr.mxu0 0.0
          %2310 = vmatpush1.msra.mxu0 0.0
          %2311 = vmatprep.subr.mxu0 0.0
          %2312 = vmatpush1.msra.mxu0 0.0
          %2313 = vmatprep.subr.mxu0 0.0
          %2314 = vmatpush1.msra.mxu0 0.0
          %2315 = vmatprep.subr.mxu0 0.0
          %2316 = vmatpush1.msra.mxu0 0.0
          %2317 = vmatprep.subr.mxu0 0.0
          %2318 = vmatpush1.msra.mxu0 0.0
          %2319 = vmatprep.subr.mxu0 0.0
          %2320 = vmatpush1.msra.mxu0 0.0
          %2321 = vmatprep.subr.mxu0 0.0
          %2322 = vmatpush1.msra.mxu0 0.0
          %2323 = vmatprep.subr.mxu0 0.0
          %2324 = vmatpush1.msra.mxu0 0.0
          %2325 = vmatprep.subr.mxu0 0.0
          %2326 = vmatpush1.msra.mxu0 0.0
          %2327 = vmatprep.subr.mxu0 0.0
          %2328 = vmatpush1.msra.mxu0 0.0
          %2329 = vmatprep.subr.mxu0 0.0
          %2330 = vmatpush1.msra.mxu0 0.0
          %2331 = vmatprep.subr.mxu0 0.0
          %2332 = vmatpush1.msra.mxu0 0.0
          %2333 = vmatprep.subr.mxu0 0.0
          %2334 = vmatpush1.msra.mxu0 0.0
          %2335 = vmatprep.subr.mxu0 0.0
          %2336 = vmatpush1.msra.mxu0 0.0
          %2337 = vmatprep.subr.mxu0 0.0
          %2338 = vmatpush1.msra.mxu0 0.0
          %2339 = vmatprep.subr.mxu0 0.0
          %2340 = vmatpush1.msra.mxu0 %v1660
          %2341 = vmatprep.subr.mxu0 0.0
          %2342 = vmatpush2.msra.mxu0 0.0
          %2343 = vmatprep.subr.mxu0 0.0
          %2344 = vmatpush2.msra.mxu0 0.0
          %2345 = vmatprep.subr.mxu0 0.0
          %2346 = vmatpush2.msra.mxu0 0.0
          %2347 = vmatprep.subr.mxu0 0.0
          %2348 = vmatpush2.msra.mxu0 0.0
          %2349 = vmatprep.subr.mxu0 0.0
          %2350 = vmatpush2.msra.mxu0 0.0
          %2351 = vmatprep.subr.mxu0 0.0
          %2352 = vmatpush2.msra.mxu0 0.0
          %2353 = vmatprep.subr.mxu0 0.0
          %2354 = vmatpush2.msra.mxu0 0.0
          %2355 = vmatprep.subr.mxu0 0.0
          %2356 = vmatpush2.msra.mxu0 0.0
          %2357 = vmatprep.subr.mxu0 0.0
          %2358 = vmatpush2.msra.mxu0 0.0
          %2359 = vmatprep.subr.mxu0 0.0
          %2360 = vmatpush2.msra.mxu0 0.0
          %2361 = vmatprep.subr.mxu0 0.0
          %2362 = vmatpush2.msra.mxu0 0.0
          %2363 = vmatprep.subr.mxu0 0.0
          %2364 = vmatpush2.msra.mxu0 0.0
          %2365 = vmatprep.subr.mxu0 0.0
          %2366 = vmatpush2.msra.mxu0 0.0
          %2367 = vmatprep.subr.mxu0 0.0
          %2368 = vmatpush2.msra.mxu0 0.0
          %2369 = vmatprep.subr.mxu0 0.0
          %2370 = vmatpush2.msra.mxu0 0.0
          %2371 = vmatprep.subr.mxu0 0.0
          %2372 = vmatpush2.msra.mxu0 0.0
          %2373 = vmatprep.mubr.f32.mxu0 0.0
          %2374 = vmatmul.mubr.f32.gmra.mxu0 %v2307
          %v2375 = vpop.f32.mrf.mxu0
          %v2376 = vadd.f32 0.0, %v2375
          %v2377 = vpop.f32.mrf.mxu0
          %2378 = vdwg.mxu0
          %v2379 = vadd.f32 %v2083, %v2157
          %v2380 = vadd.f32 %v2084, %v2230
          %v2381 = vadd.f32 %v2085, %v2303
          %v2382 = vadd.f32 %v2086, %v2376
          %2383 = vst.msk [vmem:[#allocation4] sm:$0xff] %vm1661, %v2379
          %2384 = vst.msk [vmem:[#allocation4 + $0x8] sm:$0xff] %vm1661, %v2380
          %2385 = vst.msk [vmem:[#allocation4 + $0x10] sm:$0xff] %vm1661, %v2381
          %2386 = vst.msk [vmem:[#allocation4 + $0x18] sm:$0xff] %vm1661, %v2382
          %2387 = vst.msk [vmem:[#allocation2] sm:$0xff] %vm2054, %v1982
          %2388 = vst.msk [vmem:[#allocation2 + $0x8] sm:$0xff] %vm2054, %v1983
          %2389 = vst.msk [vmem:[#allocation2 + $0x10] sm:$0xff] %vm2054, %v1984
          %2390 = vst.msk [vmem:[#allocation2 + $0x18] sm:$0xff] %vm2054, %v1985
        $region167: #{causal_self_attention.4} parent=142 // pred_fallthru
          _
        %s2391 = sadd.s32 %s491, 1
        %s2392 = smul.u32 %s2391, 8
        %p2393 = scmp.ge.s32.totalorder %s592, %s2392
        // Predicated region
        $region168: #{causal_self_attention.4} parent=142 // pred_check
          %p2394 = pneg %p2393
        $region169: #{causal_self_attention.4} parent=142 // pred_check_branch
          %2396 = sbr.rel (%p2394) target = $region171
        $region170: #{causal_self_attention.4} parent=142 // pred_region
          %v2397 = vld [vmem:[#allocation3] sm:$0xff]
          %v2398 = vld [vmem:[#allocation3 + $0x8] sm:$0xff]
          %v2399 = vld [vmem:[#allocation3 + $0x10] sm:$0xff]
          %v2400 = vld [vmem:[#allocation3 + $0x18] sm:$0xff]
          %v2401 = vrcp.pop %v2397
          %v2402 = vrcp.pop %v2398
          %v2403 = vrcp.pop %v2399
          %v2404 = vrcp.pop %v2400
          %v2405 = vld [vmem:[#allocation4] sm:$0xff]
          %v2406 = vld [vmem:[#allocation4 + $0x8] sm:$0xff]
          %v2407 = vld [vmem:[#allocation4 + $0x10] sm:$0xff]
          %v2408 = vld [vmem:[#allocation4 + $0x18] sm:$0xff]
          %2410 = vset.pattern.permute.xlu0 0
          %2411 = vperm.xlu0 %2410, %v2401
          %v2412 = vpop.permute.xlu0 %2411
          %2415 = vset.pattern.permute.xlu0 0
          %2416 = vperm.xlu0 %2415, %v2402
          %v2417 = vpop.permute.xlu0 %2416
          %2420 = vset.pattern.permute.xlu0 0
          %2421 = vperm.xlu0 %2420, %v2403
          %v2422 = vpop.permute.xlu0 %2421
          %2425 = vset.pattern.permute.xlu0 0
          %2426 = vperm.xlu0 %2425, %v2404
          %v2427 = vpop.permute.xlu0 %2426
          %v2429 = vmul.f32 %v2405, %v2412
          %v2430 = vmul.f32 %v2406, %v2417
          %v2431 = vmul.f32 %v2407, %v2422
          %v2432 = vmul.f32 %v2408, %v2427
          %v2433 = vcombine.low %v2429, %v2431
          %v2434 = vcombine.high %v2429, %v2431
          %v2436 = vunpack.c.l.s4 1983009808
          %v2437 = vunpack.c.0.s8 %v2436
          %v2438 = vlaneseq
          %v2439 = vshrl.u32 %v2438, 7
          %v2440 = vsub.s32 %v2437, %v2439
          %v2441 = vrot.slane %v2433, %v2440
          %v2443 = vunpack.c.l.s4 1983009808
          %v2444 = vunpack.c.0.s8 %v2443
          %v2445 = vlaneseq
          %v2446 = vshrl.u32 %v2445, 7
          %v2447 = vsub.s32 %v2444, %v2446
          %v2448 = vrot.slane %v2434, %v2447
          %v2449 = vcombine.low %v2430, %v2432
          %v2450 = vcombine.high %v2430, %v2432
          %v2452 = vunpack.c.l.s4 1983009808
          %v2453 = vunpack.c.0.s8 %v2452
          %v2454 = vlaneseq
          %v2455 = vshrl.u32 %v2454, 7
          %v2456 = vsub.s32 %v2453, %v2455
          %v2457 = vrot.slane %v2449, %v2456
          %v2459 = vunpack.c.l.s4 1983009808
          %v2460 = vunpack.c.0.s8 %v2459
          %v2461 = vlaneseq
          %v2462 = vshrl.u32 %v2461, 7
          %v2463 = vsub.s32 %v2460, %v2462
          %v2464 = vrot.slane %v2450, %v2463
          %v2465 = vcombine.low %v2441, %v2457
          %v2466 = vcombine.high %v2441, %v2457
          %v2468 = vunpack.c.l.s4 1934713408
          %v2469 = vunpack.c.0.s8 %v2468
          %v2470 = vlaneseq
          %v2471 = vshrl.u32 %v2470, 7
          %v2472 = vsub.s32 %v2469, %v2471
          %v2473 = vrot.slane %v2465, %v2472
          %v2475 = vunpack.c.l.s4 1934713408
          %v2476 = vunpack.c.0.s8 %v2475
          %v2477 = vlaneseq
          %v2478 = vshrl.u32 %v2477, 7
          %v2479 = vsub.s32 %v2476, %v2478
          %v2480 = vrot.slane %v2466, %v2479
          %v2481 = vcombine.low %v2448, %v2464
          %v2482 = vcombine.high %v2448, %v2464
          %v2484 = vunpack.c.l.s4 1934713408
          %v2485 = vunpack.c.0.s8 %v2484
          %v2486 = vlaneseq
          %v2487 = vshrl.u32 %v2486, 7
          %v2488 = vsub.s32 %v2485, %v2487
          %v2489 = vrot.slane %v2481, %v2488
          %v2491 = vunpack.c.l.s4 1934713408
          %v2492 = vunpack.c.0.s8 %v2491
          %v2493 = vlaneseq
          %v2494 = vshrl.u32 %v2493, 7
          %v2495 = vsub.s32 %v2492, %v2494
          %v2496 = vrot.slane %v2482, %v2495
          %v2497 = vcombine.high %v2473, 0.0
          %v2498 = vcombine.high %v2480, 0.0
          %v2499 = vcombine.high %v2489, 0.0
          %v2500 = vcombine.high %v2496, 0.0
          %vm2501 = vcmask 60416
          %2502 = vst.msk [vmem:[%s488] sm:$0xf] %vm2501, %v2473
          %2503 = vst.msk [vmem:[%s488 + $0x4] sm:$0xf] %vm2501, %v2497
          %2504 = vst.msk [vmem:[%s488 + $0x8] sm:$0xf] %vm2501, %v2480
          %2505 = vst.msk [vmem:[%s488 + $0xc] sm:$0xf] %vm2501, %v2498
          %2506 = vst.msk [vmem:[%s488 + $0x10] sm:$0xf] %vm2501, %v2489
          %2507 = vst.msk [vmem:[%s488 + $0x14] sm:$0xf] %vm2501, %v2499
          %2508 = vst.msk [vmem:[%s488 + $0x18] sm:$0xf] %vm2501, %v2496
          %2509 = vst.msk [vmem:[%s488 + $0x1c] sm:$0xf] %vm2501, %v2500
        $region171: #{causal_self_attention.4} parent=142 // pred_fallthru
          _
        %s2510 = sld [smem:[#allocation7 + %s23]]
        %s2511 = smul.u32 8, %s2510
        %p2512 = scmp.lt.s32.totalorder %s22, 1
        %s2513 = scalar_select %p2512, %s22, 1
        %p2514 = scmp.lt.s32.totalorder %s2511, 7
        %s2515 = scalar_select %p2514, %s2511, 7
        %s2516 = smul.addr %s2513, 8
        %s2517 = sadd.s32 %s2515, %s2516
        %s2518 = smul.addr %s2517, 4
        %s2519 = scalar_lea.vmem %s5, %s2518
        // Predicated region
        $region172: #{causal_self_attention.4} parent=142 // pred_check
          %p2520 = pneg %p142
        $region173: #{causal_self_attention.4} parent=142 // pred_check_branch
          %2522 = sbr.rel (%p2520) target = $region175
        $region174: #{causal_self_attention.4} parent=142 // pred_region
          %s2523 = sld [smem:[#allocation7 + %s23]]
          %s2524 = smul.u32 8, %s2523
        $region175: #{causal_self_attention.4} parent=142 // pred_fallthru
          _
      $region143: #{causal_self_attention.4} parent=5 // pred_fallthru
        _
      %p2525 = scmp.le.s32.totalorder 2, %s13
      // Predicated region
      $region176: #{causal_self_attention.4} parent=5 // pred_check
        %p2526 = pneg %p2525
      $region177: #{causal_self_attention.4} parent=5 // pred_check_branch
        %2528 = sbr.rel (%p2526) target = $region179
      $region178: #{causal_self_attention.4} parent=5 // pred_region
        %s2529 = ssub.s32 %s13, 2
        // Predicated region
        $region180: #{causal_self_attention.4} parent=178 // pred_check
          %p2530 = pneg %p148
        $region181: #{causal_self_attention.4} parent=178 // pred_check_branch
          %2532 = sbr.rel (%p2530) target = $region183
        $region182: #{causal_self_attention.4} parent=178 // pred_region
          %s2533 = sld [smem:[#allocation7 + %s25]]
          %s2534 = smul.u32 8, %s2533
          %p2535 = scmp.lt.s32.totalorder %s24, 1
          %s2536 = scalar_select %p2535, %s24, 1
          %p2537 = scmp.lt.s32.totalorder %s2534, 7
          %s2538 = scalar_select %p2537, %s2534, 7
          %s2539 = smul.addr %s2536, 8
          %s2540 = sadd.s32 %s2538, %s2539
          %s2541 = smul.addr %s2540, 4
          %s2542 = scalar_lea.vmem %s5, %s2541
        $region183: #{causal_self_attention.4} parent=178 // pred_fallthru
          _
      $region179: #{causal_self_attention.4} parent=5 // pred_fallthru
        _
    $region6: #{causal_self_attention.4} parent=1 // loop_footer
      %s17 = sadd.s32 1, %s13
    $region7: #{causal_self_attention.4} parent=1 // loop_footer_branch
      %12 = sbr.rel target = $region3
    $region8: #{causal_self_attention.4} parent=1 // loop_exit
      _

</llo_original>
